<compile_context>
chip_gen: v7x
topology: tpu7x:2x2x1
jax: 0.10.0
libtpu: 0.0.40
codegen_flags: <defaults>
</compile_context>

<pallas_src>
import functools

import jax
import jax.numpy as jnp
from jax.experimental import pallas as pl
from jax.experimental.pallas import tpu as pltpu

EPS = 1e-5
LANE = 128


def _round_up(x, m):
    return (x + m - 1) // m * m


def _vmem_limit_bytes():
    """Generation-aware scoped-VMEM limit: ~3/4 of physical, capped at 96 MiB."""
    try:
        cap = int(pltpu.get_tpu_info().vmem_capacity_bytes)
        return max(32 * 1024 * 1024, min(cap * 3 // 4, 96 * 1024 * 1024))
    except Exception:
        return 32 * 1024 * 1024


def _pick_nb(N, P, Cpi, Cpo, budget_bytes=12 * 1024 * 1024):
    """Batch elements per grid step: largest divisor of N (<=8) whose rough per-step
    working set (blocks + bf16 scratch + live values) stays well under the VMEM cap."""
    per_elem = 48 * (P + 2) * max(Cpi, Cpo)
    for cand in range(min(N, 8), 0, -1):
        if N % cand == 0 and cand * per_elem <= budget_bytes:
            return cand
    return 1


# -----------------------------------------------------------------------------
# In-kernel helpers
# -----------------------------------------------------------------------------
def _stage_halo(dst_ref, v):
    """Write v (nb, P, C) into dst_ref (nb, P+2, C) rows 1..P; rows 0 and P+1 are zero.

    The zero halo rows are rewritten every step (scratch is per-core and persists, but
    re-zeroing keeps megacore-sharded grids trivially correct)."""
    P = v.shape[1]
    z = jnp.zeros((v.shape[0], 1, v.shape[2]), dst_ref.dtype)
    dst_ref[:, 0:1, :] = z
    dst_ref[:, 1:P + 1, :] = v.astype(dst_ref.dtype)
    dst_ref[:, P + 1:P + 2, :] = z


def _poly_conv3(se_ref, so_ref, w_ref, b_ref):
    """Polyphase Conv1d(k=3, pad=1) on even/odd streams staged with a zero halo.

    se_ref / so_ref: (nb, P+2, Ci) bf16 scratch (rows 0 and P+1 zero).
    w_ref: (3, Ci, Co) bf16;  b_ref: (1, 1, Co) f32.
    Returns y: (2*nb*P, Co) f32.  Rows [0, nb*P) are the conv outputs at the even
    full-length positions 2p (batch-major flattening) and rows [nb*P, 2*nb*P) are the
    outputs at the odd positions 2p+1.
    """
    nb, pp2, ci = se_ref.shape
    P = pp2 - 2
    M = nb * P

    e_c = se_ref[:, 1:P + 1, :]      # even[p]
    e_p1 = se_ref[:, 2:P + 2, :]     # even[p+1]  (zero at p = P-1)
    o_m1 = so_ref[:, 0:P, :]         # odd[p-1]   (zero at p = 0)
    o_c = so_ref[:, 1:P + 1, :]      # odd[p]

    def lhs(ev_part, od_part):
        # Stack the even-output and odd-output operands along M so each tap is a single
        # (2*nb*P, Ci) x (Ci, Co) MXU matmul (3 matmuls per pass instead of 6).
        return jnp.concatenate([ev_part, od_part], axis=0).reshape(2 * M, ci)

    y = (jnp.dot(lhs(o_m1, e_c), w_ref[0], preferred_element_type=jnp.float32)
         + jnp.dot(lhs(e_c, o_c), w_ref[1], preferred_element_type=jnp.float32)
         + jnp.dot(lhs(o_c, e_p1), w_ref[2], preferred_element_type=jnp.float32))
    return y + b_ref[0]                                   # broadcast (1, Co)


def _split_store(y, nb, P, e_out_ref, o_out_ref, s_ref, q_ref):
    """Split merged (2*nb*P, Co) conv output into even/odd bf16 blocks + BN partials."""
    M = nb * P
    Co = y.shape[-1]
    e_out_ref[...] = y[:M].reshape(nb, P, Co).astype(e_out_ref.dtype)
    o_out_ref[...] = y[M:].reshape(nb, P, Co).astype(o_out_ref.dtype)
    # Per-channel partials for BatchNorm (var = E[y^2] - mean^2, single pass).
    s_ref[0] = jnp.sum(y, axis=0, keepdims=True)
    q_ref[0] = jnp.sum(y * y, axis=0, keepdims=True)


# -----------------------------------------------------------------------------
# Kernels
# -----------------------------------------------------------------------------
def _unpool_conv1_kernel(x_ref, par_ref, w_ref, b_ref,
                         ye_ref, yo_ref, s_ref, q_ref,
                         se_ref, so_ref):
    """MaxUnpool1d(2) via parity mask (polyphase) + Conv1d #1 + BN1 partial sums."""
    x = x_ref[...]                       # (nb, P, Cpi) bf16
    par = par_ref[...]                   # (nb, P, Cpi) bf16 in {0, 1}
    odd = x * par                        # u[2p+1]
    even = x - odd                       # u[2p]
    _stage_halo(se_ref, even)
    _stage_halo(so_ref, odd)

    y = _poly_conv3(se_ref, so_ref, w_ref, b_ref)
    _split_store(y, x.shape[0], x.shape[1], ye_ref, yo_ref, s_ref, q_ref)


def _bn_relu_conv2_kernel(ye_ref, yo_ref, w_ref, b_ref, sc_ref, sh_ref,
                          ze_ref, zo_ref, s_ref, q_ref,
                          se_ref, so_ref):
    """BN1 + ReLU + Conv1d #2 + BN2 partial sums."""
    sc = sc_ref[...]                     # (1, 1, Cpo) f32
    sh = sh_ref[...]
    a_e = jnp.maximum(ye_ref[...].astype(jnp.float32) * sc + sh, 0.0)
    a_o = jnp.maximum(yo_ref[...].astype(jnp.float32) * sc + sh, 0.0)
    _stage_halo(se_ref, a_e)
    _stage_halo(so_ref, a_o)

    z = _poly_conv3(se_ref, so_ref, w_ref, b_ref)
    _split_store(z, a_e.shape[0], a_e.shape[1], ze_ref, zo_ref, s_ref, q_ref)


# -----------------------------------------------------------------------------
# Wrapper
# -----------------------------------------------------------------------------
@functools.partial(jax.jit, static_argnames=("out_length",))
def up_forward(x_ncp, idx_ncp, out_length, params):
    """x_ncp: (N, Cin, P) pooled input; idx_ncp: (N, Cin, P) pool indices
    (as produced by MaxPool1d(2, return_indices=True)); out_length = unpooled length.
    Returns (N, Cout, out_length) float32."""
    w1, b1, g1, be1, w2, b2, g2, be2 = params
    N, Cin, P = x_ncp.shape
    Cout = w1.shape[0]
    L = out_length
    assert L == 2 * P, "out_length must be exactly 2 * pooled length"

    Cpi = _round_up(Cin, LANE)
    Cpo = _round_up(Cout, LANE)
    nb = _pick_nb(N, P, Cpi, Cpo)
    grid = (N // nb,)

    # NCL -> NLC (channels on the 128-wide lane axis), zero-pad channel lanes.
    # Activations enter as bf16 (they are bf16 MXU operands anyway); the unpool parity
    # mask replaces the 4-byte idx stream with a 2-byte {0,1} mask.
    x_nlc = jnp.pad(jnp.transpose(x_ncp, (0, 2, 1)).astype(jnp.bfloat16),
                    ((0, 0), (0, 0), (0, Cpi - Cin)))
    par = (idx_ncp.astype(jnp.int32) & 1).astype(jnp.bfloat16)
    par_nlc = jnp.pad(jnp.transpose(par, (0, 2, 1)),
                      ((0, 0), (0, 0), (0, Cpi - Cin)))

    def prep_w(w, cpi):
        ws = jnp.transpose(w, (2, 1, 0)).astype(jnp.float32)          # (3, Cin, Cout)
        ws = jnp.pad(ws, ((0, 0), (0, cpi - ws.shape[1]), (0, Cpo - ws.shape[2])))
        return ws.astype(jnp.bfloat16)                                # bf16 MXU operands

    def prep_v(v):
        return jnp.pad(v.astype(jnp.float32), (0, Cpo - v.shape[0])).reshape(1, 1, Cpo)

    w1s, w2s = prep_w(w1, Cpi), prep_w(w2, Cpo)
    b1p, g1p, be1p = prep_v(b1), prep_v(g1), prep_v(be1)
    b2p, g2p, be2p = prep_v(b2), prep_v(g2), prep_v(be2)

    cparams = pltpu.CompilerParams(
        dimension_semantics=("parallel",),        # megacore shards the batch axis
        vmem_limit_bytes=_vmem_limit_bytes(),     # generation-aware scoped VMEM
    )

    def act_spec(c):
        return pl.BlockSpec((nb, P, c), lambda n: (n, 0, 0))

    def full_spec(shape):
        nd = len(shape)
        return pl.BlockSpec(shape, lambda n: (0,) * nd)

    stat_spec = pl.BlockSpec((1, 1, Cpo), lambda n: (n, 0, 0))
    act_out = jax.ShapeDtypeStruct((N, P, Cpo), jnp.bfloat16)
    stat_out = jax.ShapeDtypeStruct((grid[0], 1, Cpo), jnp.float32)
    cnt = float(N * L)

    def bn_fold(s, q, g, be):
        # Per-step partials are written to distinct rows (keeps the grid axis
        # 'parallel'); reduce the tiny (G, 1, Cpo) arrays here.
        mean = jnp.sum(s, axis=0, keepdims=True) / cnt
        m2 = jnp.sum(q, axis=0, keepdims=True) / cnt
        var = jnp.maximum(m2 - mean * mean, 0.0)           # biased (training) variance
        scale = g * jax.lax.rsqrt(var + EPS)
        shift = be - mean * scale
        return scale, shift

    # Pass 1: unpool + conv1 (+ BN1 partial sums).
    ye, yo, s1, q1 = pl.pallas_call(
        _unpool_conv1_kernel,
        grid=grid,
        in_specs=[act_spec(Cpi), act_spec(Cpi),
                  full_spec((3, Cpi, Cpo)), full_spec((1, 1, Cpo))],
        out_specs=(act_spec(Cpo), act_spec(Cpo), stat_spec, stat_spec),
        out_shape=(act_out, act_out, stat_out, stat_out),
        scratch_shapes=[pltpu.VMEM((nb, P + 2, Cpi), jnp.bfloat16),
                        pltpu.VMEM((nb, P + 2, Cpi), jnp.bfloat16)],
        compiler_params=cparams,
    )(x_nlc, par_nlc, w1s, b1p)
    sc1, sh1 = bn_fold(s1, q1, g1p, be1p)

    # Pass 2: BN1 + ReLU + conv2 (+ BN2 partial sums).
    ze, zo, s2, q2 = pl.pallas_call(
        _bn_relu_conv2_kernel,
        grid=grid,
        in_specs=[act_spec(Cpo), act_spec(Cpo),
                  full_spec((3, Cpo, Cpo)), full_spec((1, 1, Cpo)),
                  full_spec((1, 1, Cpo)), full_spec((1, 1, Cpo))],
        out_specs=(act_spec(Cpo), act_spec(Cpo), stat_spec, stat_spec),
        out_shape=(act_out, act_out, stat_out, stat_out),
        scratch_shapes=[pltpu.VMEM((nb, P + 2, Cpo), jnp.bfloat16),
                        pltpu.VMEM((nb, P + 2, Cpo), jnp.bfloat16)],
        compiler_params=cparams,
    )(ye, yo, w2s, b2p, sc1, sh1)
    sc2, sh2 = bn_fold(s2, q2, g2p, be2p)

    # Fused XLA epilogue (replaces the former pass-3 pallas_call): BN2 + ReLU +
    # channel strip + even/odd interleave + NLC->NCL in one fusion; reads the bf16
    # conv2 outputs once and writes only the real Cout channels once.
    sc2c, sh2c = sc2[:, :, :Cout], sh2[:, :, :Cout]
    oe = jnp.maximum(ze[:, :, :Cout].astype(jnp.float32) * sc2c + sh2c, 0.0)
    oo = jnp.maximum(zo[:, :, :Cout].astype(jnp.float32) * sc2c + sh2c, 0.0)
    out_nlc = jnp.stack([oe, oo], axis=2).reshape(N, L, Cout)
    return jnp.transpose(out_nlc, (0, 2, 1))


# -----------------------------------------------------------------------------
# Parameters / reference / test
# -----------------------------------------------------------------------------
def init_params(key, in_ch, out_ch):
    k = jax.random.split(key, 8)
    w1 = 0.3 * jax.random.normal(k[0], (out_ch, in_ch, 3), jnp.float32)
    b1 = 0.1 * jax.random.normal(k[1], (out_ch,), jnp.float32)
    g1 = 1.0 + 0.1 * jax.random.normal(k[2], (out_ch,), jnp.float32)
    be1 = 0.1 * jax.random.normal(k[3], (out_ch,), jnp.float32)
    w2 = 0.3 * jax.random.normal(k[4], (out_ch, out_ch, 3), jnp.float32)
    b2 = 0.1 * jax.random.normal(k[5], (out_ch,), jnp.float32)
    g2 = 1.0 + 0.1 * jax.random.normal(k[6], (out_ch,), jnp.float32)
    be2 = 0.1 * jax.random.normal(k[7], (out_ch,), jnp.float32)
    return (w1, b1, g1, be1, w2, b2, g2, be2)


def reference(x_ncp, idx_ncp, out_length, params):
    """Pure-JAX (XLA) reference of the PyTorch `Up` forward for validation."""
    w1, b1, g1, be1, w2, b2, g2, be2 = params
    # MaxUnpool1d(2): scatter pooled values to their recorded positions.
    oh = jax.nn.one_hot(idx_ncp, out_length, dtype=jnp.float32)       # (N, C, P, L)
    u = jnp.einsum('ncpl,ncp->ncl', oh, x_ncp.astype(jnp.float32))

    def conv1d(x, w, b):
        y = jax.lax.conv_general_dilated(
            x, w, window_strides=(1,), padding=((1, 1),),
            dimension_numbers=('NCH', 'OIH', 'NCH'))
        return y + b[None, :, None]

    def bn(x, g, be):
        mean = x.mean(axis=(0, 2), keepdims=True)
        var = ((x - mean) ** 2).mean(axis=(0, 2), keepdims=True)
        return (x - mean) * jax.lax.rsqrt(var + EPS) * g[None, :, None] + be[None, :, None]

    h = jnp.maximum(bn(conv1d(u, w1, b1), g1, be1), 0.0)
    h = jnp.maximum(bn(conv1d(h, w2, b2), g2, be2), 0.0)
    return h


if __name__ == "__main__":
    key = jax.random.PRNGKey(0)
    kx, kb, kp = jax.random.split(key, 3)

    N, Cin, Cout, L = 16, 4, 8, 16        # grid of 2 steps with nb=8
    P = L // 2
    x = jax.random.normal(kx, (N, Cin, P), jnp.float32)
    # Pool indices as MaxPool1d(2, return_indices=True) would produce: 2p or 2p+1.
    sel = jax.random.bernoulli(kb, 0.5, (N, Cin, P)).astype(jnp.int32)
    idx = 2 * jnp.arange(P, dtype=jnp.int32)[None, None, :] + sel
    params = init_params(kp, Cin, Cout)

    out = up_forward(x, idx, L, params)
    out = jax.block_until_ready(out)

    ref = reference(x, idx, L, params)
    assert out.shape == (N, Cout, L), out.shape
    max_err = float(jnp.max(jnp.abs(out - ref)))
    # bf16 matmul operands (f32 accumulation) -> loose-ish tolerance vs the f32 reference.
    assert jnp.allclose(out, ref, atol=5e-2, rtol=5e-2), f"mismatch, max abs err={max_err}"
    print("KERNEL_OK")
</pallas_src>

<mosaic_0001>
module attributes {stable_mosaic.version = 11 : i64} {
  func.func @_unpool_conv1_kernel(%arg0: i32, %arg1: memref<8x8x128xbf16, #tpu.memory_space<vmem>>, %arg2: memref<8x8x128xbf16, #tpu.memory_space<vmem>>, %arg3: memref<3x128x128xbf16, #tpu.memory_space<vmem>>, %arg4: memref<1x1x128xf32, #tpu.memory_space<vmem>>, %arg5: memref<8x8x128xbf16, #tpu.memory_space<vmem>>, %arg6: memref<8x8x128xbf16, #tpu.memory_space<vmem>>, %arg7: memref<1x1x128xf32, #tpu.memory_space<vmem>>, %arg8: memref<1x1x128xf32, #tpu.memory_space<vmem>>, %arg9: memref<8x10x128xbf16, #tpu.memory_space<vmem>>, %arg10: memref<8x10x128xbf16, #tpu.memory_space<vmem>>) attributes {dimension_semantics = [#tpu.dimension_semantics<parallel>], iteration_bounds = array<i64: 2>, scalar_prefetch = 0 : i64, scratch_operands = 2 : i64, tpu.core_type = #tpu.core_type<tc>, window_params = [{transform_indices = @transform_0, window_bounds = array<i64: 8, 8, 128>}, {transform_indices = @transform_1, window_bounds = array<i64: 8, 8, 128>}, {pipeline_mode = #tpu.pipeline_mode<synchronous>, transform_indices = @transform_2, window_bounds = array<i64: 3, 128, 128>}, {pipeline_mode = #tpu.pipeline_mode<synchronous>, transform_indices = @transform_3, window_bounds = array<i64: 1, 1, 128>}, {transform_indices = @transform_4, window_bounds = array<i64: 8, 8, 128>}, {transform_indices = @transform_5, window_bounds = array<i64: 8, 8, 128>}, {transform_indices = @transform_6, window_bounds = array<i64: 1, 1, 128>}, {transform_indices = @transform_7, window_bounds = array<i64: 1, 1, 128>}]} {
    %c0 = arith.constant 0 : index
    %c0_0 = arith.constant 0 : index
    %c0_1 = arith.constant 0 : index
    %0 = vector.load %arg1[%c0, %c0_0, %c0_1] : memref<8x8x128xbf16, #tpu.memory_space<vmem>>, vector<8x8x128xbf16>
    %c0_2 = arith.constant 0 : index
    %c0_3 = arith.constant 0 : index
    %c0_4 = arith.constant 0 : index
    %1 = vector.load %arg2[%c0_2, %c0_3, %c0_4] : memref<8x8x128xbf16, #tpu.memory_space<vmem>>, vector<8x8x128xbf16>
    %2 = arith.mulf %0, %1 : vector<8x8x128xbf16>
    %3 = arith.subf %0, %2 : vector<8x8x128xbf16>
    %cst = arith.constant 0.000000e+00 : bf16
    %4 = vector.broadcast %cst : bf16 to vector<8x1x128xbf16>
    %c0_5 = arith.constant 0 : index
    %c0_6 = arith.constant 0 : index
    %c0_7 = arith.constant 0 : index
    %5 = vector.load %arg9[%c0_5, %c0_6, %c0_7] : memref<8x10x128xbf16, #tpu.memory_space<vmem>>, vector<8x1x128xbf16>
    tpu.vector_store %arg9[%c0_5, %c0_6, %c0_7], %4 {strides = array<i32>} : memref<8x10x128xbf16, #tpu.memory_space<vmem>>, vector<8x1x128xbf16>,
    %c0_8 = arith.constant 0 : index
    %c1 = arith.constant 1 : index
    %c0_9 = arith.constant 0 : index
    %6 = vector.load %arg9[%c0_8, %c1, %c0_9] : memref<8x10x128xbf16, #tpu.memory_space<vmem>>, vector<8x8x128xbf16>
    tpu.vector_store %arg9[%c0_8, %c1, %c0_9], %3 {strides = array<i32>} : memref<8x10x128xbf16, #tpu.memory_space<vmem>>, vector<8x8x128xbf16>,
    %c0_10 = arith.constant 0 : index
    %c9 = arith.constant 9 : index
    %c0_11 = arith.constant 0 : index
    %7 = vector.load %arg9[%c0_10, %c9, %c0_11] : memref<8x10x128xbf16, #tpu.memory_space<vmem>>, vector<8x1x128xbf16>
    tpu.vector_store %arg9[%c0_10, %c9, %c0_11], %4 {strides = array<i32>} : memref<8x10x128xbf16, #tpu.memory_space<vmem>>, vector<8x1x128xbf16>,
    %cst_12 = arith.constant 0.000000e+00 : bf16
    %8 = vector.broadcast %cst_12 : bf16 to vector<8x1x128xbf16>
    %c0_13 = arith.constant 0 : index
    %c0_14 = arith.constant 0 : index
    %c0_15 = arith.constant 0 : index
    %9 = vector.load %arg10[%c0_13, %c0_14, %c0_15] : memref<8x10x128xbf16, #tpu.memory_space<vmem>>, vector<8x1x128xbf16>
    tpu.vector_store %arg10[%c0_13, %c0_14, %c0_15], %8 {strides = array<i32>} : memref<8x10x128xbf16, #tpu.memory_space<vmem>>, vector<8x1x128xbf16>,
    %c0_16 = arith.constant 0 : index
    %c1_17 = arith.constant 1 : index
    %c0_18 = arith.constant 0 : index
    %10 = vector.load %arg10[%c0_16, %c1_17, %c0_18] : memref<8x10x128xbf16, #tpu.memory_space<vmem>>, vector<8x8x128xbf16>
    tpu.vector_store %arg10[%c0_16, %c1_17, %c0_18], %2 {strides = array<i32>} : memref<8x10x128xbf16, #tpu.memory_space<vmem>>, vector<8x8x128xbf16>,
    %c0_19 = arith.constant 0 : index
    %c9_20 = arith.constant 9 : index
    %c0_21 = arith.constant 0 : index
    %11 = vector.load %arg10[%c0_19, %c9_20, %c0_21] : memref<8x10x128xbf16, #tpu.memory_space<vmem>>, vector<8x1x128xbf16>
    tpu.vector_store %arg10[%c0_19, %c9_20, %c0_21], %8 {strides = array<i32>} : memref<8x10x128xbf16, #tpu.memory_space<vmem>>, vector<8x1x128xbf16>,
    %c0_22 = arith.constant 0 : index
    %c1_23 = arith.constant 1 : index
    %c0_24 = arith.constant 0 : index
    %12 = vector.load %arg9[%c0_22, %c1_23, %c0_24] : memref<8x10x128xbf16, #tpu.memory_space<vmem>>, vector<8x8x128xbf16>
    %c0_25 = arith.constant 0 : index
    %c2 = arith.constant 2 : index
    %c0_26 = arith.constant 0 : index
    %13 = vector.load %arg9[%c0_25, %c2, %c0_26] : memref<8x10x128xbf16, #tpu.memory_space<vmem>>, vector<8x8x128xbf16>
    %c0_27 = arith.constant 0 : index
    %c0_28 = arith.constant 0 : index
    %c0_29 = arith.constant 0 : index
    %14 = vector.load %arg10[%c0_27, %c0_28, %c0_29] : memref<8x10x128xbf16, #tpu.memory_space<vmem>>, vector<8x8x128xbf16>
    %c0_30 = arith.constant 0 : index
    %c1_31 = arith.constant 1 : index
    %c0_32 = arith.constant 0 : index
    %15 = vector.load %arg10[%c0_30, %c1_31, %c0_32] : memref<8x10x128xbf16, #tpu.memory_space<vmem>>, vector<8x8x128xbf16>
    %16 = tpu.concatenate %14, %12 in 0 : vector<8x8x128xbf16>, vector<8x8x128xbf16> -> vector<16x8x128xbf16>
    %17 = vector.shape_cast %16 : vector<16x8x128xbf16> to vector<128x128xbf16>
    %c0_33 = arith.constant 0 : index
    %c0_34 = arith.constant 0 : index
    %c0_35 = arith.constant 0 : index
    %18 = vector.load %arg3[%c0_33, %c0_34, %c0_35] : memref<3x128x128xbf16, #tpu.memory_space<vmem>>, vector<1x128x128xbf16>
    %19 = vector.shape_cast %18 : vector<1x128x128xbf16> to vector<128x128xbf16>
    %cst_36 = arith.constant dense<0.000000e+00> : vector<128x128xf32>
    %20 = tpu.matmul %17, %19, %cst_36 {dimension_numbers = #tpu.dot_dimension_numbers<[1], [0], [0], [1], [0, 0, 1, 1], [], []>} : vector<128x128xbf16>, vector<128x128xbf16>, vector<128x128xf32> -> vector<128x128xf32>
    %21 = tpu.concatenate %12, %15 in 0 : vector<8x8x128xbf16>, vector<8x8x128xbf16> -> vector<16x8x128xbf16>
    %22 = vector.shape_cast %21 : vector<16x8x128xbf16> to vector<128x128xbf16>
    %c1_37 = arith.constant 1 : index
    %c0_38 = arith.constant 0 : index
    %c0_39 = arith.constant 0 : index
    %23 = vector.load %arg3[%c1_37, %c0_38, %c0_39] : memref<3x128x128xbf16, #tpu.memory_space<vmem>>, vector<1x128x128xbf16>
    %24 = vector.shape_cast %23 : vector<1x128x128xbf16> to vector<128x128xbf16>
    %cst_40 = arith.constant dense<0.000000e+00> : vector<128x128xf32>
    %25 = tpu.matmul %22, %24, %cst_40 {dimension_numbers = #tpu.dot_dimension_numbers<[1], [0], [0], [1], [0, 0, 1, 1], [], []>} : vector<128x128xbf16>, vector<128x128xbf16>, vector<128x128xf32> -> vector<128x128xf32>
    %26 = arith.addf %20, %25 : vector<128x128xf32>
    %27 = tpu.concatenate %15, %13 in 0 : vector<8x8x128xbf16>, vector<8x8x128xbf16> -> vector<16x8x128xbf16>
    %28 = vector.shape_cast %27 : vector<16x8x128xbf16> to vector<128x128xbf16>
    %c2_41 = arith.constant 2 : index
    %c0_42 = arith.constant 0 : index
    %c0_43 = arith.constant 0 : index
    %29 = vector.load %arg3[%c2_41, %c0_42, %c0_43] : memref<3x128x128xbf16, #tpu.memory_space<vmem>>, vector<1x128x128xbf16>
    %30 = vector.shape_cast %29 : vector<1x128x128xbf16> to vector<128x128xbf16>
    %cst_44 = arith.constant dense<0.000000e+00> : vector<128x128xf32>
    %31 = tpu.matmul %28, %30, %cst_44 {dimension_numbers = #tpu.dot_dimension_numbers<[1], [0], [0], [1], [0, 0, 1, 1], [], []>} : vector<128x128xbf16>, vector<128x128xbf16>, vector<128x128xf32> -> vector<128x128xf32>
    %32 = arith.addf %26, %31 : vector<128x128xf32>
    %c0_45 = arith.constant 0 : index
    %c0_46 = arith.constant 0 : index
    %c0_47 = arith.constant 0 : index
    %33 = vector.load %arg4[%c0_45, %c0_46, %c0_47] : memref<1x1x128xf32, #tpu.memory_space<vmem>>, vector<1x1x128xf32>
    %34 = vector.shape_cast %33 : vector<1x1x128xf32> to vector<1x128xf32>
    %35 = vector.broadcast %34 : vector<1x128xf32> to vector<128x128xf32>
    %36 = arith.addf %32, %35 : vector<128x128xf32>
    %37 = vector.extract_strided_slice %36 {offsets = [0, 0], sizes = [64, 128], strides = [1, 1]} : vector<128x128xf32> to vector<64x128xf32>
    %38 = vector.shape_cast %37 : vector<64x128xf32> to vector<8x8x128xf32>
    %39 = arith.truncf %38 : vector<8x8x128xf32> to vector<8x8x128xbf16>
    %c0_48 = arith.constant 0 : index
    %c0_49 = arith.constant 0 : index
    %c0_50 = arith.constant 0 : index
    %40 = vector.load %arg5[%c0_48, %c0_49, %c0_50] : memref<8x8x128xbf16, #tpu.memory_space<vmem>>, vector<8x8x128xbf16>
    tpu.vector_store %arg5[%c0_48, %c0_49, %c0_50], %39 {strides = array<i32>} : memref<8x8x128xbf16, #tpu.memory_space<vmem>>, vector<8x8x128xbf16>,
    %41 = vector.extract_strided_slice %36 {offsets = [64, 0], sizes = [64, 128], strides = [1, 1]} : vector<128x128xf32> to vector<64x128xf32>
    %42 = vector.shape_cast %41 : vector<64x128xf32> to vector<8x8x128xf32>
    %43 = arith.truncf %42 : vector<8x8x128xf32> to vector<8x8x128xbf16>
    %c0_51 = arith.constant 0 : index
    %c0_52 = arith.constant 0 : index
    %c0_53 = arith.constant 0 : index
    %44 = vector.load %arg6[%c0_51, %c0_52, %c0_53] : memref<8x8x128xbf16, #tpu.memory_space<vmem>>, vector<8x8x128xbf16>
    tpu.vector_store %arg6[%c0_51, %c0_52, %c0_53], %43 {strides = array<i32>} : memref<8x8x128xbf16, #tpu.memory_space<vmem>>, vector<8x8x128xbf16>,
    %cst_54 = arith.constant dense<0.000000e+00> : vector<128xf32>
    %45 = vector.multi_reduction <add>, %36, %cst_54 [0] : vector<128x128xf32> to vector<128xf32>
    %46 = vector.shape_cast %45 : vector<128xf32> to vector<1x128xf32>
    %c0_55 = arith.constant 0 : index
    %c0_56 = arith.constant 0 : index
    %c0_57 = arith.constant 0 : index
    %47 = vector.load %arg7[%c0_55, %c0_56, %c0_57] : memref<1x1x128xf32, #tpu.memory_space<vmem>>, vector<1x1x128xf32>
    %48 = vector.shape_cast %47 : vector<1x1x128xf32> to vector<1x128xf32>
    %49 = vector.shape_cast %46 : vector<1x128xf32> to vector<1x1x128xf32>
    tpu.vector_store %arg7[%c0_55, %c0_56, %c0_57], %49 {strides = array<i32>} : memref<1x1x128xf32, #tpu.memory_space<vmem>>, vector<1x1x128xf32>,
    %50 = arith.mulf %36, %36 : vector<128x128xf32>
    %cst_58 = arith.constant dense<0.000000e+00> : vector<128xf32>
    %51 = vector.multi_reduction <add>, %50, %cst_58 [0] : vector<128x128xf32> to vector<128xf32>
    %52 = vector.shape_cast %51 : vector<128xf32> to vector<1x128xf32>
    %c0_59 = arith.constant 0 : index
    %c0_60 = arith.constant 0 : index
    %c0_61 = arith.constant 0 : index
    %53 = vector.load %arg8[%c0_59, %c0_60, %c0_61] : memref<1x1x128xf32, #tpu.memory_space<vmem>>, vector<1x1x128xf32>
    %54 = vector.shape_cast %53 : vector<1x1x128xf32> to vector<1x128xf32>
    %55 = vector.shape_cast %52 : vector<1x128xf32> to vector<1x1x128xf32>
    tpu.vector_store %arg8[%c0_59, %c0_60, %c0_61], %55 {strides = array<i32>} : memref<1x1x128xf32, #tpu.memory_space<vmem>>, vector<1x1x128xf32>,
    return
  }
  func.func @transform_0(%arg0: i32) -> (i32, i32, i32) {
    %c0_i32 = arith.constant 0 : i32
    %c0_i32_0 = arith.constant 0 : i32
    %c0_i32_1 = arith.constant 0 : i32
    return %arg0, %c0_i32, %c0_i32_0 : i32, i32, i32
  }
  func.func @transform_1(%arg0: i32) -> (i32, i32, i32) {
    %c0_i32 = arith.constant 0 : i32
    %c0_i32_0 = arith.constant 0 : i32
    %c0_i32_1 = arith.constant 0 : i32
    return %arg0, %c0_i32, %c0_i32_0 : i32, i32, i32
  }
  func.func @transform_2(%arg0: i32) -> (i32, i32, i32) {
    %c0_i32 = arith.constant 0 : i32
    %c0_i32_0 = arith.constant 0 : i32
    %c0_i32_1 = arith.constant 0 : i32
    %c0_i32_2 = arith.constant 0 : i32
    return %c0_i32, %c0_i32_0, %c0_i32_1 : i32, i32, i32
  }
  func.func @transform_3(%arg0: i32) -> (i32, i32, i32) {
    %c0_i32 = arith.constant 0 : i32
    %c0_i32_0 = arith.constant 0 : i32
    %c0_i32_1 = arith.constant 0 : i32
    %c0_i32_2 = arith.constant 0 : i32
    return %c0_i32, %c0_i32_0, %c0_i32_1 : i32, i32, i32
  }
  func.func @transform_4(%arg0: i32) -> (i32, i32, i32) {
    %c0_i32 = arith.constant 0 : i32
    %c0_i32_0 = arith.constant 0 : i32
    %c0_i32_1 = arith.constant 0 : i32
    return %arg0, %c0_i32, %c0_i32_0 : i32, i32, i32
  }
  func.func @transform_5(%arg0: i32) -> (i32, i32, i32) {
    %c0_i32 = arith.constant 0 : i32
    %c0_i32_0 = arith.constant 0 : i32
    %c0_i32_1 = arith.constant 0 : i32
    return %arg0, %c0_i32, %c0_i32_0 : i32, i32, i32
  }
  func.func @transform_6(%arg0: i32) -> (i32, i32, i32) {
    %c0_i32 = arith.constant 0 : i32
    %c0_i32_0 = arith.constant 0 : i32
    %c0_i32_1 = arith.constant 0 : i32
    return %arg0, %c0_i32, %c0_i32_0 : i32, i32, i32
  }
  func.func @transform_7(%arg0: i32) -> (i32, i32, i32) {
    %c0_i32 = arith.constant 0 : i32
    %c0_i32_0 = arith.constant 0 : i32
    %c0_i32_1 = arith.constant 0 : i32
    return %arg0, %c0_i32, %c0_i32_0 : i32, i32, i32
  }
}

module attributes {stable_mosaic.version = 11 : i64} {
  func.func @_bn_relu_conv2_kernel(%arg0: i32, %arg1: memref<8x8x128xbf16, #tpu.memory_space<vmem>>, %arg2: memref<8x8x128xbf16, #tpu.memory_space<vmem>>, %arg3: memref<3x128x128xbf16, #tpu.memory_space<vmem>>, %arg4: memref<1x1x128xf32, #tpu.memory_space<vmem>>, %arg5: memref<1x1x128xf32, #tpu.memory_space<vmem>>, %arg6: memref<1x1x128xf32, #tpu.memory_space<vmem>>, %arg7: memref<8x8x128xbf16, #tpu.memory_space<vmem>>, %arg8: memref<8x8x128xbf16, #tpu.memory_space<vmem>>, %arg9: memref<1x1x128xf32, #tpu.memory_space<vmem>>, %arg10: memref<1x1x128xf32, #tpu.memory_space<vmem>>, %arg11: memref<8x10x128xbf16, #tpu.memory_space<vmem>>, %arg12: memref<8x10x128xbf16, #tpu.memory_space<vmem>>) attributes {dimension_semantics = [#tpu.dimension_semantics<parallel>], iteration_bounds = array<i64: 2>, scalar_prefetch = 0 : i64, scratch_operands = 2 : i64, tpu.core_type = #tpu.core_type<tc>, window_params = [{transform_indices = @transform_0, window_bounds = array<i64: 8, 8, 128>}, {transform_indices = @transform_1, window_bounds = array<i64: 8, 8, 128>}, {pipeline_mode = #tpu.pipeline_mode<synchronous>, transform_indices = @transform_2, window_bounds = array<i64: 3, 128, 128>}, {pipeline_mode = #tpu.pipeline_mode<synchronous>, transform_indices = @transform_3, window_bounds = array<i64: 1, 1, 128>}, {pipeline_mode = #tpu.pipeline_mode<synchronous>, transform_indices = @transform_4, window_bounds = array<i64: 1, 1, 128>}, {pipeline_mode = #tpu.pipeline_mode<synchronous>, transform_indices = @transform_5, window_bounds = array<i64: 1, 1, 128>}, {transform_indices = @transform_6, window_bounds = array<i64: 8, 8, 128>}, {transform_indices = @transform_7, window_bounds = array<i64: 8, 8, 128>}, {transform_indices = @transform_8, window_bounds = array<i64: 1, 1, 128>}, {transform_indices = @transform_9, window_bounds = array<i64: 1, 1, 128>}]} {
    %c0 = arith.constant 0 : index
    %c0_0 = arith.constant 0 : index
    %c0_1 = arith.constant 0 : index
    %0 = vector.load %arg5[%c0, %c0_0, %c0_1] : memref<1x1x128xf32, #tpu.memory_space<vmem>>, vector<1x1x128xf32>
    %c0_2 = arith.constant 0 : index
    %c0_3 = arith.constant 0 : index
    %c0_4 = arith.constant 0 : index
    %1 = vector.load %arg6[%c0_2, %c0_3, %c0_4] : memref<1x1x128xf32, #tpu.memory_space<vmem>>, vector<1x1x128xf32>
    %c0_5 = arith.constant 0 : index
    %c0_6 = arith.constant 0 : index
    %c0_7 = arith.constant 0 : index
    %2 = vector.load %arg1[%c0_5, %c0_6, %c0_7] : memref<8x8x128xbf16, #tpu.memory_space<vmem>>, vector<8x8x128xbf16>
    %3 = arith.extf %2 : vector<8x8x128xbf16> to vector<8x8x128xf32>
    %4 = vector.broadcast %0 : vector<1x1x128xf32> to vector<8x8x128xf32>
    %5 = arith.mulf %3, %4 : vector<8x8x128xf32>
    %6 = vector.broadcast %1 : vector<1x1x128xf32> to vector<8x8x128xf32>
    %7 = arith.addf %5, %6 : vector<8x8x128xf32>
    %cst = arith.constant 0.000000e+00 : f32
    %8 = vector.broadcast %cst : f32 to vector<8x8x128xf32>
    %9 = arith.maximumf %7, %8 : vector<8x8x128xf32>
    %c0_8 = arith.constant 0 : index
    %c0_9 = arith.constant 0 : index
    %c0_10 = arith.constant 0 : index
    %10 = vector.load %arg2[%c0_8, %c0_9, %c0_10] : memref<8x8x128xbf16, #tpu.memory_space<vmem>>, vector<8x8x128xbf16>
    %11 = arith.extf %10 : vector<8x8x128xbf16> to vector<8x8x128xf32>
    %12 = vector.broadcast %0 : vector<1x1x128xf32> to vector<8x8x128xf32>
    %13 = arith.mulf %11, %12 : vector<8x8x128xf32>
    %14 = vector.broadcast %1 : vector<1x1x128xf32> to vector<8x8x128xf32>
    %15 = arith.addf %13, %14 : vector<8x8x128xf32>
    %cst_11 = arith.constant 0.000000e+00 : f32
    %16 = vector.broadcast %cst_11 : f32 to vector<8x8x128xf32>
    %17 = arith.maximumf %15, %16 : vector<8x8x128xf32>
    %cst_12 = arith.constant 0.000000e+00 : bf16
    %18 = vector.broadcast %cst_12 : bf16 to vector<8x1x128xbf16>
    %c0_13 = arith.constant 0 : index
    %c0_14 = arith.constant 0 : index
    %c0_15 = arith.constant 0 : index
    %19 = vector.load %arg11[%c0_13, %c0_14, %c0_15] : memref<8x10x128xbf16, #tpu.memory_space<vmem>>, vector<8x1x128xbf16>
    tpu.vector_store %arg11[%c0_13, %c0_14, %c0_15], %18 {strides = array<i32>} : memref<8x10x128xbf16, #tpu.memory_space<vmem>>, vector<8x1x128xbf16>,
    %20 = arith.truncf %9 : vector<8x8x128xf32> to vector<8x8x128xbf16>
    %c0_16 = arith.constant 0 : index
    %c1 = arith.constant 1 : index
    %c0_17 = arith.constant 0 : index
    %21 = vector.load %arg11[%c0_16, %c1, %c0_17] : memref<8x10x128xbf16, #tpu.memory_space<vmem>>, vector<8x8x128xbf16>
    tpu.vector_store %arg11[%c0_16, %c1, %c0_17], %20 {strides = array<i32>} : memref<8x10x128xbf16, #tpu.memory_space<vmem>>, vector<8x8x128xbf16>,
    %c0_18 = arith.constant 0 : index
    %c9 = arith.constant 9 : index
    %c0_19 = arith.constant 0 : index
    %22 = vector.load %arg11[%c0_18, %c9, %c0_19] : memref<8x10x128xbf16, #tpu.memory_space<vmem>>, vector<8x1x128xbf16>
    tpu.vector_store %arg11[%c0_18, %c9, %c0_19], %18 {strides = array<i32>} : memref<8x10x128xbf16, #tpu.memory_space<vmem>>, vector<8x1x128xbf16>,
    %cst_20 = arith.constant 0.000000e+00 : bf16
    %23 = vector.broadcast %cst_20 : bf16 to vector<8x1x128xbf16>
    %c0_21 = arith.constant 0 : index
    %c0_22 = arith.constant 0 : index
    %c0_23 = arith.constant 0 : index
    %24 = vector.load %arg12[%c0_21, %c0_22, %c0_23] : memref<8x10x128xbf16, #tpu.memory_space<vmem>>, vector<8x1x128xbf16>
    tpu.vector_store %arg12[%c0_21, %c0_22, %c0_23], %23 {strides = array<i32>} : memref<8x10x128xbf16, #tpu.memory_space<vmem>>, vector<8x1x128xbf16>,
    %25 = arith.truncf %17 : vector<8x8x128xf32> to vector<8x8x128xbf16>
    %c0_24 = arith.constant 0 : index
    %c1_25 = arith.constant 1 : index
    %c0_26 = arith.constant 0 : index
    %26 = vector.load %arg12[%c0_24, %c1_25, %c0_26] : memref<8x10x128xbf16, #tpu.memory_space<vmem>>, vector<8x8x128xbf16>
    tpu.vector_store %arg12[%c0_24, %c1_25, %c0_26], %25 {strides = array<i32>} : memref<8x10x128xbf16, #tpu.memory_space<vmem>>, vector<8x8x128xbf16>,
    %c0_27 = arith.constant 0 : index
    %c9_28 = arith.constant 9 : index
    %c0_29 = arith.constant 0 : index
    %27 = vector.load %arg12[%c0_27, %c9_28, %c0_29] : memref<8x10x128xbf16, #tpu.memory_space<vmem>>, vector<8x1x128xbf16>
    tpu.vector_store %arg12[%c0_27, %c9_28, %c0_29], %23 {strides = array<i32>} : memref<8x10x128xbf16, #tpu.memory_space<vmem>>, vector<8x1x128xbf16>,
    %c0_30 = arith.constant 0 : index
    %c1_31 = arith.constant 1 : index
    %c0_32 = arith.constant 0 : index
    %28 = vector.load %arg11[%c0_30, %c1_31, %c0_32] : memref<8x10x128xbf16, #tpu.memory_space<vmem>>, vector<8x8x128xbf16>
    %c0_33 = arith.constant 0 : index
    %c2 = arith.constant 2 : index
    %c0_34 = arith.constant 0 : index
    %29 = vector.load %arg11[%c0_33, %c2, %c0_34] : memref<8x10x128xbf16, #tpu.memory_space<vmem>>, vector<8x8x128xbf16>
    %c0_35 = arith.constant 0 : index
    %c0_36 = arith.constant 0 : index
    %c0_37 = arith.constant 0 : index
    %30 = vector.load %arg12[%c0_35, %c0_36, %c0_37] : memref<8x10x128xbf16, #tpu.memory_space<vmem>>, vector<8x8x128xbf16>
    %c0_38 = arith.constant 0 : index
    %c1_39 = arith.constant 1 : index
    %c0_40 = arith.constant 0 : index
    %31 = vector.load %arg12[%c0_38, %c1_39, %c0_40] : memref<8x10x128xbf16, #tpu.memory_space<vmem>>, vector<8x8x128xbf16>
    %32 = tpu.concatenate %30, %28 in 0 : vector<8x8x128xbf16>, vector<8x8x128xbf16> -> vector<16x8x128xbf16>
    %33 = vector.shape_cast %32 : vector<16x8x128xbf16> to vector<128x128xbf16>
    %c0_41 = arith.constant 0 : index
    %c0_42 = arith.constant 0 : index
    %c0_43 = arith.constant 0 : index
    %34 = vector.load %arg3[%c0_41, %c0_42, %c0_43] : memref<3x128x128xbf16, #tpu.memory_space<vmem>>, vector<1x128x128xbf16>
    %35 = vector.shape_cast %34 : vector<1x128x128xbf16> to vector<128x128xbf16>
    %cst_44 = arith.constant dense<0.000000e+00> : vector<128x128xf32>
    %36 = tpu.matmul %33, %35, %cst_44 {dimension_numbers = #tpu.dot_dimension_numbers<[1], [0], [0], [1], [0, 0, 1, 1], [], []>} : vector<128x128xbf16>, vector<128x128xbf16>, vector<128x128xf32> -> vector<128x128xf32>
    %37 = tpu.concatenate %28, %31 in 0 : vector<8x8x128xbf16>, vector<8x8x128xbf16> -> vector<16x8x128xbf16>
    %38 = vector.shape_cast %37 : vector<16x8x128xbf16> to vector<128x128xbf16>
    %c1_45 = arith.constant 1 : index
    %c0_46 = arith.constant 0 : index
    %c0_47 = arith.constant 0 : index
    %39 = vector.load %arg3[%c1_45, %c0_46, %c0_47] : memref<3x128x128xbf16, #tpu.memory_space<vmem>>, vector<1x128x128xbf16>
    %40 = vector.shape_cast %39 : vector<1x128x128xbf16> to vector<128x128xbf16>
    %cst_48 = arith.constant dense<0.000000e+00> : vector<128x128xf32>
    %41 = tpu.matmul %38, %40, %cst_48 {dimension_numbers = #tpu.dot_dimension_numbers<[1], [0], [0], [1], [0, 0, 1, 1], [], []>} : vector<128x128xbf16>, vector<128x128xbf16>, vector<128x128xf32> -> vector<128x128xf32>
    %42 = arith.addf %36, %41 : vector<128x128xf32>
    %43 = tpu.concatenate %31, %29 in 0 : vector<8x8x128xbf16>, vector<8x8x128xbf16> -> vector<16x8x128xbf16>
    %44 = vector.shape_cast %43 : vector<16x8x128xbf16> to vector<128x128xbf16>
    %c2_49 = arith.constant 2 : index
    %c0_50 = arith.constant 0 : index
    %c0_51 = arith.constant 0 : index
    %45 = vector.load %arg3[%c2_49, %c0_50, %c0_51] : memref<3x128x128xbf16, #tpu.memory_space<vmem>>, vector<1x128x128xbf16>
    %46 = vector.shape_cast %45 : vector<1x128x128xbf16> to vector<128x128xbf16>
    %cst_52 = arith.constant dense<0.000000e+00> : vector<128x128xf32>
    %47 = tpu.matmul %44, %46, %cst_52 {dimension_numbers = #tpu.dot_dimension_numbers<[1], [0], [0], [1], [0, 0, 1, 1], [], []>} : vector<128x128xbf16>, vector<128x128xbf16>, vector<128x128xf32> -> vector<128x128xf32>
    %48 = arith.addf %42, %47 : vector<128x128xf32>
    %c0_53 = arith.constant 0 : index
    %c0_54 = arith.constant 0 : index
    %c0_55 = arith.constant 0 : index
    %49 = vector.load %arg4[%c0_53, %c0_54, %c0_55] : memref<1x1x128xf32, #tpu.memory_space<vmem>>, vector<1x1x128xf32>
    %50 = vector.shape_cast %49 : vector<1x1x128xf32> to vector<1x128xf32>
    %51 = vector.broadcast %50 : vector<1x128xf32> to vector<128x128xf32>
    %52 = arith.addf %48, %51 : vector<128x128xf32>
    %53 = vector.extract_strided_slice %52 {offsets = [0, 0], sizes = [64, 128], strides = [1, 1]} : vector<128x128xf32> to vector<64x128xf32>
    %54 = vector.shape_cast %53 : vector<64x128xf32> to vector<8x8x128xf32>
    %55 = arith.truncf %54 : vector<8x8x128xf32> to vector<8x8x128xbf16>
    %c0_56 = arith.constant 0 : index
    %c0_57 = arith.constant 0 : index
    %c0_58 = arith.constant 0 : index
    %56 = vector.load %arg7[%c0_56, %c0_57, %c0_58] : memref<8x8x128xbf16, #tpu.memory_space<vmem>>, vector<8x8x128xbf16>
    tpu.vector_store %arg7[%c0_56, %c0_57, %c0_58], %55 {strides = array<i32>} : memref<8x8x128xbf16, #tpu.memory_space<vmem>>, vector<8x8x128xbf16>,
    %57 = vector.extract_strided_slice %52 {offsets = [64, 0], sizes = [64, 128], strides = [1, 1]} : vector<128x128xf32> to vector<64x128xf32>
    %58 = vector.shape_cast %57 : vector<64x128xf32> to vector<8x8x128xf32>
    %59 = arith.truncf %58 : vector<8x8x128xf32> to vector<8x8x128xbf16>
    %c0_59 = arith.constant 0 : index
    %c0_60 = arith.constant 0 : index
    %c0_61 = arith.constant 0 : index
    %60 = vector.load %arg8[%c0_59, %c0_60, %c0_61] : memref<8x8x128xbf16, #tpu.memory_space<vmem>>, vector<8x8x128xbf16>
    tpu.vector_store %arg8[%c0_59, %c0_60, %c0_61], %59 {strides = array<i32>} : memref<8x8x128xbf16, #tpu.memory_space<vmem>>, vector<8x8x128xbf16>,
    %cst_62 = arith.constant dense<0.000000e+00> : vector<128xf32>
    %61 = vector.multi_reduction <add>, %52, %cst_62 [0] : vector<128x128xf32> to vector<128xf32>
    %62 = vector.shape_cast %61 : vector<128xf32> to vector<1x128xf32>
    %c0_63 = arith.constant 0 : index
    %c0_64 = arith.constant 0 : index
    %c0_65 = arith.constant 0 : index
    %63 = vector.load %arg9[%c0_63, %c0_64, %c0_65] : memref<1x1x128xf32, #tpu.memory_space<vmem>>, vector<1x1x128xf32>
    %64 = vector.shape_cast %63 : vector<1x1x128xf32> to vector<1x128xf32>
    %65 = vector.shape_cast %62 : vector<1x128xf32> to vector<1x1x128xf32>
    tpu.vector_store %arg9[%c0_63, %c0_64, %c0_65], %65 {strides = array<i32>} : memref<1x1x128xf32, #tpu.memory_space<vmem>>, vector<1x1x128xf32>,
    %66 = arith.mulf %52, %52 : vector<128x128xf32>
    %cst_66 = arith.constant dense<0.000000e+00> : vector<128xf32>
    %67 = vector.multi_reduction <add>, %66, %cst_66 [0] : vector<128x128xf32> to vector<128xf32>
    %68 = vector.shape_cast %67 : vector<128xf32> to vector<1x128xf32>
    %c0_67 = arith.constant 0 : index
    %c0_68 = arith.constant 0 : index
    %c0_69 = arith.constant 0 : index
    %69 = vector.load %arg10[%c0_67, %c0_68, %c0_69] : memref<1x1x128xf32, #tpu.memory_space<vmem>>, vector<1x1x128xf32>
    %70 = vector.shape_cast %69 : vector<1x1x128xf32> to vector<1x128xf32>
    %71 = vector.shape_cast %68 : vector<1x128xf32> to vector<1x1x128xf32>
    tpu.vector_store %arg10[%c0_67, %c0_68, %c0_69], %71 {strides = array<i32>} : memref<1x1x128xf32, #tpu.memory_space<vmem>>, vector<1x1x128xf32>,
    return
  }
  func.func @transform_0(%arg0: i32) -> (i32, i32, i32) {
    %c0_i32 = arith.constant 0 : i32
    %c0_i32_0 = arith.constant 0 : i32
    %c0_i32_1 = arith.constant 0 : i32
    return %arg0, %c0_i32, %c0_i32_0 : i32, i32, i32
  }
  func.func @transform_1(%arg0: i32) -> (i32, i32, i32) {
    %c0_i32 = arith.constant 0 : i32
    %c0_i32_0 = arith.constant 0 : i32
    %c0_i32_1 = arith.constant 0 : i32
    return %arg0, %c0_i32, %c0_i32_0 : i32, i32, i32
  }
  func.func @transform_2(%arg0: i32) -> (i32, i32, i32) {
    %c0_i32 = arith.constant 0 : i32
    %c0_i32_0 = arith.constant 0 : i32
    %c0_i32_1 = arith.constant 0 : i32
    %c0_i32_2 = arith.constant 0 : i32
    return %c0_i32, %c0_i32_0, %c0_i32_1 : i32, i32, i32
  }
  func.func @transform_3(%arg0: i32) -> (i32, i32, i32) {
    %c0_i32 = arith.constant 0 : i32
    %c0_i32_0 = arith.constant 0 : i32
    %c0_i32_1 = arith.constant 0 : i32
    %c0_i32_2 = arith.constant 0 : i32
    return %c0_i32, %c0_i32_0, %c0_i32_1 : i32, i32, i32
  }
  func.func @transform_4(%arg0: i32) -> (i32, i32, i32) {
    %c0_i32 = arith.constant 0 : i32
    %c0_i32_0 = arith.constant 0 : i32
    %c0_i32_1 = arith.constant 0 : i32
    %c0_i32_2 = arith.constant 0 : i32
    return %c0_i32, %c0_i32_0, %c0_i32_1 : i32, i32, i32
  }
  func.func @transform_5(%arg0: i32) -> (i32, i32, i32) {
    %c0_i32 = arith.constant 0 : i32
    %c0_i32_0 = arith.constant 0 : i32
    %c0_i32_1 = arith.constant 0 : i32
    %c0_i32_2 = arith.constant 0 : i32
    return %c0_i32, %c0_i32_0, %c0_i32_1 : i32, i32, i32
  }
  func.func @transform_6(%arg0: i32) -> (i32, i32, i32) {
    %c0_i32 = arith.constant 0 : i32
    %c0_i32_0 = arith.constant 0 : i32
    %c0_i32_1 = arith.constant 0 : i32
    return %arg0, %c0_i32, %c0_i32_0 : i32, i32, i32
  }
  func.func @transform_7(%arg0: i32) -> (i32, i32, i32) {
    %c0_i32 = arith.constant 0 : i32
    %c0_i32_0 = arith.constant 0 : i32
    %c0_i32_1 = arith.constant 0 : i32
    return %arg0, %c0_i32, %c0_i32_0 : i32, i32, i32
  }
  func.func @transform_8(%arg0: i32) -> (i32, i32, i32) {
    %c0_i32 = arith.constant 0 : i32
    %c0_i32_0 = arith.constant 0 : i32
    %c0_i32_1 = arith.constant 0 : i32
    return %arg0, %c0_i32, %c0_i32_0 : i32, i32, i32
  }
  func.func @transform_9(%arg0: i32) -> (i32, i32, i32) {
    %c0_i32 = arith.constant 0 : i32
    %c0_i32_0 = arith.constant 0 : i32
    %c0_i32_1 = arith.constant 0 : i32
    return %arg0, %c0_i32, %c0_i32_0 : i32, i32, i32
  }
}

</mosaic_0001>

<llo_original>
// kernel: up_forward.3
$region0: #{up_forward.3}
  #allocation0 [shape = 'u32[]', space=smem, size = 0x4, offset = 0x4, fixed_abs, tag = 'smem constant byte address 0x4 - core index']
  #allocation1 [shape = 'u32[144,128]{1,0:T(1,128)}', space=vmem, size = 0x12000, scoped, tag = 'internal scratch']
  #allocation2 [shape = 'bf16[8,10,128]{2,1,0:T(8,128)(2,1)}', space=vmem, size = 0x8000, scoped, tag = 'scratch operand']
  #allocation3 [shape = 'bf16[8,10,128]{2,1,0:T(8,128)(2,1)}', space=vmem, size = 0x8000, scoped, tag = 'scratch operand']
  %s0 = inlined_call_operand.vmem [shape: bf16[16,8,128], index: 0, kind: input, shape index: {}]
  %s1 = inlined_call_operand.vmem [shape: bf16[16,8,128], index: 1, kind: input, shape index: {}]
  %s2 = inlined_call_operand.vmem [shape: bf16[3,128,128], index: 2, kind: input, shape index: {}]
  %s3 = inlined_call_operand.vmem [shape: f32[1,1,128], index: 3, kind: input, shape index: {}]
  %s4 = inlined_call_operand.vmem [shape: f32[1,1,128], index: 4, kind: input, shape index: {}]
  %s5 = inlined_call_operand.vmem [shape: f32[1,1,128], index: 5, kind: input, shape index: {}]
  %s6 = inlined_call_operand.vmem [shape: bf16[16,8,128], index: 6, kind: output, shape index: {0}]
  %s7 = inlined_call_operand.vmem [shape: bf16[16,8,128], index: 7, kind: output, shape index: {1}]
  %s8 = inlined_call_operand.vmem [shape: f32[2,1,128], index: 8, kind: output, shape index: {2}]
  %s9 = inlined_call_operand.vmem [shape: f32[2,1,128], index: 9, kind: output, shape index: {3}]
  %10 = xla_tuple %s6, %s7, %s8, %s9
  %s11 = sld [smem:[#allocation0]]
  $region81: #{up_forward.3} parent=0
    _
  %s13 = ssub.s32 1, %s11
  %s14 = scalar_select 0, %s13, %s11
  loop: start=0, step=1, limit=4
  $region2: #{up_forward.3} parent=0 // loop_pre_header
    _
  $region3: #{up_forward.3} parent=0 // loop_header
    %s16 = sphi 0, %s20
    %p17 = scmp.ge.s32.totalorder %s16, 4
    %s26 = sphi 0, %s28
    %s29 = sphi 0, %s26
    %s30 = sphi 0, %s29
    %s46 = sphi 0, %s30
    %s52 = sphi 0, %s54
    %s55 = sphi 0, %s52
    %s56 = sphi 0, %s55
    %s72 = sphi 0, %s56
    %s76 = sphi 0, %s76
    %s78 = sphi 0, %s76
    %s79 = sphi 0, %s78
    %s93 = sphi 0, %s79
    %s97 = sphi 0, %s97
    %s99 = sphi 0, %s97
    %s100 = sphi 0, %s99
    %s114 = sphi 0, %s100
    %s118 = sphi 0, %s118
    %s120 = sphi 0, %s118
    %s121 = sphi 0, %s120
    %s135 = sphi 0, %s121
    %s139 = sphi 0, %s139
    %s141 = sphi 0, %s139
    %s142 = sphi 0, %s141
    %s156 = sphi 0, %s142
    %s162 = sphi 0, %s164
    %s165 = sphi 0, %s162
    %s166 = sphi 0, %s165
    %s182 = sphi 0, %s166
    %s188 = sphi 0, %s190
    %s191 = sphi 0, %s188
    %s192 = sphi 0, %s191
    %s208 = sphi 0, %s192
    %s214 = sphi 0, %s216
    %s217 = sphi 0, %s214
    %s218 = sphi 0, %s217
    %s234 = sphi 0, %s218
    %s240 = sphi 0, %s242
    %s243 = sphi 0, %s240
    %s244 = sphi 0, %s243
    %s260 = sphi 0, %s244
  $region4: #{up_forward.3} parent=0 // loop_header_branch
    %19 = sbr.rel (%p17) target = $region8
  $region5: #{up_forward.3} parent=0 // loop_body
    %s21 = ssub.s32 %s16, 1
    %s22 = ssub.s32 %s16, 2
    %s23 = sadd.s32 %s16, 1
    %s24 = ssub.s32 %s16, %s23
    %p25 = scmp.eq.s32.totalorder %s24, 0
    %s27 = sadd.s32 %s26, 1
    %s28 = scalar_select %p25, %s26, %s27
    %p31 = pneg %p25
    %p32 = scmp.eq.s32.totalorder %s16, 1
    %p33 = por %p31, %p32
    %p34 = scmp.ne.s32.totalorder %s26, %s29
    %p35 = scmp.eq.s32.totalorder %s16, 0
    %p36 = por %p34, %p35
    %p37 = scmp.ne.s32.totalorder %s26, %s29
    %p38 = scmp.eq.s32.totalorder %s21, 1
    %p39 = por %p37, %p38
    %p40 = scmp.ne.s32.totalorder %s29, %s30
    %p41 = scmp.eq.s32.totalorder %s21, 0
    %p42 = por %p40, %p41
    %p43 = scmp.ne.s32.totalorder %s29, %s30
    %p44 = scmp.eq.s32.totalorder %s22, 1
    %p45 = por %p43, %p44
    %p47 = scmp.ne.s32.totalorder %s30, %s46
    %p48 = scmp.eq.s32.totalorder %s22, 0
    %p49 = por %p47, %p48
    %s50 = ssub.s32 %s16, %s23
    %p51 = scmp.eq.s32.totalorder %s50, 0
    %s53 = sadd.s32 %s52, 1
    %s54 = scalar_select %p51, %s52, %s53
    %p57 = pneg %p51
    %p58 = scmp.eq.s32.totalorder %s16, 1
    %p59 = por %p57, %p58
    %p60 = scmp.ne.s32.totalorder %s52, %s55
    %p61 = scmp.eq.s32.totalorder %s16, 0
    %p62 = por %p60, %p61
    %p63 = scmp.ne.s32.totalorder %s52, %s55
    %p64 = scmp.eq.s32.totalorder %s21, 1
    %p65 = por %p63, %p64
    %p66 = scmp.ne.s32.totalorder %s55, %s56
    %p67 = scmp.eq.s32.totalorder %s21, 0
    %p68 = por %p66, %p67
    %p69 = scmp.ne.s32.totalorder %s55, %s56
    %p70 = scmp.eq.s32.totalorder %s22, 1
    %p71 = por %p69, %p70
    %p73 = scmp.ne.s32.totalorder %s56, %s72
    %p74 = scmp.eq.s32.totalorder %s22, 0
    %p75 = por %p73, %p74
    %s77 = sadd.s32 %s76, 1
    %p80 = scmp.eq.s32.totalorder %s16, 1
    %p81 = scmp.ne.s32.totalorder %s76, %s78
    %p82 = scmp.eq.s32.totalorder %s16, 0
    %p83 = por %p81, %p82
    %p84 = scmp.ne.s32.totalorder %s76, %s78
    %p85 = scmp.eq.s32.totalorder %s21, 1
    %p86 = por %p84, %p85
    %p87 = scmp.ne.s32.totalorder %s78, %s79
    %p88 = scmp.eq.s32.totalorder %s21, 0
    %p89 = por %p87, %p88
    %p90 = scmp.ne.s32.totalorder %s78, %s79
    %p91 = scmp.eq.s32.totalorder %s22, 1
    %p92 = por %p90, %p91
    %p94 = scmp.ne.s32.totalorder %s79, %s93
    %p95 = scmp.eq.s32.totalorder %s22, 0
    %p96 = por %p94, %p95
    %s98 = sadd.s32 %s97, 1
    %p101 = scmp.eq.s32.totalorder %s16, 1
    %p102 = scmp.ne.s32.totalorder %s97, %s99
    %p103 = scmp.eq.s32.totalorder %s16, 0
    %p104 = por %p102, %p103
    %p105 = scmp.ne.s32.totalorder %s97, %s99
    %p106 = scmp.eq.s32.totalorder %s21, 1
    %p107 = por %p105, %p106
    %p108 = scmp.ne.s32.totalorder %s99, %s100
    %p109 = scmp.eq.s32.totalorder %s21, 0
    %p110 = por %p108, %p109
    %p111 = scmp.ne.s32.totalorder %s99, %s100
    %p112 = scmp.eq.s32.totalorder %s22, 1
    %p113 = por %p111, %p112
    %p115 = scmp.ne.s32.totalorder %s100, %s114
    %p116 = scmp.eq.s32.totalorder %s22, 0
    %p117 = por %p115, %p116
    %s119 = sadd.s32 %s118, 1
    %p122 = scmp.eq.s32.totalorder %s16, 1
    %p123 = scmp.ne.s32.totalorder %s118, %s120
    %p124 = scmp.eq.s32.totalorder %s16, 0
    %p125 = por %p123, %p124
    %p126 = scmp.ne.s32.totalorder %s118, %s120
    %p127 = scmp.eq.s32.totalorder %s21, 1
    %p128 = por %p126, %p127
    %p129 = scmp.ne.s32.totalorder %s120, %s121
    %p130 = scmp.eq.s32.totalorder %s21, 0
    %p131 = por %p129, %p130
    %p132 = scmp.ne.s32.totalorder %s120, %s121
    %p133 = scmp.eq.s32.totalorder %s22, 1
    %p134 = por %p132, %p133
    %p136 = scmp.ne.s32.totalorder %s121, %s135
    %p137 = scmp.eq.s32.totalorder %s22, 0
    %p138 = por %p136, %p137
    %s140 = sadd.s32 %s139, 1
    %p143 = scmp.eq.s32.totalorder %s16, 1
    %p144 = scmp.ne.s32.totalorder %s139, %s141
    %p145 = scmp.eq.s32.totalorder %s16, 0
    %p146 = por %p144, %p145
    %p147 = scmp.ne.s32.totalorder %s139, %s141
    %p148 = scmp.eq.s32.totalorder %s21, 1
    %p149 = por %p147, %p148
    %p150 = scmp.ne.s32.totalorder %s141, %s142
    %p151 = scmp.eq.s32.totalorder %s21, 0
    %p152 = por %p150, %p151
    %p153 = scmp.ne.s32.totalorder %s141, %s142
    %p154 = scmp.eq.s32.totalorder %s22, 1
    %p155 = por %p153, %p154
    %p157 = scmp.ne.s32.totalorder %s142, %s156
    %p158 = scmp.eq.s32.totalorder %s22, 0
    %p159 = por %p157, %p158
    %s160 = ssub.s32 %s16, %s23
    %p161 = scmp.eq.s32.totalorder %s160, 0
    %s163 = sadd.s32 %s162, 1
    %s164 = scalar_select %p161, %s162, %s163
    %p167 = pneg %p161
    %p168 = scmp.eq.s32.totalorder %s16, 1
    %p169 = por %p167, %p168
    %p170 = scmp.ne.s32.totalorder %s162, %s165
    %p171 = scmp.eq.s32.totalorder %s16, 0
    %p172 = por %p170, %p171
    %p173 = scmp.ne.s32.totalorder %s162, %s165
    %p174 = scmp.eq.s32.totalorder %s21, 1
    %p175 = por %p173, %p174
    %p176 = scmp.ne.s32.totalorder %s165, %s166
    %p177 = scmp.eq.s32.totalorder %s21, 0
    %p178 = por %p176, %p177
    %p179 = scmp.ne.s32.totalorder %s165, %s166
    %p180 = scmp.eq.s32.totalorder %s22, 1
    %p181 = por %p179, %p180
    %p183 = scmp.ne.s32.totalorder %s166, %s182
    %p184 = scmp.eq.s32.totalorder %s22, 0
    %p185 = por %p183, %p184
    %s186 = ssub.s32 %s16, %s23
    %p187 = scmp.eq.s32.totalorder %s186, 0
    %s189 = sadd.s32 %s188, 1
    %s190 = scalar_select %p187, %s188, %s189
    %p193 = pneg %p187
    %p194 = scmp.eq.s32.totalorder %s16, 1
    %p195 = por %p193, %p194
    %p196 = scmp.ne.s32.totalorder %s188, %s191
    %p197 = scmp.eq.s32.totalorder %s16, 0
    %p198 = por %p196, %p197
    %p199 = scmp.ne.s32.totalorder %s188, %s191
    %p200 = scmp.eq.s32.totalorder %s21, 1
    %p201 = por %p199, %p200
    %p202 = scmp.ne.s32.totalorder %s191, %s192
    %p203 = scmp.eq.s32.totalorder %s21, 0
    %p204 = por %p202, %p203
    %p205 = scmp.ne.s32.totalorder %s191, %s192
    %p206 = scmp.eq.s32.totalorder %s22, 1
    %p207 = por %p205, %p206
    %p209 = scmp.ne.s32.totalorder %s192, %s208
    %p210 = scmp.eq.s32.totalorder %s22, 0
    %p211 = por %p209, %p210
    %s212 = ssub.s32 %s16, %s23
    %p213 = scmp.eq.s32.totalorder %s212, 0
    %s215 = sadd.s32 %s214, 1
    %s216 = scalar_select %p213, %s214, %s215
    %p219 = pneg %p213
    %p220 = scmp.eq.s32.totalorder %s16, 1
    %p221 = por %p219, %p220
    %p222 = scmp.ne.s32.totalorder %s214, %s217
    %p223 = scmp.eq.s32.totalorder %s16, 0
    %p224 = por %p222, %p223
    %p225 = scmp.ne.s32.totalorder %s214, %s217
    %p226 = scmp.eq.s32.totalorder %s21, 1
    %p227 = por %p225, %p226
    %p228 = scmp.ne.s32.totalorder %s217, %s218
    %p229 = scmp.eq.s32.totalorder %s21, 0
    %p230 = por %p228, %p229
    %p231 = scmp.ne.s32.totalorder %s217, %s218
    %p232 = scmp.eq.s32.totalorder %s22, 1
    %p233 = por %p231, %p232
    %p235 = scmp.ne.s32.totalorder %s218, %s234
    %p236 = scmp.eq.s32.totalorder %s22, 0
    %p237 = por %p235, %p236
    %s238 = ssub.s32 %s16, %s23
    %p239 = scmp.eq.s32.totalorder %s238, 0
    %s241 = sadd.s32 %s240, 1
    %s242 = scalar_select %p239, %s240, %s241
    %p245 = pneg %p239
    %p246 = scmp.eq.s32.totalorder %s16, 1
    %p247 = por %p245, %p246
    %p248 = scmp.ne.s32.totalorder %s240, %s243
    %p249 = scmp.eq.s32.totalorder %s16, 0
    %p250 = por %p248, %p249
    %p251 = scmp.ne.s32.totalorder %s240, %s243
    %p252 = scmp.eq.s32.totalorder %s21, 1
    %p253 = por %p251, %p252
    %p254 = scmp.ne.s32.totalorder %s243, %s244
    %p255 = scmp.eq.s32.totalorder %s21, 0
    %p256 = por %p254, %p255
    %p257 = scmp.ne.s32.totalorder %s243, %s244
    %p258 = scmp.eq.s32.totalorder %s22, 1
    %p259 = por %p257, %p258
    %p261 = scmp.ne.s32.totalorder %s244, %s260
    %p262 = scmp.eq.s32.totalorder %s22, 0
    %p263 = por %p261, %p262
    %p264 = scmp.le.s32.totalorder 1, %s16
    %p265 = scmp.lt.s32.totalorder %s16, 3
    %p266 = pnand %p264, %p265
    %p267 = pneg %p266
    // Predicated region
    $region9: #{up_forward.3} parent=5 // pred_check
      _
    $region10: #{up_forward.3} parent=5 // pred_check_branch
      %269 = sbr.rel (%p266) target = $region12
    $region11: #{up_forward.3} parent=5 // pred_region
      %s270 = ssub.s32 %s16, 1
      // Predicated region
      $region13: #{up_forward.3} parent=11 // pred_check
        %p271 = pneg %p89
      $region14: #{up_forward.3} parent=11 // pred_check_branch
        %273 = sbr.rel (%p271) target = $region16
      $region15: #{up_forward.3} parent=11 // pred_region
        _
      $region16: #{up_forward.3} parent=11 // pred_fallthru
        _
      // Predicated region
      $region17: #{up_forward.3} parent=11 // pred_check
        %p274 = pneg %p110
      $region18: #{up_forward.3} parent=11 // pred_check_branch
        %276 = sbr.rel (%p274) target = $region20
      $region19: #{up_forward.3} parent=11 // pred_region
        _
      $region20: #{up_forward.3} parent=11 // pred_fallthru
        _
      // Predicated region
      $region21: #{up_forward.3} parent=11 // pred_check
        %p277 = pneg %p131
      $region22: #{up_forward.3} parent=11 // pred_check_branch
        %279 = sbr.rel (%p277) target = $region24
      $region23: #{up_forward.3} parent=11 // pred_region
        _
      $region24: #{up_forward.3} parent=11 // pred_fallthru
        _
      // Predicated region
      $region25: #{up_forward.3} parent=11 // pred_check
        %p280 = pneg %p152
      $region26: #{up_forward.3} parent=11 // pred_check_branch
        %282 = sbr.rel (%p280) target = $region28
      $region27: #{up_forward.3} parent=11 // pred_region
        _
      $region28: #{up_forward.3} parent=11 // pred_fallthru
        _
    $region12: #{up_forward.3} parent=5 // pred_fallthru
      _
    %p283 = scmp.lt.s32.totalorder %s16, 2
    // Predicated region
    $region29: #{up_forward.3} parent=5 // pred_check
      %p284 = pneg %p283
    $region30: #{up_forward.3} parent=5 // pred_check_branch
      %286 = sbr.rel (%p284) target = $region32
    $region31: #{up_forward.3} parent=5 // pred_region
      // Predicated region
      $region33: #{up_forward.3} parent=31 // pred_check
        %p287 = pneg %p36
      $region34: #{up_forward.3} parent=31 // pred_check_branch
        %289 = sbr.rel (%p287) target = $region36
      $region35: #{up_forward.3} parent=31 // pred_region
        %s290 = smul.u32 8, %s16
        %p291 = scmp.lt.s32.totalorder %s290, 15
        %s292 = scalar_select %p291, %s290, 15
        %s293 = smul.addr %s292, 4
        %s294 = scalar_lea.vmem %s0, %s293
        %s295 = smul.u32 8, %s16
      $region36: #{up_forward.3} parent=31 // pred_fallthru
        _
      // Predicated region
      $region37: #{up_forward.3} parent=31 // pred_check
        %p296 = pneg %p62
      $region38: #{up_forward.3} parent=31 // pred_check_branch
        %298 = sbr.rel (%p296) target = $region40
      $region39: #{up_forward.3} parent=31 // pred_region
        %s299 = smul.u32 8, %s16
        %p300 = scmp.lt.s32.totalorder %s299, 15
        %s301 = scalar_select %p300, %s299, 15
        %s302 = smul.addr %s301, 4
        %s303 = scalar_lea.vmem %s1, %s302
        %s304 = smul.u32 8, %s16
      $region40: #{up_forward.3} parent=31 // pred_fallthru
        _
    $region32: #{up_forward.3} parent=5 // pred_fallthru
      _
    %p305 = scmp.le.s32.totalorder 1, %s16
    %p306 = scmp.lt.s32.totalorder %s16, 3
    %p307 = pnand %p305, %p306
    %p308 = pneg %p307
    // Predicated region
    $region41: #{up_forward.3} parent=5 // pred_check
      _
    $region42: #{up_forward.3} parent=5 // pred_check_branch
      %310 = sbr.rel (%p307) target = $region44
    $region43: #{up_forward.3} parent=5 // pred_region
      %s311 = ssub.s32 %s16, 1
      %s312 = smul.u32 8, %s21
      %p313 = scmp.lt.s32.totalorder %s312, 15
      %s314 = scalar_select %p313, %s312, 15
      %s315 = smul.addr %s314, 4
      %s316 = scalar_lea.vmem %s0, %s315
      %p317 = pneg %p42
      %p318 = pneg %p39
      %s319 = smul.u32 8, %s21
      %p320 = scmp.lt.s32.totalorder %s319, 15
      %s321 = scalar_select %p320, %s319, 15
      %s322 = smul.addr %s321, 4
      %s323 = scalar_lea.vmem %s1, %s322
      %p324 = pneg %p68
      %p325 = pneg %p65
      %p326 = pneg %p89
      %p327 = pneg %p86
      %p328 = pneg %p110
      %p329 = pneg %p107
      %p330 = pneg %p131
      %p331 = pneg %p128
      %p332 = pneg %p152
      %p333 = pneg %p149
      %p334 = pneg %p178
      %p335 = pneg %p175
      %s336 = smul.u32 8, %s21
      %p337 = scmp.lt.s32.totalorder %s336, 15
      %s338 = scalar_select %p337, %s336, 15
      %s339 = smul.addr %s338, 4
      %s340 = scalar_lea.vmem %s6, %s339
      %p341 = pneg %p204
      %p342 = pneg %p201
      %s343 = smul.u32 8, %s21
      %p344 = scmp.lt.s32.totalorder %s343, 15
      %s345 = scalar_select %p344, %s343, 15
      %s346 = smul.addr %s345, 4
      %s347 = scalar_lea.vmem %s7, %s346
      %p348 = pneg %p230
      %p349 = pneg %p227
      %p350 = scmp.lt.s32.totalorder %s21, 1
      %s351 = scalar_select %p350, %s21, 1
      %s352 = scalar_lea.vmem %s8, %s351
      %p353 = pneg %p256
      %p354 = pneg %p253
      %p355 = scmp.lt.s32.totalorder %s21, 1
      %s356 = scalar_select %p355, %s21, 1
      %s357 = scalar_lea.vmem %s9, %s356
      %s358 = smul.u32 8, %s21
      %p359 = scmp.lt.s32.totalorder %s358, 15
      %s360 = scalar_select %p359, %s358, 15
      %s361 = smul.addr %s360, 4
      %s362 = scalar_lea.vmem %s0, %s361
      %s363 = smul.u32 8, %s21
      %s364 = smul.u32 8, %s21
      %p365 = scmp.lt.s32.totalorder %s364, 15
      %s366 = scalar_select %p365, %s364, 15
      %s367 = smul.addr %s366, 4
      %s368 = scalar_lea.vmem %s1, %s367
      %s369 = smul.u32 8, %s21
      %s370 = smul.u32 8, %s21
      %p371 = scmp.lt.s32.totalorder %s370, 15
      %s372 = scalar_select %p371, %s370, 15
      %s373 = smul.addr %s372, 4
      %s374 = scalar_lea.vmem %s6, %s373
      %s375 = smul.u32 8, %s21
      %s376 = smul.u32 8, %s21
      %p377 = scmp.lt.s32.totalorder %s376, 15
      %s378 = scalar_select %p377, %s376, 15
      %s379 = smul.addr %s378, 4
      %s380 = scalar_lea.vmem %s7, %s379
      %s381 = smul.u32 8, %s21
      %p382 = scmp.lt.s32.totalorder %s21, 1
      %s383 = scalar_select %p382, %s21, 1
      %s384 = scalar_lea.vmem %s8, %s383
      %p385 = scmp.lt.s32.totalorder %s21, 1
      %s386 = scalar_select %p385, %s21, 1
      %s387 = scalar_lea.vmem %s9, %s386
      %v389 = vld [vmem:[%s4] sm:$0x1]
      %v390 = vld [vmem:[%s5] sm:$0x1]
      %v391 = vld [vmem:[%s362] sm:$0xf]
      %v392 = vld [vmem:[%s362 + $0x4] sm:$0xf]
      %v393 = vld [vmem:[%s362 + $0x8] sm:$0xf]
      %v394 = vld [vmem:[%s362 + $0xc] sm:$0xf]
      %v395 = vld [vmem:[%s362 + $0x10] sm:$0xf]
      %v396 = vld [vmem:[%s362 + $0x14] sm:$0xf]
      %v397 = vld [vmem:[%s362 + $0x18] sm:$0xf]
      %v398 = vld [vmem:[%s362 + $0x1c] sm:$0xf]
      %v399 = vunpack.c.l.bf16 %v391
      %v400 = vunpack.c.l.bf16 %v392
      %v401 = vunpack.c.l.bf16 %v393
      %v402 = vunpack.c.l.bf16 %v394
      %v403 = vunpack.c.l.bf16 %v395
      %v404 = vunpack.c.l.bf16 %v396
      %v405 = vunpack.c.l.bf16 %v397
      %v406 = vunpack.c.l.bf16 %v398
      %v408 = vlaneseq
      %v409 = vshrl.u32 %v408, 7
      %v410 = vsub.s32 0, %v409
      %v411 = vrot.slane %v389, %v410
      %v413 = vmul.f32 %v399, %v411
      %v414 = vmul.f32 %v400, %v411
      %v415 = vmul.f32 %v401, %v411
      %v416 = vmul.f32 %v402, %v411
      %v417 = vmul.f32 %v403, %v411
      %v418 = vmul.f32 %v404, %v411
      %v419 = vmul.f32 %v405, %v411
      %v420 = vmul.f32 %v406, %v411
      %v422 = vlaneseq
      %v423 = vshrl.u32 %v422, 7
      %v424 = vsub.s32 0, %v423
      %v425 = vrot.slane %v390, %v424
      %v427 = vadd.f32 %v413, %v425
      %v428 = vadd.f32 %v414, %v425
      %v429 = vadd.f32 %v415, %v425
      %v430 = vadd.f32 %v416, %v425
      %v431 = vadd.f32 %v417, %v425
      %v432 = vadd.f32 %v418, %v425
      %v433 = vadd.f32 %v419, %v425
      %v434 = vadd.f32 %v420, %v425
      %v435 = vmax.f32 %v427, 0.0
      %v436 = vmax.f32 %v428, 0.0
      %v437 = vmax.f32 %v429, 0.0
      %v438 = vmax.f32 %v430, 0.0
      %v439 = vmax.f32 %v431, 0.0
      %v440 = vmax.f32 %v432, 0.0
      %v441 = vmax.f32 %v433, 0.0
      %v442 = vmax.f32 %v434, 0.0
      %v443 = vld [vmem:[%s368] sm:$0xf]
      %v444 = vld [vmem:[%s368 + $0x4] sm:$0xf]
      %v445 = vld [vmem:[%s368 + $0x8] sm:$0xf]
      %v446 = vld [vmem:[%s368 + $0xc] sm:$0xf]
      %v447 = vld [vmem:[%s368 + $0x10] sm:$0xf]
      %v448 = vld [vmem:[%s368 + $0x14] sm:$0xf]
      %v449 = vld [vmem:[%s368 + $0x18] sm:$0xf]
      %v450 = vld [vmem:[%s368 + $0x1c] sm:$0xf]
      %v451 = vunpack.c.l.bf16 %v443
      %v452 = vunpack.c.l.bf16 %v444
      %v453 = vunpack.c.l.bf16 %v445
      %v454 = vunpack.c.l.bf16 %v446
      %v455 = vunpack.c.l.bf16 %v447
      %v456 = vunpack.c.l.bf16 %v448
      %v457 = vunpack.c.l.bf16 %v449
      %v458 = vunpack.c.l.bf16 %v450
      %v459 = vmul.f32 %v451, %v411
      %v460 = vmul.f32 %v452, %v411
      %v461 = vmul.f32 %v453, %v411
      %v462 = vmul.f32 %v454, %v411
      %v463 = vmul.f32 %v455, %v411
      %v464 = vmul.f32 %v456, %v411
      %v465 = vmul.f32 %v457, %v411
      %v466 = vmul.f32 %v458, %v411
      %v467 = vadd.f32 %v459, %v425
      %v468 = vadd.f32 %v460, %v425
      %v469 = vadd.f32 %v461, %v425
      %v470 = vadd.f32 %v462, %v425
      %v471 = vadd.f32 %v463, %v425
      %v472 = vadd.f32 %v464, %v425
      %v473 = vadd.f32 %v465, %v425
      %v474 = vadd.f32 %v466, %v425
      %v475 = vmax.f32 %v467, 0.0
      %v476 = vmax.f32 %v468, 0.0
      %v477 = vmax.f32 %v469, 0.0
      %v478 = vmax.f32 %v470, 0.0
      %v479 = vmax.f32 %v471, 0.0
      %v480 = vmax.f32 %v472, 0.0
      %v481 = vmax.f32 %v473, 0.0
      %v482 = vmax.f32 %v474, 0.0
      %vm483 = vcmask 1040384
      %vm484 = vsmask.f32 256
      %vm485 = vmand %vm483, %vm484
      %v486 = vld [vmem:[#allocation2] sm:$0x1]
      %v487 = vsel %vm485, 0, %v486
      %488 = vst [vmem:[#allocation2] sm:$0x1] %v487
      %v489 = vld [vmem:[#allocation2 + $0x8] sm:$0x1]
      %v490 = vsel %vm485, 0, %v489
      %491 = vst [vmem:[#allocation2 + $0x8] sm:$0x1] %v490
      %v492 = vld [vmem:[#allocation2 + $0x10] sm:$0x1]
      %v493 = vsel %vm485, 0, %v492
      %494 = vst [vmem:[#allocation2 + $0x10] sm:$0x1] %v493
      %v495 = vld [vmem:[#allocation2 + $0x18] sm:$0x1]
      %v496 = vsel %vm485, 0, %v495
      %497 = vst [vmem:[#allocation2 + $0x18] sm:$0x1] %v496
      %v498 = vld [vmem:[#allocation2 + $0x20] sm:$0x1]
      %v499 = vsel %vm485, 0, %v498
      %500 = vst [vmem:[#allocation2 + $0x20] sm:$0x1] %v499
      %v501 = vld [vmem:[#allocation2 + $0x28] sm:$0x1]
      %v502 = vsel %vm485, 0, %v501
      %503 = vst [vmem:[#allocation2 + $0x28] sm:$0x1] %v502
      %v504 = vld [vmem:[#allocation2 + $0x30] sm:$0x1]
      %v505 = vsel %vm485, 0, %v504
      %506 = vst [vmem:[#allocation2 + $0x30] sm:$0x1] %v505
      %v507 = vld [vmem:[#allocation2 + $0x38] sm:$0x1]
      %v508 = vsel %vm485, 0, %v507
      %509 = vst [vmem:[#allocation2 + $0x38] sm:$0x1] %v508
      %v510 = vpack.c.bf16 %v435, %v435
      %v511 = vpack.c.bf16 %v436, %v436
      %v512 = vpack.c.bf16 %v437, %v437
      %v513 = vpack.c.bf16 %v438, %v438
      %v514 = vpack.c.bf16 %v439, %v439
      %v515 = vpack.c.bf16 %v440, %v440
      %v516 = vpack.c.bf16 %v441, %v441
      %v517 = vpack.c.bf16 %v442, %v442
      %v526 = vunpack.c.l.b16 %v510
      %v527 = vunpack.c.l.b16 %v511
      %v528 = vunpack.c.l.b16 %v512
      %v529 = vunpack.c.l.b16 %v513
      %v530 = vunpack.c.l.b16 %v514
      %v531 = vunpack.c.l.b16 %v515
      %v532 = vunpack.c.l.b16 %v516
      %v533 = vunpack.c.l.b16 %v517
      %v534 = vpack.c.b16 %v526, %v526
      %v535 = vpack.c.b16 %v527, %v527
      %v536 = vpack.c.b16 %v528, %v528
      %v537 = vpack.c.b16 %v529, %v529
      %v538 = vpack.c.b16 %v530, %v530
      %v539 = vpack.c.b16 %v531, %v531
      %v540 = vpack.c.b16 %v532, %v532
      %v541 = vpack.c.b16 %v533, %v533
      %v543 = vshrl.u32 %v534, 16
      %v545 = vrot.slane %v543, 7
      %v546 = vshll.u32 %v534, 16
      %v548 = vor.u32 %v545, %v546
      %v549 = vrot.slane %v545, 4
      %v551 = vshrl.u32 %v535, 16
      %v553 = vrot.slane %v551, 7
      %v554 = vshll.u32 %v535, 16
      %v556 = vor.u32 %v553, %v554
      %v557 = vrot.slane %v553, 4
      %v559 = vshrl.u32 %v536, 16
      %v561 = vrot.slane %v559, 7
      %v562 = vshll.u32 %v536, 16
      %v564 = vor.u32 %v561, %v562
      %v565 = vrot.slane %v561, 4
      %v567 = vshrl.u32 %v537, 16
      %v569 = vrot.slane %v567, 7
      %v570 = vshll.u32 %v537, 16
      %v572 = vor.u32 %v569, %v570
      %v573 = vrot.slane %v569, 4
      %v575 = vshrl.u32 %v538, 16
      %v577 = vrot.slane %v575, 7
      %v578 = vshll.u32 %v538, 16
      %v580 = vor.u32 %v577, %v578
      %v581 = vrot.slane %v577, 4
      %v583 = vshrl.u32 %v539, 16
      %v585 = vrot.slane %v583, 7
      %v586 = vshll.u32 %v539, 16
      %v588 = vor.u32 %v585, %v586
      %v589 = vrot.slane %v585, 4
      %v591 = vshrl.u32 %v540, 16
      %v593 = vrot.slane %v591, 7
      %v594 = vshll.u32 %v540, 16
      %v596 = vor.u32 %v593, %v594
      %v597 = vrot.slane %v593, 4
      %v599 = vshrl.u32 %v541, 16
      %v601 = vrot.slane %v599, 7
      %v602 = vshll.u32 %v541, 16
      %v604 = vor.u32 %v601, %v602
      %v605 = vrot.slane %v601, 4
      %vm622 = vcmask 1043456
      %vm623 = vsmask.f32 7938
      %vm624 = vmand %vm622, %vm623
      %v625 = vld [vmem:[#allocation2] sm:$0xf]
      %v626 = vsel %vm624, %v548, %v625
      %627 = vst [vmem:[#allocation2] sm:$0xf] %v626
      %v628 = vld [vmem:[#allocation2 + $0x4] sm:$0x1]
      %v629 = vsel %vm485, %v549, %v628
      %630 = vst [vmem:[#allocation2 + $0x4] sm:$0x1] %v629
      %v631 = vld [vmem:[#allocation2 + $0x8] sm:$0xf]
      %v632 = vsel %vm624, %v556, %v631
      %633 = vst [vmem:[#allocation2 + $0x8] sm:$0xf] %v632
      %v634 = vld [vmem:[#allocation2 + $0xc] sm:$0x1]
      %v635 = vsel %vm485, %v557, %v634
      %636 = vst [vmem:[#allocation2 + $0xc] sm:$0x1] %v635
      %v637 = vld [vmem:[#allocation2 + $0x10] sm:$0xf]
      %v638 = vsel %vm624, %v564, %v637
      %639 = vst [vmem:[#allocation2 + $0x10] sm:$0xf] %v638
      %v640 = vld [vmem:[#allocation2 + $0x14] sm:$0x1]
      %v641 = vsel %vm485, %v565, %v640
      %642 = vst [vmem:[#allocation2 + $0x14] sm:$0x1] %v641
      %v643 = vld [vmem:[#allocation2 + $0x18] sm:$0xf]
      %v644 = vsel %vm624, %v572, %v643
      %645 = vst [vmem:[#allocation2 + $0x18] sm:$0xf] %v644
      %v646 = vld [vmem:[#allocation2 + $0x1c] sm:$0x1]
      %v647 = vsel %vm485, %v573, %v646
      %648 = vst [vmem:[#allocation2 + $0x1c] sm:$0x1] %v647
      %v649 = vld [vmem:[#allocation2 + $0x20] sm:$0xf]
      %v650 = vsel %vm624, %v580, %v649
      %651 = vst [vmem:[#allocation2 + $0x20] sm:$0xf] %v650
      %v652 = vld [vmem:[#allocation2 + $0x24] sm:$0x1]
      %v653 = vsel %vm485, %v581, %v652
      %654 = vst [vmem:[#allocation2 + $0x24] sm:$0x1] %v653
      %v655 = vld [vmem:[#allocation2 + $0x28] sm:$0xf]
      %v656 = vsel %vm624, %v588, %v655
      %657 = vst [vmem:[#allocation2 + $0x28] sm:$0xf] %v656
      %v658 = vld [vmem:[#allocation2 + $0x2c] sm:$0x1]
      %v659 = vsel %vm485, %v589, %v658
      %660 = vst [vmem:[#allocation2 + $0x2c] sm:$0x1] %v659
      %v661 = vld [vmem:[#allocation2 + $0x30] sm:$0xf]
      %v662 = vsel %vm624, %v596, %v661
      %663 = vst [vmem:[#allocation2 + $0x30] sm:$0xf] %v662
      %v664 = vld [vmem:[#allocation2 + $0x34] sm:$0x1]
      %v665 = vsel %vm485, %v597, %v664
      %666 = vst [vmem:[#allocation2 + $0x34] sm:$0x1] %v665
      %v667 = vld [vmem:[#allocation2 + $0x38] sm:$0xf]
      %v668 = vsel %vm624, %v604, %v667
      %669 = vst [vmem:[#allocation2 + $0x38] sm:$0xf] %v668
      %v670 = vld [vmem:[#allocation2 + $0x3c] sm:$0x1]
      %v671 = vsel %vm485, %v605, %v670
      %672 = vst [vmem:[#allocation2 + $0x3c] sm:$0x1] %v671
      %vm673 = vmand %vm483, %vm623
      %v674 = vld [vmem:[#allocation2 + $0x4] sm:$0x1]
      %v675 = vsel %vm673, 0, %v674
      %676 = vst [vmem:[#allocation2 + $0x4] sm:$0x1] %v675
      %v677 = vld [vmem:[#allocation2 + $0xc] sm:$0x1]
      %v678 = vsel %vm673, 0, %v677
      %679 = vst [vmem:[#allocation2 + $0xc] sm:$0x1] %v678
      %v680 = vld [vmem:[#allocation2 + $0x14] sm:$0x1]
      %v681 = vsel %vm673, 0, %v680
      %682 = vst [vmem:[#allocation2 + $0x14] sm:$0x1] %v681
      %v683 = vld [vmem:[#allocation2 + $0x1c] sm:$0x1]
      %v684 = vsel %vm673, 0, %v683
      %685 = vst [vmem:[#allocation2 + $0x1c] sm:$0x1] %v684
      %v686 = vld [vmem:[#allocation2 + $0x24] sm:$0x1]
      %v687 = vsel %vm673, 0, %v686
      %688 = vst [vmem:[#allocation2 + $0x24] sm:$0x1] %v687
      %v689 = vld [vmem:[#allocation2 + $0x2c] sm:$0x1]
      %v690 = vsel %vm673, 0, %v689
      %691 = vst [vmem:[#allocation2 + $0x2c] sm:$0x1] %v690
      %v692 = vld [vmem:[#allocation2 + $0x34] sm:$0x1]
      %v693 = vsel %vm673, 0, %v692
      %694 = vst [vmem:[#allocation2 + $0x34] sm:$0x1] %v693
      %v695 = vld [vmem:[#allocation2 + $0x3c] sm:$0x1]
      %v696 = vsel %vm673, 0, %v695
      %697 = vst [vmem:[#allocation2 + $0x3c] sm:$0x1] %v696
      %v698 = vld [vmem:[#allocation3] sm:$0x1]
      %v699 = vsel %vm485, 0, %v698
      %700 = vst [vmem:[#allocation3] sm:$0x1] %v699
      %v701 = vld [vmem:[#allocation3 + $0x8] sm:$0x1]
      %v702 = vsel %vm485, 0, %v701
      %703 = vst [vmem:[#allocation3 + $0x8] sm:$0x1] %v702
      %v704 = vld [vmem:[#allocation3 + $0x10] sm:$0x1]
      %v705 = vsel %vm485, 0, %v704
      %706 = vst [vmem:[#allocation3 + $0x10] sm:$0x1] %v705
      %v707 = vld [vmem:[#allocation3 + $0x18] sm:$0x1]
      %v708 = vsel %vm485, 0, %v707
      %709 = vst [vmem:[#allocation3 + $0x18] sm:$0x1] %v708
      %v710 = vld [vmem:[#allocation3 + $0x20] sm:$0x1]
      %v711 = vsel %vm485, 0, %v710
      %712 = vst [vmem:[#allocation3 + $0x20] sm:$0x1] %v711
      %v713 = vld [vmem:[#allocation3 + $0x28] sm:$0x1]
      %v714 = vsel %vm485, 0, %v713
      %715 = vst [vmem:[#allocation3 + $0x28] sm:$0x1] %v714
      %v716 = vld [vmem:[#allocation3 + $0x30] sm:$0x1]
      %v717 = vsel %vm485, 0, %v716
      %718 = vst [vmem:[#allocation3 + $0x30] sm:$0x1] %v717
      %v719 = vld [vmem:[#allocation3 + $0x38] sm:$0x1]
      %v720 = vsel %vm485, 0, %v719
      %721 = vst [vmem:[#allocation3 + $0x38] sm:$0x1] %v720
      %v722 = vpack.c.bf16 %v475, %v475
      %v723 = vpack.c.bf16 %v476, %v476
      %v724 = vpack.c.bf16 %v477, %v477
      %v725 = vpack.c.bf16 %v478, %v478
      %v726 = vpack.c.bf16 %v479, %v479
      %v727 = vpack.c.bf16 %v480, %v480
      %v728 = vpack.c.bf16 %v481, %v481
      %v729 = vpack.c.bf16 %v482, %v482
      %v738 = vunpack.c.l.b16 %v722
      %v739 = vunpack.c.l.b16 %v723
      %v740 = vunpack.c.l.b16 %v724
      %v741 = vunpack.c.l.b16 %v725
      %v742 = vunpack.c.l.b16 %v726
      %v743 = vunpack.c.l.b16 %v727
      %v744 = vunpack.c.l.b16 %v728
      %v745 = vunpack.c.l.b16 %v729
      %v746 = vpack.c.b16 %v738, %v738
      %v747 = vpack.c.b16 %v739, %v739
      %v748 = vpack.c.b16 %v740, %v740
      %v749 = vpack.c.b16 %v741, %v741
      %v750 = vpack.c.b16 %v742, %v742
      %v751 = vpack.c.b16 %v743, %v743
      %v752 = vpack.c.b16 %v744, %v744
      %v753 = vpack.c.b16 %v745, %v745
      %v755 = vshrl.u32 %v746, 16
      %v757 = vrot.slane %v755, 7
      %v758 = vshll.u32 %v746, 16
      %v760 = vor.u32 %v757, %v758
      %v761 = vrot.slane %v757, 4
      %v763 = vshrl.u32 %v747, 16
      %v765 = vrot.slane %v763, 7
      %v766 = vshll.u32 %v747, 16
      %v768 = vor.u32 %v765, %v766
      %v769 = vrot.slane %v765, 4
      %v771 = vshrl.u32 %v748, 16
      %v773 = vrot.slane %v771, 7
      %v774 = vshll.u32 %v748, 16
      %v776 = vor.u32 %v773, %v774
      %v777 = vrot.slane %v773, 4
      %v779 = vshrl.u32 %v749, 16
      %v781 = vrot.slane %v779, 7
      %v782 = vshll.u32 %v749, 16
      %v784 = vor.u32 %v781, %v782
      %v785 = vrot.slane %v781, 4
      %v787 = vshrl.u32 %v750, 16
      %v789 = vrot.slane %v787, 7
      %v790 = vshll.u32 %v750, 16
      %v792 = vor.u32 %v789, %v790
      %v793 = vrot.slane %v789, 4
      %v795 = vshrl.u32 %v751, 16
      %v797 = vrot.slane %v795, 7
      %v798 = vshll.u32 %v751, 16
      %v800 = vor.u32 %v797, %v798
      %v801 = vrot.slane %v797, 4
      %v803 = vshrl.u32 %v752, 16
      %v805 = vrot.slane %v803, 7
      %v806 = vshll.u32 %v752, 16
      %v808 = vor.u32 %v805, %v806
      %v809 = vrot.slane %v805, 4
      %v811 = vshrl.u32 %v753, 16
      %v813 = vrot.slane %v811, 7
      %v814 = vshll.u32 %v753, 16
      %v816 = vor.u32 %v813, %v814
      %v817 = vrot.slane %v813, 4
      %v834 = vld [vmem:[#allocation3] sm:$0xf]
      %v835 = vsel %vm624, %v760, %v834
      %836 = vst [vmem:[#allocation3] sm:$0xf] %v835
      %v837 = vld [vmem:[#allocation3 + $0x4] sm:$0x1]
      %v838 = vsel %vm485, %v761, %v837
      %839 = vst [vmem:[#allocation3 + $0x4] sm:$0x1] %v838
      %v840 = vld [vmem:[#allocation3 + $0x8] sm:$0xf]
      %v841 = vsel %vm624, %v768, %v840
      %842 = vst [vmem:[#allocation3 + $0x8] sm:$0xf] %v841
      %v843 = vld [vmem:[#allocation3 + $0xc] sm:$0x1]
      %v844 = vsel %vm485, %v769, %v843
      %845 = vst [vmem:[#allocation3 + $0xc] sm:$0x1] %v844
      %v846 = vld [vmem:[#allocation3 + $0x10] sm:$0xf]
      %v847 = vsel %vm624, %v776, %v846
      %848 = vst [vmem:[#allocation3 + $0x10] sm:$0xf] %v847
      %v849 = vld [vmem:[#allocation3 + $0x14] sm:$0x1]
      %v850 = vsel %vm485, %v777, %v849
      %851 = vst [vmem:[#allocation3 + $0x14] sm:$0x1] %v850
      %v852 = vld [vmem:[#allocation3 + $0x18] sm:$0xf]
      %v853 = vsel %vm624, %v784, %v852
      %854 = vst [vmem:[#allocation3 + $0x18] sm:$0xf] %v853
      %v855 = vld [vmem:[#allocation3 + $0x1c] sm:$0x1]
      %v856 = vsel %vm485, %v785, %v855
      %857 = vst [vmem:[#allocation3 + $0x1c] sm:$0x1] %v856
      %v858 = vld [vmem:[#allocation3 + $0x20] sm:$0xf]
      %v859 = vsel %vm624, %v792, %v858
      %860 = vst [vmem:[#allocation3 + $0x20] sm:$0xf] %v859
      %v861 = vld [vmem:[#allocation3 + $0x24] sm:$0x1]
      %v862 = vsel %vm485, %v793, %v861
      %863 = vst [vmem:[#allocation3 + $0x24] sm:$0x1] %v862
      %v864 = vld [vmem:[#allocation3 + $0x28] sm:$0xf]
      %v865 = vsel %vm624, %v800, %v864
      %866 = vst [vmem:[#allocation3 + $0x28] sm:$0xf] %v865
      %v867 = vld [vmem:[#allocation3 + $0x2c] sm:$0x1]
      %v868 = vsel %vm485, %v801, %v867
      %869 = vst [vmem:[#allocation3 + $0x2c] sm:$0x1] %v868
      %v870 = vld [vmem:[#allocation3 + $0x30] sm:$0xf]
      %v871 = vsel %vm624, %v808, %v870
      %872 = vst [vmem:[#allocation3 + $0x30] sm:$0xf] %v871
      %v873 = vld [vmem:[#allocation3 + $0x34] sm:$0x1]
      %v874 = vsel %vm485, %v809, %v873
      %875 = vst [vmem:[#allocation3 + $0x34] sm:$0x1] %v874
      %v876 = vld [vmem:[#allocation3 + $0x38] sm:$0xf]
      %v877 = vsel %vm624, %v816, %v876
      %878 = vst [vmem:[#allocation3 + $0x38] sm:$0xf] %v877
      %v879 = vld [vmem:[#allocation3 + $0x3c] sm:$0x1]
      %v880 = vsel %vm485, %v817, %v879
      %881 = vst [vmem:[#allocation3 + $0x3c] sm:$0x1] %v880
      %v882 = vld [vmem:[#allocation3 + $0x4] sm:$0x1]
      %v883 = vsel %vm673, 0, %v882
      %884 = vst [vmem:[#allocation3 + $0x4] sm:$0x1] %v883
      %v885 = vld [vmem:[#allocation3 + $0xc] sm:$0x1]
      %v886 = vsel %vm673, 0, %v885
      %887 = vst [vmem:[#allocation3 + $0xc] sm:$0x1] %v886
      %v888 = vld [vmem:[#allocation3 + $0x14] sm:$0x1]
      %v889 = vsel %vm673, 0, %v888
      %890 = vst [vmem:[#allocation3 + $0x14] sm:$0x1] %v889
      %v891 = vld [vmem:[#allocation3 + $0x1c] sm:$0x1]
      %v892 = vsel %vm673, 0, %v891
      %893 = vst [vmem:[#allocation3 + $0x1c] sm:$0x1] %v892
      %v894 = vld [vmem:[#allocation3 + $0x24] sm:$0x1]
      %v895 = vsel %vm673, 0, %v894
      %896 = vst [vmem:[#allocation3 + $0x24] sm:$0x1] %v895
      %v897 = vld [vmem:[#allocation3 + $0x2c] sm:$0x1]
      %v898 = vsel %vm673, 0, %v897
      %899 = vst [vmem:[#allocation3 + $0x2c] sm:$0x1] %v898
      %v900 = vld [vmem:[#allocation3 + $0x34] sm:$0x1]
      %v901 = vsel %vm673, 0, %v900
      %902 = vst [vmem:[#allocation3 + $0x34] sm:$0x1] %v901
      %v903 = vld [vmem:[#allocation3 + $0x3c] sm:$0x1]
      %v904 = vsel %vm673, 0, %v903
      %905 = vst [vmem:[#allocation3 + $0x3c] sm:$0x1] %v904
      %v906 = vld [vmem:[#allocation2] sm:$0xf]
      %v907 = vld [vmem:[#allocation2 + $0x4] sm:$0x1]
      %v908 = vld [vmem:[#allocation2 + $0x8] sm:$0xf]
      %v909 = vld [vmem:[#allocation2 + $0xc] sm:$0x1]
      %v910 = vld [vmem:[#allocation2 + $0x10] sm:$0xf]
      %v911 = vld [vmem:[#allocation2 + $0x14] sm:$0x1]
      %v912 = vld [vmem:[#allocation2 + $0x18] sm:$0xf]
      %v913 = vld [vmem:[#allocation2 + $0x1c] sm:$0x1]
      %v914 = vld [vmem:[#allocation2 + $0x20] sm:$0xf]
      %v915 = vld [vmem:[#allocation2 + $0x24] sm:$0x1]
      %v916 = vld [vmem:[#allocation2 + $0x28] sm:$0xf]
      %v917 = vld [vmem:[#allocation2 + $0x2c] sm:$0x1]
      %v918 = vld [vmem:[#allocation2 + $0x30] sm:$0xf]
      %v919 = vld [vmem:[#allocation2 + $0x34] sm:$0x1]
      %v920 = vld [vmem:[#allocation2 + $0x38] sm:$0xf]
      %v921 = vld [vmem:[#allocation2 + $0x3c] sm:$0x1]
      %v922 = vld [vmem:[#allocation2] sm:$0xe]
      %v923 = vld [vmem:[#allocation2 + $0x8] sm:$0xe]
      %v924 = vld [vmem:[#allocation2 + $0x10] sm:$0xe]
      %v925 = vld [vmem:[#allocation2 + $0x18] sm:$0xe]
      %v926 = vld [vmem:[#allocation2 + $0x20] sm:$0xe]
      %v927 = vld [vmem:[#allocation2 + $0x28] sm:$0xe]
      %v928 = vld [vmem:[#allocation2 + $0x30] sm:$0xe]
      %v929 = vld [vmem:[#allocation2 + $0x38] sm:$0xe]
      %v930 = vld [vmem:[#allocation3] sm:$0xf]
      %v931 = vld [vmem:[#allocation3 + $0x8] sm:$0xf]
      %v932 = vld [vmem:[#allocation3 + $0x10] sm:$0xf]
      %v933 = vld [vmem:[#allocation3 + $0x18] sm:$0xf]
      %v934 = vld [vmem:[#allocation3 + $0x20] sm:$0xf]
      %v935 = vld [vmem:[#allocation3 + $0x28] sm:$0xf]
      %v936 = vld [vmem:[#allocation3 + $0x30] sm:$0xf]
      %v937 = vld [vmem:[#allocation3 + $0x38] sm:$0xf]
      %v938 = vld [vmem:[#allocation3 + $0x4] sm:$0x1]
      %v939 = vld [vmem:[#allocation3 + $0xc] sm:$0x1]
      %v940 = vld [vmem:[#allocation3 + $0x14] sm:$0x1]
      %v941 = vld [vmem:[#allocation3 + $0x1c] sm:$0x1]
      %v942 = vld [vmem:[#allocation3 + $0x24] sm:$0x1]
      %v943 = vld [vmem:[#allocation3 + $0x2c] sm:$0x1]
      %v944 = vld [vmem:[#allocation3 + $0x34] sm:$0x1]
      %v945 = vld [vmem:[#allocation3 + $0x3c] sm:$0x1]
      %vm946 = vsmask.f32 3328
      %vm947 = vsmask.f32 7440
      %vm948 = vmor %vm946, %vm947
      %v950 = vshrl.u32 %v906, 16
      %v952 = vrot.slane %v950, 4
      %v953 = vshll.u32 %v906, 16
      %v955 = vrot.slane %v953, 5
      %v956 = vor.u32 %v952, %v955
      %v957 = vrot.slane %v956, 4
      %v959 = vshll.u32 %v907, 16
      %v961 = vrot.slane %v959, 5
      %v962 = vsel %vm948, %v957, %v961
      %v964 = vshrl.u32 %v908, 16
      %v966 = vrot.slane %v964, 4
      %v967 = vshll.u32 %v908, 16
      %v969 = vrot.slane %v967, 5
      %v970 = vor.u32 %v966, %v969
      %v971 = vrot.slane %v970, 4
      %v973 = vshll.u32 %v909, 16
      %v975 = vrot.slane %v973, 5
      %v976 = vsel %vm948, %v971, %v975
      %v978 = vshrl.u32 %v910, 16
      %v980 = vrot.slane %v978, 4
      %v981 = vshll.u32 %v910, 16
      %v983 = vrot.slane %v981, 5
      %v984 = vor.u32 %v980, %v983
      %v985 = vrot.slane %v984, 4
      %v987 = vshll.u32 %v911, 16
      %v989 = vrot.slane %v987, 5
      %v990 = vsel %vm948, %v985, %v989
      %v992 = vshrl.u32 %v912, 16
      %v994 = vrot.slane %v992, 4
      %v995 = vshll.u32 %v912, 16
      %v997 = vrot.slane %v995, 5
      %v998 = vor.u32 %v994, %v997
      %v999 = vrot.slane %v998, 4
      %v1001 = vshll.u32 %v913, 16
      %v1003 = vrot.slane %v1001, 5
      %v1004 = vsel %vm948, %v999, %v1003
      %v1006 = vshrl.u32 %v914, 16
      %v1008 = vrot.slane %v1006, 4
      %v1009 = vshll.u32 %v914, 16
      %v1011 = vrot.slane %v1009, 5
      %v1012 = vor.u32 %v1008, %v1011
      %v1013 = vrot.slane %v1012, 4
      %v1015 = vshll.u32 %v915, 16
      %v1017 = vrot.slane %v1015, 5
      %v1018 = vsel %vm948, %v1013, %v1017
      %v1020 = vshrl.u32 %v916, 16
      %v1022 = vrot.slane %v1020, 4
      %v1023 = vshll.u32 %v916, 16
      %v1025 = vrot.slane %v1023, 5
      %v1026 = vor.u32 %v1022, %v1025
      %v1027 = vrot.slane %v1026, 4
      %v1029 = vshll.u32 %v917, 16
      %v1031 = vrot.slane %v1029, 5
      %v1032 = vsel %vm948, %v1027, %v1031
      %v1034 = vshrl.u32 %v918, 16
      %v1036 = vrot.slane %v1034, 4
      %v1037 = vshll.u32 %v918, 16
      %v1039 = vrot.slane %v1037, 5
      %v1040 = vor.u32 %v1036, %v1039
      %v1041 = vrot.slane %v1040, 4
      %v1043 = vshll.u32 %v919, 16
      %v1045 = vrot.slane %v1043, 5
      %v1046 = vsel %vm948, %v1041, %v1045
      %v1048 = vshrl.u32 %v920, 16
      %v1050 = vrot.slane %v1048, 4
      %v1051 = vshll.u32 %v920, 16
      %v1053 = vrot.slane %v1051, 5
      %v1054 = vor.u32 %v1050, %v1053
      %v1055 = vrot.slane %v1054, 4
      %v1057 = vshll.u32 %v921, 16
      %v1059 = vrot.slane %v1057, 5
      %v1060 = vsel %vm948, %v1055, %v1059
      %v1061 = vld [vmem:[%s2] sm:$0xf]
      %v1062 = vld [vmem:[%s2 + $0x4] sm:$0xf]
      %v1063 = vld [vmem:[%s2 + $0x8] sm:$0xf]
      %v1064 = vld [vmem:[%s2 + $0xc] sm:$0xf]
      %v1065 = vld [vmem:[%s2 + $0x10] sm:$0xf]
      %v1066 = vld [vmem:[%s2 + $0x14] sm:$0xf]
      %v1067 = vld [vmem:[%s2 + $0x18] sm:$0xf]
      %v1068 = vld [vmem:[%s2 + $0x1c] sm:$0xf]
      %v1069 = vld [vmem:[%s2 + $0x20] sm:$0xf]
      %v1070 = vld [vmem:[%s2 + $0x24] sm:$0xf]
      %v1071 = vld [vmem:[%s2 + $0x28] sm:$0xf]
      %v1072 = vld [vmem:[%s2 + $0x2c] sm:$0xf]
      %v1073 = vld [vmem:[%s2 + $0x30] sm:$0xf]
      %v1074 = vld [vmem:[%s2 + $0x34] sm:$0xf]
      %v1075 = vld [vmem:[%s2 + $0x38] sm:$0xf]
      %v1076 = vld [vmem:[%s2 + $0x3c] sm:$0xf]
      %v1078 = vshrl.u32 %v930, 16
      %v1080 = vrot.slane %v1078, 4
      %v1081 = vshll.u32 %v930, 16
      %v1083 = vrot.slane %v1081, 5
      %v1084 = vor.u32 %v1080, %v1083
      %v1085 = vrot.slane %v1084, 4
      %v1087 = vshll.u32 %v938, 16
      %v1089 = vrot.slane %v1087, 5
      %v1090 = vsel %vm948, %v1085, %v1089
      %v1092 = vshrl.u32 %v931, 16
      %v1094 = vrot.slane %v1092, 4
      %v1095 = vshll.u32 %v931, 16
      %v1097 = vrot.slane %v1095, 5
      %v1098 = vor.u32 %v1094, %v1097
      %v1099 = vrot.slane %v1098, 4
      %v1101 = vshll.u32 %v939, 16
      %v1103 = vrot.slane %v1101, 5
      %v1104 = vsel %vm948, %v1099, %v1103
      %v1106 = vshrl.u32 %v932, 16
      %v1108 = vrot.slane %v1106, 4
      %v1109 = vshll.u32 %v932, 16
      %v1111 = vrot.slane %v1109, 5
      %v1112 = vor.u32 %v1108, %v1111
      %v1113 = vrot.slane %v1112, 4
      %v1115 = vshll.u32 %v940, 16
      %v1117 = vrot.slane %v1115, 5
      %v1118 = vsel %vm948, %v1113, %v1117
      %v1120 = vshrl.u32 %v933, 16
      %v1122 = vrot.slane %v1120, 4
      %v1123 = vshll.u32 %v933, 16
      %v1125 = vrot.slane %v1123, 5
      %v1126 = vor.u32 %v1122, %v1125
      %v1127 = vrot.slane %v1126, 4
      %v1129 = vshll.u32 %v941, 16
      %v1131 = vrot.slane %v1129, 5
      %v1132 = vsel %vm948, %v1127, %v1131
      %v1134 = vshrl.u32 %v934, 16
      %v1136 = vrot.slane %v1134, 4
      %v1137 = vshll.u32 %v934, 16
      %v1139 = vrot.slane %v1137, 5
      %v1140 = vor.u32 %v1136, %v1139
      %v1141 = vrot.slane %v1140, 4
      %v1143 = vshll.u32 %v942, 16
      %v1145 = vrot.slane %v1143, 5
      %v1146 = vsel %vm948, %v1141, %v1145
      %v1148 = vshrl.u32 %v935, 16
      %v1150 = vrot.slane %v1148, 4
      %v1151 = vshll.u32 %v935, 16
      %v1153 = vrot.slane %v1151, 5
      %v1154 = vor.u32 %v1150, %v1153
      %v1155 = vrot.slane %v1154, 4
      %v1157 = vshll.u32 %v943, 16
      %v1159 = vrot.slane %v1157, 5
      %v1160 = vsel %vm948, %v1155, %v1159
      %v1162 = vshrl.u32 %v936, 16
      %v1164 = vrot.slane %v1162, 4
      %v1165 = vshll.u32 %v936, 16
      %v1167 = vrot.slane %v1165, 5
      %v1168 = vor.u32 %v1164, %v1167
      %v1169 = vrot.slane %v1168, 4
      %v1171 = vshll.u32 %v944, 16
      %v1173 = vrot.slane %v1171, 5
      %v1174 = vsel %vm948, %v1169, %v1173
      %v1176 = vshrl.u32 %v937, 16
      %v1178 = vrot.slane %v1176, 4
      %v1179 = vshll.u32 %v937, 16
      %v1181 = vrot.slane %v1179, 5
      %v1182 = vor.u32 %v1178, %v1181
      %v1183 = vrot.slane %v1182, 4
      %v1185 = vshll.u32 %v945, 16
      %v1187 = vrot.slane %v1185, 5
      %v1188 = vsel %vm948, %v1183, %v1187
      %s1189 = scalar_lea.vmem %s2, 64
      %v1190 = vld [vmem:[%s1189] sm:$0xf]
      %v1191 = vld [vmem:[%s1189 + $0x4] sm:$0xf]
      %v1192 = vld [vmem:[%s1189 + $0x8] sm:$0xf]
      %v1193 = vld [vmem:[%s1189 + $0xc] sm:$0xf]
      %v1194 = vld [vmem:[%s1189 + $0x10] sm:$0xf]
      %v1195 = vld [vmem:[%s1189 + $0x14] sm:$0xf]
      %v1196 = vld [vmem:[%s1189 + $0x18] sm:$0xf]
      %v1197 = vld [vmem:[%s1189 + $0x1c] sm:$0xf]
      %v1198 = vld [vmem:[%s1189 + $0x20] sm:$0xf]
      %v1199 = vld [vmem:[%s1189 + $0x24] sm:$0xf]
      %v1200 = vld [vmem:[%s1189 + $0x28] sm:$0xf]
      %v1201 = vld [vmem:[%s1189 + $0x2c] sm:$0xf]
      %v1202 = vld [vmem:[%s1189 + $0x30] sm:$0xf]
      %v1203 = vld [vmem:[%s1189 + $0x34] sm:$0xf]
      %v1204 = vld [vmem:[%s1189 + $0x38] sm:$0xf]
      %v1205 = vld [vmem:[%s1189 + $0x3c] sm:$0xf]
      %v1206 = vunpack.c.l.b16 %v962
      %v1207 = vunpack.c.l.b16 %v976
      %v1208 = vunpack.c.l.b16 %v990
      %v1209 = vunpack.c.l.b16 %v1004
      %v1210 = vunpack.c.l.b16 %v1018
      %v1211 = vunpack.c.l.b16 %v1032
      %v1212 = vunpack.c.l.b16 %v1046
      %v1213 = vunpack.c.l.b16 %v1060
      %v1214 = vunpack.c.l.b16 %v1090
      %v1215 = vunpack.c.l.b16 %v1104
      %v1216 = vunpack.c.l.b16 %v1118
      %v1217 = vunpack.c.l.b16 %v1132
      %v1218 = vunpack.c.l.b16 %v1146
      %v1219 = vunpack.c.l.b16 %v1160
      %v1220 = vunpack.c.l.b16 %v1174
      %v1221 = vunpack.c.l.b16 %v1188
      %v1222 = vpack.c.b16 %v1207, %v1206
      %v1223 = vpack.c.b16 %v1209, %v1208
      %v1224 = vpack.c.b16 %v1211, %v1210
      %v1225 = vpack.c.b16 %v1213, %v1212
      %v1226 = vpack.c.b16 %v1215, %v1214
      %v1227 = vpack.c.b16 %v1217, %v1216
      %v1228 = vpack.c.b16 %v1219, %v1218
      %v1229 = vpack.c.b16 %v1221, %v1220
      %v1254 = vunpack.c.l.b16 %v1190
      %v1255 = vunpack.c.l.b16 %v1191
      %v1256 = vunpack.c.l.b16 %v1192
      %v1257 = vunpack.c.l.b16 %v1193
      %v1258 = vunpack.c.l.b16 %v1194
      %v1259 = vunpack.c.l.b16 %v1195
      %v1260 = vunpack.c.l.b16 %v1196
      %v1261 = vunpack.c.l.b16 %v1197
      %v1262 = vunpack.c.l.b16 %v1198
      %v1263 = vunpack.c.l.b16 %v1199
      %v1264 = vunpack.c.l.b16 %v1200
      %v1265 = vunpack.c.l.b16 %v1201
      %v1266 = vunpack.c.l.b16 %v1202
      %v1267 = vunpack.c.l.b16 %v1203
      %v1268 = vunpack.c.l.b16 %v1204
      %v1269 = vunpack.c.l.b16 %v1205
      %v1270 = vpack.c.b16 %v1255, %v1254
      %v1271 = vpack.c.b16 %v1257, %v1256
      %v1272 = vpack.c.b16 %v1259, %v1258
      %v1273 = vpack.c.b16 %v1261, %v1260
      %v1274 = vpack.c.b16 %v1263, %v1262
      %v1275 = vpack.c.b16 %v1265, %v1264
      %v1276 = vpack.c.b16 %v1267, %v1266
      %v1277 = vpack.c.b16 %v1269, %v1268
      %1286 = vmatprep.subr.bf16.mxu0 0
      %1287 = vmatpush1.bf16.msra.mxu0 %v1270
      %1288 = vmatprep.subr.bf16.mxu0 0
      %1289 = vmatpush1.bf16.msra.mxu0 %v1271
      %1290 = vmatprep.subr.bf16.mxu0 0
      %1291 = vmatpush1.bf16.msra.mxu0 %v1272
      %1292 = vmatprep.subr.bf16.mxu0 0
      %1293 = vmatpush1.bf16.msra.mxu0 %v1273
      %1294 = vmatprep.subr.bf16.mxu0 0
      %1295 = vmatpush1.bf16.msra.mxu0 %v1274
      %1296 = vmatprep.subr.bf16.mxu0 0
      %1297 = vmatpush1.bf16.msra.mxu0 %v1275
      %1298 = vmatprep.subr.bf16.mxu0 0
      %1299 = vmatpush1.bf16.msra.mxu0 %v1276
      %1300 = vmatprep.subr.bf16.mxu0 0
      %1301 = vmatpush1.bf16.msra.mxu0 %v1277
      %1302 = vmatprep.subr.bf16.mxu0 0
      %1303 = vmatpush1.bf16.msra.mxu0 0
      %1304 = vmatprep.subr.bf16.mxu0 0
      %1305 = vmatpush1.bf16.msra.mxu0 0
      %1306 = vmatprep.subr.bf16.mxu0 0
      %1307 = vmatpush1.bf16.msra.mxu0 0
      %1308 = vmatprep.subr.bf16.mxu0 0
      %1309 = vmatpush1.bf16.msra.mxu0 0
      %1310 = vmatprep.subr.bf16.mxu0 0
      %1311 = vmatpush1.bf16.msra.mxu0 0
      %1312 = vmatprep.subr.bf16.mxu0 0
      %1313 = vmatpush1.bf16.msra.mxu0 0
      %1314 = vmatprep.subr.bf16.mxu0 0
      %1315 = vmatpush1.bf16.msra.mxu0 0
      %1316 = vmatprep.subr.bf16.mxu0 0
      %1317 = vmatpush1.bf16.msra.mxu0 0
      %1318 = vmatprep.mubr.bf16.mxu0 0
      %1319 = vmatmul.mubr.bf16.gmra.mrb[0].mxu0 %v1222
      %v1320 = vpop.f32.mrb[0].mxu0
      %v1321 = vadd.f32 0.0, %v1320
      %v1322 = vpop.f32.mrb[0].mxu0
      %v1323 = vpop.f32.mrb[0].mxu0
      %v1324 = vadd.f32 0.0, %v1323
      %v1325 = vpop.f32.mrb[0].mxu0
      %1326 = vmatprep.mubr.bf16.mxu0 0
      %1327 = vmatmul.mubr.bf16.gmra.mrb[0].mxu0 %v1223
      %v1328 = vpop.f32.mrb[0].mxu0
      %v1329 = vadd.f32 0.0, %v1328
      %v1330 = vpop.f32.mrb[0].mxu0
      %v1331 = vpop.f32.mrb[0].mxu0
      %v1332 = vadd.f32 0.0, %v1331
      %v1333 = vpop.f32.mrb[0].mxu0
      %1334 = vmatprep.mubr.bf16.mxu0 0
      %1335 = vmatmul.mubr.bf16.gmra.mrb[0].mxu0 %v1224
      %v1336 = vpop.f32.mrb[0].mxu0
      %v1337 = vadd.f32 0.0, %v1336
      %v1338 = vpop.f32.mrb[0].mxu0
      %v1339 = vpop.f32.mrb[0].mxu0
      %v1340 = vadd.f32 0.0, %v1339
      %v1341 = vpop.f32.mrb[0].mxu0
      %1342 = vmatprep.mubr.bf16.mxu0 0
      %1343 = vmatmul.mubr.bf16.gmra.mrb[0].mxu0 %v1225
      %v1344 = vpop.f32.mrb[0].mxu0
      %v1345 = vadd.f32 0.0, %v1344
      %v1346 = vpop.f32.mrb[0].mxu0
      %v1347 = vpop.f32.mrb[0].mxu0
      %v1348 = vadd.f32 0.0, %v1347
      %v1349 = vpop.f32.mrb[0].mxu0
      %1350 = vmatprep.mubr.bf16.mxu0 0
      %1351 = vmatmul.mubr.bf16.gmra.mrb[0].mxu0 %v1226
      %v1352 = vpop.f32.mrb[0].mxu0
      %v1353 = vadd.f32 0.0, %v1352
      %v1354 = vpop.f32.mrb[0].mxu0
      %v1355 = vpop.f32.mrb[0].mxu0
      %v1356 = vadd.f32 0.0, %v1355
      %v1357 = vpop.f32.mrb[0].mxu0
      %1358 = vmatprep.mubr.bf16.mxu0 0
      %1359 = vmatmul.mubr.bf16.gmra.mrb[0].mxu0 %v1227
      %v1360 = vpop.f32.mrb[0].mxu0
      %v1361 = vadd.f32 0.0, %v1360
      %v1362 = vpop.f32.mrb[0].mxu0
      %v1363 = vpop.f32.mrb[0].mxu0
      %v1364 = vadd.f32 0.0, %v1363
      %v1365 = vpop.f32.mrb[0].mxu0
      %1366 = vmatprep.mubr.bf16.mxu0 0
      %1367 = vmatmul.mubr.bf16.gmra.mrb[0].mxu0 %v1228
      %v1368 = vpop.f32.mrb[0].mxu0
      %v1369 = vadd.f32 0.0, %v1368
      %v1370 = vpop.f32.mrb[0].mxu0
      %v1371 = vpop.f32.mrb[0].mxu0
      %v1372 = vadd.f32 0.0, %v1371
      %v1373 = vpop.f32.mrb[0].mxu0
      %1374 = vmatprep.mubr.bf16.mxu0 0
      %1375 = vmatmul.mubr.bf16.gmra.mrb[0].mxu0 %v1229
      %v1376 = vpop.f32.mrb[0].mxu0
      %v1377 = vadd.f32 0.0, %v1376
      %v1378 = vpop.f32.mrb[0].mxu0
      %v1379 = vpop.f32.mrb[0].mxu0
      %v1380 = vadd.f32 0.0, %v1379
      %v1381 = vpop.f32.mrb[0].mxu0
      %1382 = vdwg.mxu0
      %v1391 = vunpack.c.l.b16 %v930
      %v1392 = vunpack.c.l.b16 %v931
      %v1393 = vunpack.c.l.b16 %v932
      %v1394 = vunpack.c.l.b16 %v933
      %v1395 = vunpack.c.l.b16 %v934
      %v1396 = vunpack.c.l.b16 %v935
      %v1397 = vunpack.c.l.b16 %v936
      %v1398 = vunpack.c.l.b16 %v937
      %v1399 = vpack.c.b16 %v1392, %v1391
      %v1400 = vpack.c.b16 %v1394, %v1393
      %v1401 = vpack.c.b16 %v1396, %v1395
      %v1402 = vpack.c.b16 %v1398, %v1397
      %v1423 = vunpack.c.l.b16 %v1061
      %v1424 = vunpack.c.l.b16 %v1062
      %v1425 = vunpack.c.l.b16 %v1063
      %v1426 = vunpack.c.l.b16 %v1064
      %v1427 = vunpack.c.l.b16 %v1065
      %v1428 = vunpack.c.l.b16 %v1066
      %v1429 = vunpack.c.l.b16 %v1067
      %v1430 = vunpack.c.l.b16 %v1068
      %v1431 = vunpack.c.l.b16 %v1069
      %v1432 = vunpack.c.l.b16 %v1070
      %v1433 = vunpack.c.l.b16 %v1071
      %v1434 = vunpack.c.l.b16 %v1072
      %v1435 = vunpack.c.l.b16 %v1073
      %v1436 = vunpack.c.l.b16 %v1074
      %v1437 = vunpack.c.l.b16 %v1075
      %v1438 = vunpack.c.l.b16 %v1076
      %v1439 = vpack.c.b16 %v1424, %v1423
      %v1440 = vpack.c.b16 %v1426, %v1425
      %v1441 = vpack.c.b16 %v1428, %v1427
      %v1442 = vpack.c.b16 %v1430, %v1429
      %v1443 = vpack.c.b16 %v1432, %v1431
      %v1444 = vpack.c.b16 %v1434, %v1433
      %v1445 = vpack.c.b16 %v1436, %v1435
      %v1446 = vpack.c.b16 %v1438, %v1437
      %1455 = vmatprep.subr.bf16.mxu0 0
      %1456 = vmatpush1.bf16.msra.mxu0 %v1439
      %1457 = vmatprep.subr.bf16.mxu0 0
      %1458 = vmatpush1.bf16.msra.mxu0 %v1440
      %1459 = vmatprep.subr.bf16.mxu0 0
      %1460 = vmatpush1.bf16.msra.mxu0 %v1441
      %1461 = vmatprep.subr.bf16.mxu0 0
      %1462 = vmatpush1.bf16.msra.mxu0 %v1442
      %1463 = vmatprep.subr.bf16.mxu0 0
      %1464 = vmatpush1.bf16.msra.mxu0 %v1443
      %1465 = vmatprep.subr.bf16.mxu0 0
      %1466 = vmatpush1.bf16.msra.mxu0 %v1444
      %1467 = vmatprep.subr.bf16.mxu0 0
      %1468 = vmatpush1.bf16.msra.mxu0 %v1445
      %1469 = vmatprep.subr.bf16.mxu0 0
      %1470 = vmatpush1.bf16.msra.mxu0 %v1446
      %1471 = vmatprep.subr.bf16.mxu0 0
      %1472 = vmatpush1.bf16.msra.mxu0 0
      %1473 = vmatprep.subr.bf16.mxu0 0
      %1474 = vmatpush1.bf16.msra.mxu0 0
      %1475 = vmatprep.subr.bf16.mxu0 0
      %1476 = vmatpush1.bf16.msra.mxu0 0
      %1477 = vmatprep.subr.bf16.mxu0 0
      %1478 = vmatpush1.bf16.msra.mxu0 0
      %1479 = vmatprep.subr.bf16.mxu0 0
      %1480 = vmatpush1.bf16.msra.mxu0 0
      %1481 = vmatprep.subr.bf16.mxu0 0
      %1482 = vmatpush1.bf16.msra.mxu0 0
      %1483 = vmatprep.subr.bf16.mxu0 0
      %1484 = vmatpush1.bf16.msra.mxu0 0
      %1485 = vmatprep.subr.bf16.mxu0 0
      %1486 = vmatpush1.bf16.msra.mxu0 0
      %1487 = vmatprep.mubr.bf16.mxu0 0
      %1488 = vmatmul.mubr.bf16.gmra.mrb[0].mxu0 %v1399
      %v1489 = vpop.f32.mrb[0].mxu0
      %v1490 = vadd.f32 %v1321, %v1489
      %v1491 = vpop.f32.mrb[0].mxu0
      %v1492 = vpop.f32.mrb[0].mxu0
      %v1493 = vadd.f32 %v1324, %v1492
      %v1494 = vpop.f32.mrb[0].mxu0
      %1495 = vmatprep.mubr.bf16.mxu0 0
      %1496 = vmatmul.mubr.bf16.gmra.mrb[0].mxu0 %v1400
      %v1497 = vpop.f32.mrb[0].mxu0
      %v1498 = vadd.f32 %v1329, %v1497
      %v1499 = vpop.f32.mrb[0].mxu0
      %v1500 = vpop.f32.mrb[0].mxu0
      %v1501 = vadd.f32 %v1332, %v1500
      %v1502 = vpop.f32.mrb[0].mxu0
      %1503 = vmatprep.mubr.bf16.mxu0 0
      %1504 = vmatmul.mubr.bf16.gmra.mrb[0].mxu0 %v1401
      %v1505 = vpop.f32.mrb[0].mxu0
      %v1506 = vadd.f32 %v1337, %v1505
      %v1507 = vpop.f32.mrb[0].mxu0
      %v1508 = vpop.f32.mrb[0].mxu0
      %v1509 = vadd.f32 %v1340, %v1508
      %v1510 = vpop.f32.mrb[0].mxu0
      %1511 = vmatprep.mubr.bf16.mxu0 0
      %1512 = vmatmul.mubr.bf16.gmra.mrb[0].mxu0 %v1402
      %v1513 = vpop.f32.mrb[0].mxu0
      %v1514 = vadd.f32 %v1345, %v1513
      %v1515 = vpop.f32.mrb[0].mxu0
      %v1516 = vpop.f32.mrb[0].mxu0
      %v1517 = vadd.f32 %v1348, %v1516
      %v1518 = vpop.f32.mrb[0].mxu0
      %1519 = vmatprep.mubr.bf16.mxu0 0
      %1520 = vmatmul.mubr.bf16.gmra.mrb[0].mxu0 %v1222
      %v1521 = vpop.f32.mrb[0].mxu0
      %v1522 = vadd.f32 %v1353, %v1521
      %v1523 = vpop.f32.mrb[0].mxu0
      %v1524 = vpop.f32.mrb[0].mxu0
      %v1525 = vadd.f32 %v1356, %v1524
      %v1526 = vpop.f32.mrb[0].mxu0
      %1527 = vmatprep.mubr.bf16.mxu0 0
      %1528 = vmatmul.mubr.bf16.gmra.mrb[0].mxu0 %v1223
      %v1529 = vpop.f32.mrb[0].mxu0
      %v1530 = vadd.f32 %v1361, %v1529
      %v1531 = vpop.f32.mrb[0].mxu0
      %v1532 = vpop.f32.mrb[0].mxu0
      %v1533 = vadd.f32 %v1364, %v1532
      %v1534 = vpop.f32.mrb[0].mxu0
      %1535 = vmatprep.mubr.bf16.mxu0 0
      %1536 = vmatmul.mubr.bf16.gmra.mrb[0].mxu0 %v1224
      %v1537 = vpop.f32.mrb[0].mxu0
      %v1538 = vadd.f32 %v1369, %v1537
      %v1539 = vpop.f32.mrb[0].mxu0
      %v1540 = vpop.f32.mrb[0].mxu0
      %v1541 = vadd.f32 %v1372, %v1540
      %v1542 = vpop.f32.mrb[0].mxu0
      %1543 = vmatprep.mubr.bf16.mxu0 0
      %1544 = vmatmul.mubr.bf16.gmra.mrb[0].mxu0 %v1225
      %v1545 = vpop.f32.mrb[0].mxu0
      %v1546 = vadd.f32 %v1377, %v1545
      %v1547 = vpop.f32.mrb[0].mxu0
      %v1548 = vpop.f32.mrb[0].mxu0
      %v1549 = vadd.f32 %v1380, %v1548
      %v1550 = vpop.f32.mrb[0].mxu0
      %1551 = vdwg.mxu0
      %v1553 = vshrl.u32 %v922, 16
      %v1555 = vrot.slane %v1553, 4
      %v1556 = vshll.u32 %v922, 16
      %v1558 = vrot.slane %v1556, 5
      %v1559 = vor.u32 %v1555, %v1558
      %v1560 = vrot.slane %v1559, 4
      %v1561 = vsel %vm948, %v1560, %v961
      %v1562 = vshrl.u32 %v907, 16
      %v1564 = vrot.slane %v1562, 4
      %v1565 = vrot.slane %v1564, 4
      %v1567 = vshrl.u32 %v923, 16
      %v1569 = vrot.slane %v1567, 4
      %v1570 = vshll.u32 %v923, 16
      %v1572 = vrot.slane %v1570, 5
      %v1573 = vor.u32 %v1569, %v1572
      %v1574 = vrot.slane %v1573, 4
      %v1575 = vsel %vm948, %v1574, %v975
      %v1576 = vshrl.u32 %v909, 16
      %v1578 = vrot.slane %v1576, 4
      %v1579 = vrot.slane %v1578, 4
      %v1581 = vshrl.u32 %v924, 16
      %v1583 = vrot.slane %v1581, 4
      %v1584 = vshll.u32 %v924, 16
      %v1586 = vrot.slane %v1584, 5
      %v1587 = vor.u32 %v1583, %v1586
      %v1588 = vrot.slane %v1587, 4
      %v1589 = vsel %vm948, %v1588, %v989
      %v1590 = vshrl.u32 %v911, 16
      %v1592 = vrot.slane %v1590, 4
      %v1593 = vrot.slane %v1592, 4
      %v1595 = vshrl.u32 %v925, 16
      %v1597 = vrot.slane %v1595, 4
      %v1598 = vshll.u32 %v925, 16
      %v1600 = vrot.slane %v1598, 5
      %v1601 = vor.u32 %v1597, %v1600
      %v1602 = vrot.slane %v1601, 4
      %v1603 = vsel %vm948, %v1602, %v1003
      %v1604 = vshrl.u32 %v913, 16
      %v1606 = vrot.slane %v1604, 4
      %v1607 = vrot.slane %v1606, 4
      %v1609 = vshrl.u32 %v926, 16
      %v1611 = vrot.slane %v1609, 4
      %v1612 = vshll.u32 %v926, 16
      %v1614 = vrot.slane %v1612, 5
      %v1615 = vor.u32 %v1611, %v1614
      %v1616 = vrot.slane %v1615, 4
      %v1617 = vsel %vm948, %v1616, %v1017
      %v1618 = vshrl.u32 %v915, 16
      %v1620 = vrot.slane %v1618, 4
      %v1621 = vrot.slane %v1620, 4
      %v1623 = vshrl.u32 %v927, 16
      %v1625 = vrot.slane %v1623, 4
      %v1626 = vshll.u32 %v927, 16
      %v1628 = vrot.slane %v1626, 5
      %v1629 = vor.u32 %v1625, %v1628
      %v1630 = vrot.slane %v1629, 4
      %v1631 = vsel %vm948, %v1630, %v1031
      %v1632 = vshrl.u32 %v917, 16
      %v1634 = vrot.slane %v1632, 4
      %v1635 = vrot.slane %v1634, 4
      %v1637 = vshrl.u32 %v928, 16
      %v1639 = vrot.slane %v1637, 4
      %v1640 = vshll.u32 %v928, 16
      %v1642 = vrot.slane %v1640, 5
      %v1643 = vor.u32 %v1639, %v1642
      %v1644 = vrot.slane %v1643, 4
      %v1645 = vsel %vm948, %v1644, %v1045
      %v1646 = vshrl.u32 %v919, 16
      %v1648 = vrot.slane %v1646, 4
      %v1649 = vrot.slane %v1648, 4
      %v1651 = vshrl.u32 %v929, 16
      %v1653 = vrot.slane %v1651, 4
      %v1654 = vshll.u32 %v929, 16
      %v1656 = vrot.slane %v1654, 5
      %v1657 = vor.u32 %v1653, %v1656
      %v1658 = vrot.slane %v1657, 4
      %v1659 = vsel %vm948, %v1658, %v1059
      %v1660 = vshrl.u32 %v921, 16
      %v1662 = vrot.slane %v1660, 4
      %v1663 = vrot.slane %v1662, 4
      %v1665 = vshrl.u32 %v1561, 16
      %v1667 = vrot.slane %v1665, 4
      %v1668 = vshll.u32 %v1561, 16
      %v1670 = vrot.slane %v1668, 5
      %v1671 = vor.u32 %v1667, %v1670
      %v1672 = vrot.slane %v1671, 4
      %v1674 = vshll.u32 %v1565, 16
      %v1676 = vrot.slane %v1674, 5
      %v1677 = vsel %vm948, %v1672, %v1676
      %v1679 = vshrl.u32 %v1575, 16
      %v1681 = vrot.slane %v1679, 4
      %v1682 = vshll.u32 %v1575, 16
      %v1684 = vrot.slane %v1682, 5
      %v1685 = vor.u32 %v1681, %v1684
      %v1686 = vrot.slane %v1685, 4
      %v1688 = vshll.u32 %v1579, 16
      %v1690 = vrot.slane %v1688, 5
      %v1691 = vsel %vm948, %v1686, %v1690
      %v1693 = vshrl.u32 %v1589, 16
      %v1695 = vrot.slane %v1693, 4
      %v1696 = vshll.u32 %v1589, 16
      %v1698 = vrot.slane %v1696, 5
      %v1699 = vor.u32 %v1695, %v1698
      %v1700 = vrot.slane %v1699, 4
      %v1702 = vshll.u32 %v1593, 16
      %v1704 = vrot.slane %v1702, 5
      %v1705 = vsel %vm948, %v1700, %v1704
      %v1707 = vshrl.u32 %v1603, 16
      %v1709 = vrot.slane %v1707, 4
      %v1710 = vshll.u32 %v1603, 16
      %v1712 = vrot.slane %v1710, 5
      %v1713 = vor.u32 %v1709, %v1712
      %v1714 = vrot.slane %v1713, 4
      %v1716 = vshll.u32 %v1607, 16
      %v1718 = vrot.slane %v1716, 5
      %v1719 = vsel %vm948, %v1714, %v1718
      %v1721 = vshrl.u32 %v1617, 16
      %v1723 = vrot.slane %v1721, 4
      %v1724 = vshll.u32 %v1617, 16
      %v1726 = vrot.slane %v1724, 5
      %v1727 = vor.u32 %v1723, %v1726
      %v1728 = vrot.slane %v1727, 4
      %v1730 = vshll.u32 %v1621, 16
      %v1732 = vrot.slane %v1730, 5
      %v1733 = vsel %vm948, %v1728, %v1732
      %v1735 = vshrl.u32 %v1631, 16
      %v1737 = vrot.slane %v1735, 4
      %v1738 = vshll.u32 %v1631, 16
      %v1740 = vrot.slane %v1738, 5
      %v1741 = vor.u32 %v1737, %v1740
      %v1742 = vrot.slane %v1741, 4
      %v1744 = vshll.u32 %v1635, 16
      %v1746 = vrot.slane %v1744, 5
      %v1747 = vsel %vm948, %v1742, %v1746
      %v1749 = vshrl.u32 %v1645, 16
      %v1751 = vrot.slane %v1749, 4
      %v1752 = vshll.u32 %v1645, 16
      %v1754 = vrot.slane %v1752, 5
      %v1755 = vor.u32 %v1751, %v1754
      %v1756 = vrot.slane %v1755, 4
      %v1758 = vshll.u32 %v1649, 16
      %v1760 = vrot.slane %v1758, 5
      %v1761 = vsel %vm948, %v1756, %v1760
      %v1763 = vshrl.u32 %v1659, 16
      %v1765 = vrot.slane %v1763, 4
      %v1766 = vshll.u32 %v1659, 16
      %v1768 = vrot.slane %v1766, 5
      %v1769 = vor.u32 %v1765, %v1768
      %v1770 = vrot.slane %v1769, 4
      %v1772 = vshll.u32 %v1663, 16
      %v1774 = vrot.slane %v1772, 5
      %v1775 = vsel %vm948, %v1770, %v1774
      %s1776 = scalar_lea.vmem %s2, 128
      %v1777 = vld [vmem:[%s1776] sm:$0xf]
      %v1778 = vld [vmem:[%s1776 + $0x4] sm:$0xf]
      %v1779 = vld [vmem:[%s1776 + $0x8] sm:$0xf]
      %v1780 = vld [vmem:[%s1776 + $0xc] sm:$0xf]
      %v1781 = vld [vmem:[%s1776 + $0x10] sm:$0xf]
      %v1782 = vld [vmem:[%s1776 + $0x14] sm:$0xf]
      %v1783 = vld [vmem:[%s1776 + $0x18] sm:$0xf]
      %v1784 = vld [vmem:[%s1776 + $0x1c] sm:$0xf]
      %v1785 = vld [vmem:[%s1776 + $0x20] sm:$0xf]
      %v1786 = vld [vmem:[%s1776 + $0x24] sm:$0xf]
      %v1787 = vld [vmem:[%s1776 + $0x28] sm:$0xf]
      %v1788 = vld [vmem:[%s1776 + $0x2c] sm:$0xf]
      %v1789 = vld [vmem:[%s1776 + $0x30] sm:$0xf]
      %v1790 = vld [vmem:[%s1776 + $0x34] sm:$0xf]
      %v1791 = vld [vmem:[%s1776 + $0x38] sm:$0xf]
      %v1792 = vld [vmem:[%s1776 + $0x3c] sm:$0xf]
      %v1793 = vunpack.c.l.b16 %v1677
      %v1794 = vunpack.c.l.b16 %v1691
      %v1795 = vunpack.c.l.b16 %v1705
      %v1796 = vunpack.c.l.b16 %v1719
      %v1797 = vunpack.c.l.b16 %v1733
      %v1798 = vunpack.c.l.b16 %v1747
      %v1799 = vunpack.c.l.b16 %v1761
      %v1800 = vunpack.c.l.b16 %v1775
      %v1801 = vpack.c.b16 %v1794, %v1793
      %v1802 = vpack.c.b16 %v1796, %v1795
      %v1803 = vpack.c.b16 %v1798, %v1797
      %v1804 = vpack.c.b16 %v1800, %v1799
      %v1825 = vunpack.c.l.b16 %v1777
      %v1826 = vunpack.c.l.b16 %v1778
      %v1827 = vunpack.c.l.b16 %v1779
      %v1828 = vunpack.c.l.b16 %v1780
      %v1829 = vunpack.c.l.b16 %v1781
      %v1830 = vunpack.c.l.b16 %v1782
      %v1831 = vunpack.c.l.b16 %v1783
      %v1832 = vunpack.c.l.b16 %v1784
      %v1833 = vunpack.c.l.b16 %v1785
      %v1834 = vunpack.c.l.b16 %v1786
      %v1835 = vunpack.c.l.b16 %v1787
      %v1836 = vunpack.c.l.b16 %v1788
      %v1837 = vunpack.c.l.b16 %v1789
      %v1838 = vunpack.c.l.b16 %v1790
      %v1839 = vunpack.c.l.b16 %v1791
      %v1840 = vunpack.c.l.b16 %v1792
      %v1841 = vpack.c.b16 %v1826, %v1825
      %v1842 = vpack.c.b16 %v1828, %v1827
      %v1843 = vpack.c.b16 %v1830, %v1829
      %v1844 = vpack.c.b16 %v1832, %v1831
      %v1845 = vpack.c.b16 %v1834, %v1833
      %v1846 = vpack.c.b16 %v1836, %v1835
      %v1847 = vpack.c.b16 %v1838, %v1837
      %v1848 = vpack.c.b16 %v1840, %v1839
      %1857 = vmatprep.subr.bf16.mxu0 0
      %1858 = vmatpush1.bf16.msra.mxu0 %v1841
      %1859 = vmatprep.subr.bf16.mxu0 0
      %1860 = vmatpush1.bf16.msra.mxu0 %v1842
      %1861 = vmatprep.subr.bf16.mxu0 0
      %1862 = vmatpush1.bf16.msra.mxu0 %v1843
      %1863 = vmatprep.subr.bf16.mxu0 0
      %1864 = vmatpush1.bf16.msra.mxu0 %v1844
      %1865 = vmatprep.subr.bf16.mxu0 0
      %1866 = vmatpush1.bf16.msra.mxu0 %v1845
      %1867 = vmatprep.subr.bf16.mxu0 0
      %1868 = vmatpush1.bf16.msra.mxu0 %v1846
      %1869 = vmatprep.subr.bf16.mxu0 0
      %1870 = vmatpush1.bf16.msra.mxu0 %v1847
      %1871 = vmatprep.subr.bf16.mxu0 0
      %1872 = vmatpush1.bf16.msra.mxu0 %v1848
      %1873 = vmatprep.subr.bf16.mxu0 0
      %1874 = vmatpush1.bf16.msra.mxu0 0
      %1875 = vmatprep.subr.bf16.mxu0 0
      %1876 = vmatpush1.bf16.msra.mxu0 0
      %1877 = vmatprep.subr.bf16.mxu0 0
      %1878 = vmatpush1.bf16.msra.mxu0 0
      %1879 = vmatprep.subr.bf16.mxu0 0
      %1880 = vmatpush1.bf16.msra.mxu0 0
      %1881 = vmatprep.subr.bf16.mxu0 0
      %1882 = vmatpush1.bf16.msra.mxu0 0
      %1883 = vmatprep.subr.bf16.mxu0 0
      %1884 = vmatpush1.bf16.msra.mxu0 0
      %1885 = vmatprep.subr.bf16.mxu0 0
      %1886 = vmatpush1.bf16.msra.mxu0 0
      %1887 = vmatprep.subr.bf16.mxu0 0
      %1888 = vmatpush1.bf16.msra.mxu0 0
      %1889 = vmatprep.mubr.bf16.mxu0 0
      %1890 = vmatmul.mubr.bf16.gmra.mrb[0].mxu0 %v1226
      %v1891 = vpop.f32.mrb[0].mxu0
      %v1892 = vadd.f32 0.0, %v1891
      %v1893 = vpop.f32.mrb[0].mxu0
      %v1894 = vpop.f32.mrb[0].mxu0
      %v1895 = vadd.f32 0.0, %v1894
      %v1896 = vpop.f32.mrb[0].mxu0
      %1897 = vmatprep.mubr.bf16.mxu0 0
      %1898 = vmatmul.mubr.bf16.gmra.mrb[0].mxu0 %v1227
      %v1899 = vpop.f32.mrb[0].mxu0
      %v1900 = vadd.f32 0.0, %v1899
      %v1901 = vpop.f32.mrb[0].mxu0
      %v1902 = vpop.f32.mrb[0].mxu0
      %v1903 = vadd.f32 0.0, %v1902
      %v1904 = vpop.f32.mrb[0].mxu0
      %1905 = vmatprep.mubr.bf16.mxu0 0
      %1906 = vmatmul.mubr.bf16.gmra.mrb[0].mxu0 %v1228
      %v1907 = vpop.f32.mrb[0].mxu0
      %v1908 = vadd.f32 0.0, %v1907
      %v1909 = vpop.f32.mrb[0].mxu0
      %v1910 = vpop.f32.mrb[0].mxu0
      %v1911 = vadd.f32 0.0, %v1910
      %v1912 = vpop.f32.mrb[0].mxu0
      %1913 = vmatprep.mubr.bf16.mxu0 0
      %1914 = vmatmul.mubr.bf16.gmra.mrb[0].mxu0 %v1229
      %v1915 = vpop.f32.mrb[0].mxu0
      %v1916 = vadd.f32 0.0, %v1915
      %v1917 = vpop.f32.mrb[0].mxu0
      %v1918 = vpop.f32.mrb[0].mxu0
      %v1919 = vadd.f32 0.0, %v1918
      %v1920 = vpop.f32.mrb[0].mxu0
      %1921 = vmatprep.mubr.bf16.mxu0 0
      %1922 = vmatmul.mubr.bf16.gmra.mrb[0].mxu0 %v1801
      %v1923 = vpop.f32.mrb[0].mxu0
      %v1924 = vadd.f32 0.0, %v1923
      %v1925 = vpop.f32.mrb[0].mxu0
      %v1926 = vpop.f32.mrb[0].mxu0
      %v1927 = vadd.f32 0.0, %v1926
      %v1928 = vpop.f32.mrb[0].mxu0
      %1929 = vmatprep.mubr.bf16.mxu0 0
      %1930 = vmatmul.mubr.bf16.gmra.mrb[0].mxu0 %v1802
      %v1931 = vpop.f32.mrb[0].mxu0
      %v1932 = vadd.f32 0.0, %v1931
      %v1933 = vpop.f32.mrb[0].mxu0
      %v1934 = vpop.f32.mrb[0].mxu0
      %v1935 = vadd.f32 0.0, %v1934
      %v1936 = vpop.f32.mrb[0].mxu0
      %1937 = vmatprep.mubr.bf16.mxu0 0
      %1938 = vmatmul.mubr.bf16.gmra.mrb[0].mxu0 %v1803
      %v1939 = vpop.f32.mrb[0].mxu0
      %v1940 = vadd.f32 0.0, %v1939
      %v1941 = vpop.f32.mrb[0].mxu0
      %v1942 = vpop.f32.mrb[0].mxu0
      %v1943 = vadd.f32 0.0, %v1942
      %v1944 = vpop.f32.mrb[0].mxu0
      %1945 = vmatprep.mubr.bf16.mxu0 0
      %1946 = vmatmul.mubr.bf16.gmra.mrb[0].mxu0 %v1804
      %v1947 = vpop.f32.mrb[0].mxu0
      %v1948 = vadd.f32 0.0, %v1947
      %v1949 = vpop.f32.mrb[0].mxu0
      %v1950 = vpop.f32.mrb[0].mxu0
      %v1951 = vadd.f32 0.0, %v1950
      %v1952 = vpop.f32.mrb[0].mxu0
      %1953 = vdwg.mxu0
      %v1954 = vadd.f32 %v1490, %v1892
      %v1955 = vadd.f32 %v1493, %v1895
      %v1956 = vadd.f32 %v1498, %v1900
      %v1957 = vadd.f32 %v1501, %v1903
      %v1958 = vadd.f32 %v1506, %v1908
      %v1959 = vadd.f32 %v1509, %v1911
      %v1960 = vadd.f32 %v1514, %v1916
      %v1961 = vadd.f32 %v1517, %v1919
      %v1962 = vadd.f32 %v1522, %v1924
      %v1963 = vadd.f32 %v1525, %v1927
      %v1964 = vadd.f32 %v1530, %v1932
      %v1965 = vadd.f32 %v1533, %v1935
      %v1966 = vadd.f32 %v1538, %v1940
      %v1967 = vadd.f32 %v1541, %v1943
      %v1968 = vadd.f32 %v1546, %v1948
      %v1969 = vadd.f32 %v1549, %v1951
      %v1970 = vld [vmem:[%s3] sm:$0x1]
      %v1972 = vlaneseq
      %v1973 = vshrl.u32 %v1972, 7
      %v1974 = vsub.s32 0, %v1973
      %v1975 = vrot.slane %v1970, %v1974
      %v1977 = vadd.f32 %v1954, %v1975
      %v1978 = vadd.f32 %v1955, %v1975
      %v1979 = vadd.f32 %v1956, %v1975
      %v1980 = vadd.f32 %v1957, %v1975
      %v1981 = vadd.f32 %v1958, %v1975
      %v1982 = vadd.f32 %v1959, %v1975
      %v1983 = vadd.f32 %v1960, %v1975
      %v1984 = vadd.f32 %v1961, %v1975
      %v1985 = vadd.f32 %v1962, %v1975
      %v1986 = vadd.f32 %v1963, %v1975
      %v1987 = vadd.f32 %v1964, %v1975
      %v1988 = vadd.f32 %v1965, %v1975
      %v1989 = vadd.f32 %v1966, %v1975
      %v1990 = vadd.f32 %v1967, %v1975
      %v1991 = vadd.f32 %v1968, %v1975
      %v1992 = vadd.f32 %v1969, %v1975
      %v1993 = vpack.c.bf16 %v1977, %v1977
      %v1994 = vpack.c.bf16 %v1978, %v1978
      %v1995 = vpack.c.bf16 %v1979, %v1979
      %v1996 = vpack.c.bf16 %v1980, %v1980
      %v1997 = vpack.c.bf16 %v1981, %v1981
      %v1998 = vpack.c.bf16 %v1982, %v1982
      %v1999 = vpack.c.bf16 %v1983, %v1983
      %v2000 = vpack.c.bf16 %v1984, %v1984
      %2001 = vst [vmem:[%s374] sm:$0xf] %v1993
      %2002 = vst [vmem:[%s374 + $0x4] sm:$0xf] %v1994
      %2003 = vst [vmem:[%s374 + $0x8] sm:$0xf] %v1995
      %2004 = vst [vmem:[%s374 + $0xc] sm:$0xf] %v1996
      %2005 = vst [vmem:[%s374 + $0x10] sm:$0xf] %v1997
      %2006 = vst [vmem:[%s374 + $0x14] sm:$0xf] %v1998
      %2007 = vst [vmem:[%s374 + $0x18] sm:$0xf] %v1999
      %2008 = vst [vmem:[%s374 + $0x1c] sm:$0xf] %v2000
      %v2009 = vpack.c.bf16 %v1985, %v1985
      %v2010 = vpack.c.bf16 %v1986, %v1986
      %v2011 = vpack.c.bf16 %v1987, %v1987
      %v2012 = vpack.c.bf16 %v1988, %v1988
      %v2013 = vpack.c.bf16 %v1989, %v1989
      %v2014 = vpack.c.bf16 %v1990, %v1990
      %v2015 = vpack.c.bf16 %v1991, %v1991
      %v2016 = vpack.c.bf16 %v1992, %v1992
      %2017 = vst [vmem:[%s380] sm:$0xf] %v2009
      %2018 = vst [vmem:[%s380 + $0x4] sm:$0xf] %v2010
      %2019 = vst [vmem:[%s380 + $0x8] sm:$0xf] %v2011
      %2020 = vst [vmem:[%s380 + $0xc] sm:$0xf] %v2012
      %2021 = vst [vmem:[%s380 + $0x10] sm:$0xf] %v2013
      %2022 = vst [vmem:[%s380 + $0x14] sm:$0xf] %v2014
      %2023 = vst [vmem:[%s380 + $0x18] sm:$0xf] %v2015
      %2024 = vst [vmem:[%s380 + $0x1c] sm:$0xf] %v2016
      %v2025 = vadd.f32 %v1977, %v1978
      %v2026 = vadd.f32 %v2025, %v1979
      %v2027 = vadd.f32 %v2026, %v1980
      %v2028 = vadd.f32 %v2027, %v1981
      %v2029 = vadd.f32 %v2028, %v1982
      %v2030 = vadd.f32 %v2029, %v1983
      %v2031 = vadd.f32 %v2030, %v1984
      %v2032 = vadd.f32 %v2031, %v1985
      %v2033 = vadd.f32 %v2032, %v1986
      %v2034 = vadd.f32 %v2033, %v1987
      %v2035 = vadd.f32 %v2034, %v1988
      %v2036 = vadd.f32 %v2035, %v1989
      %v2037 = vadd.f32 %v2036, %v1990
      %v2038 = vadd.f32 %v2037, %v1991
      %v2039 = vadd.f32 %v2038, %v1992
      %v2040 = vrot.slane %v2039, 4
      %v2041 = vadd.f32 %v2039, %v2040
      %v2042 = vrot.slane %v2041, 2
      %v2043 = vadd.f32 %v2041, %v2042
      %v2044 = vrot.slane %v2043, 1
      %v2045 = vadd.f32 %v2043, %v2044
      %2046 = vst [vmem:[%s384] sm:$0x1] %v2045
      %v2047 = vmul.f32 %v1977, %v1977
      %v2048 = vmul.f32 %v1978, %v1978
      %v2049 = vmul.f32 %v1979, %v1979
      %v2050 = vmul.f32 %v1980, %v1980
      %v2051 = vmul.f32 %v1981, %v1981
      %v2052 = vmul.f32 %v1982, %v1982
      %v2053 = vmul.f32 %v1983, %v1983
      %v2054 = vmul.f32 %v1984, %v1984
      %v2055 = vmul.f32 %v1985, %v1985
      %v2056 = vmul.f32 %v1986, %v1986
      %v2057 = vmul.f32 %v1987, %v1987
      %v2058 = vmul.f32 %v1988, %v1988
      %v2059 = vmul.f32 %v1989, %v1989
      %v2060 = vmul.f32 %v1990, %v1990
      %v2061 = vmul.f32 %v1991, %v1991
      %v2062 = vmul.f32 %v1992, %v1992
      %v2063 = vadd.f32 %v2047, %v2048
      %v2064 = vadd.f32 %v2063, %v2049
      %v2065 = vadd.f32 %v2064, %v2050
      %v2066 = vadd.f32 %v2065, %v2051
      %v2067 = vadd.f32 %v2066, %v2052
      %v2068 = vadd.f32 %v2067, %v2053
      %v2069 = vadd.f32 %v2068, %v2054
      %v2070 = vadd.f32 %v2069, %v2055
      %v2071 = vadd.f32 %v2070, %v2056
      %v2072 = vadd.f32 %v2071, %v2057
      %v2073 = vadd.f32 %v2072, %v2058
      %v2074 = vadd.f32 %v2073, %v2059
      %v2075 = vadd.f32 %v2074, %v2060
      %v2076 = vadd.f32 %v2075, %v2061
      %v2077 = vadd.f32 %v2076, %v2062
      %v2078 = vrot.slane %v2077, 4
      %v2079 = vadd.f32 %v2077, %v2078
      %v2080 = vrot.slane %v2079, 2
      %v2081 = vadd.f32 %v2079, %v2080
      %v2082 = vrot.slane %v2081, 1
      %v2083 = vadd.f32 %v2081, %v2082
      %2084 = vst [vmem:[%s387] sm:$0x1] %v2083
      %s2085 = smul.u32 8, %s21
      %p2086 = scmp.lt.s32.totalorder %s2085, 15
      %s2087 = scalar_select %p2086, %s2085, 15
      %s2088 = smul.addr %s2087, 4
      %s2089 = scalar_lea.vmem %s6, %s2088
      %s2090 = smul.u32 8, %s21
      %p2091 = scmp.lt.s32.totalorder %s2090, 15
      %s2092 = scalar_select %p2091, %s2090, 15
      %s2093 = smul.addr %s2092, 4
      %s2094 = scalar_lea.vmem %s7, %s2093
      %p2095 = scmp.lt.s32.totalorder %s21, 1
      %s2096 = scalar_select %p2095, %s21, 1
      %s2097 = scalar_lea.vmem %s8, %s2096
      %p2098 = scmp.lt.s32.totalorder %s21, 1
      %s2099 = scalar_select %p2098, %s21, 1
      %s2100 = scalar_lea.vmem %s9, %s2099
      // Predicated region
      $region45: #{up_forward.3} parent=43 // pred_check
        %p2101 = pneg %p175
      $region46: #{up_forward.3} parent=43 // pred_check_branch
        %2103 = sbr.rel (%p2101) target = $region48
      $region47: #{up_forward.3} parent=43 // pred_region
        %s2104 = smul.u32 8, %s21
      $region48: #{up_forward.3} parent=43 // pred_fallthru
        _
      // Predicated region
      $region49: #{up_forward.3} parent=43 // pred_check
        %p2105 = pneg %p201
      $region50: #{up_forward.3} parent=43 // pred_check_branch
        %2107 = sbr.rel (%p2105) target = $region52
      $region51: #{up_forward.3} parent=43 // pred_region
        %s2108 = smul.u32 8, %s21
      $region52: #{up_forward.3} parent=43 // pred_fallthru
        _
      // Predicated region
      $region53: #{up_forward.3} parent=43 // pred_check
        %p2109 = pneg %p227
      $region54: #{up_forward.3} parent=43 // pred_check_branch
        %2111 = sbr.rel (%p2109) target = $region56
      $region55: #{up_forward.3} parent=43 // pred_region
        _
      $region56: #{up_forward.3} parent=43 // pred_fallthru
        _
      // Predicated region
      $region57: #{up_forward.3} parent=43 // pred_check
        %p2112 = pneg %p253
      $region58: #{up_forward.3} parent=43 // pred_check_branch
        %2114 = sbr.rel (%p2112) target = $region60
      $region59: #{up_forward.3} parent=43 // pred_region
        _
      $region60: #{up_forward.3} parent=43 // pred_fallthru
        _
    $region44: #{up_forward.3} parent=5 // pred_fallthru
      _
    %p2115 = scmp.le.s32.totalorder 2, %s16
    // Predicated region
    $region61: #{up_forward.3} parent=5 // pred_check
      %p2116 = pneg %p2115
    $region62: #{up_forward.3} parent=5 // pred_check_branch
      %2118 = sbr.rel (%p2116) target = $region64
    $region63: #{up_forward.3} parent=5 // pred_region
      %s2119 = ssub.s32 %s16, 2
      // Predicated region
      $region65: #{up_forward.3} parent=63 // pred_check
        %p2120 = pneg %p181
      $region66: #{up_forward.3} parent=63 // pred_check_branch
        %2122 = sbr.rel (%p2120) target = $region68
      $region67: #{up_forward.3} parent=63 // pred_region
        %s2123 = smul.u32 8, %s22
        %p2124 = scmp.lt.s32.totalorder %s2123, 15
        %s2125 = scalar_select %p2124, %s2123, 15
        %s2126 = smul.addr %s2125, 4
        %s2127 = scalar_lea.vmem %s6, %s2126
      $region68: #{up_forward.3} parent=63 // pred_fallthru
        _
      // Predicated region
      $region69: #{up_forward.3} parent=63 // pred_check
        %p2128 = pneg %p207
      $region70: #{up_forward.3} parent=63 // pred_check_branch
        %2130 = sbr.rel (%p2128) target = $region72
      $region71: #{up_forward.3} parent=63 // pred_region
        %s2131 = smul.u32 8, %s22
        %p2132 = scmp.lt.s32.totalorder %s2131, 15
        %s2133 = scalar_select %p2132, %s2131, 15
        %s2134 = smul.addr %s2133, 4
        %s2135 = scalar_lea.vmem %s7, %s2134
      $region72: #{up_forward.3} parent=63 // pred_fallthru
        _
      // Predicated region
      $region73: #{up_forward.3} parent=63 // pred_check
        %p2136 = pneg %p233
      $region74: #{up_forward.3} parent=63 // pred_check_branch
        %2138 = sbr.rel (%p2136) target = $region76
      $region75: #{up_forward.3} parent=63 // pred_region
        %p2139 = scmp.lt.s32.totalorder %s22, 1
        %s2140 = scalar_select %p2139, %s22, 1
        %s2141 = scalar_lea.vmem %s8, %s2140
      $region76: #{up_forward.3} parent=63 // pred_fallthru
        _
      // Predicated region
      $region77: #{up_forward.3} parent=63 // pred_check
        %p2142 = pneg %p259
      $region78: #{up_forward.3} parent=63 // pred_check_branch
        %2144 = sbr.rel (%p2142) target = $region80
      $region79: #{up_forward.3} parent=63 // pred_region
        %p2145 = scmp.lt.s32.totalorder %s22, 1
        %s2146 = scalar_select %p2145, %s22, 1
        %s2147 = scalar_lea.vmem %s9, %s2146
      $region80: #{up_forward.3} parent=63 // pred_fallthru
        _
    $region64: #{up_forward.3} parent=5 // pred_fallthru
      _
  $region6: #{up_forward.3} parent=0 // loop_footer
    %s20 = sadd.s32 1, %s16
  $region7: #{up_forward.3} parent=0 // loop_footer_branch
    %15 = sbr.rel target = $region3
  $region8: #{up_forward.3} parent=0 // loop_exit
    _

// kernel: up_forward.2
$region0: #{up_forward.2}
  #allocation0 [shape = 'u32[]', space=smem, size = 0x4, offset = 0x4, fixed_abs, tag = 'smem constant byte address 0x4 - core index']
  #allocation1 [shape = 'u32[144,128]{1,0:T(1,128)}', space=vmem, size = 0x12000, scoped, tag = 'internal scratch']
  #allocation2 [shape = 'bf16[8,10,128]{2,1,0:T(8,128)(2,1)}', space=vmem, size = 0x8000, scoped, tag = 'scratch operand']
  #allocation3 [shape = 'bf16[8,10,128]{2,1,0:T(8,128)(2,1)}', space=vmem, size = 0x8000, scoped, tag = 'scratch operand']
  %s0 = inlined_call_operand.vmem [shape: bf16[16,8,128], index: 0, kind: input, shape index: {}]
  %s1 = inlined_call_operand.vmem [shape: bf16[16,8,128], index: 1, kind: input, shape index: {}]
  %s2 = inlined_call_operand.vmem [shape: bf16[3,128,128], index: 2, kind: input, shape index: {}]
  %s3 = inlined_call_operand.vmem [shape: f32[1,1,128], index: 3, kind: input, shape index: {}]
  %s4 = inlined_call_operand.vmem [shape: bf16[16,8,128], index: 4, kind: output, shape index: {0}]
  %s5 = inlined_call_operand.vmem [shape: bf16[16,8,128], index: 5, kind: output, shape index: {1}]
  %s6 = inlined_call_operand.vmem [shape: f32[2,1,128], index: 6, kind: output, shape index: {2}]
  %s7 = inlined_call_operand.vmem [shape: f32[2,1,128], index: 7, kind: output, shape index: {3}]
  %8 = xla_tuple %s4, %s5, %s6, %s7
  %s9 = sld [smem:[#allocation0]]
  $region73: #{up_forward.2} parent=0
    _
  %s11 = ssub.s32 1, %s9
  %s12 = scalar_select 0, %s11, %s9
  loop: start=0, step=1, limit=4
  $region2: #{up_forward.2} parent=0 // loop_pre_header
    _
  $region3: #{up_forward.2} parent=0 // loop_header
    %s14 = sphi 0, %s18
    %p15 = scmp.ge.s32.totalorder %s14, 4
    %s24 = sphi 0, %s26
    %s27 = sphi 0, %s24
    %s28 = sphi 0, %s27
    %s44 = sphi 0, %s28
    %s50 = sphi 0, %s52
    %s53 = sphi 0, %s50
    %s54 = sphi 0, %s53
    %s70 = sphi 0, %s54
    %s74 = sphi 0, %s74
    %s76 = sphi 0, %s74
    %s77 = sphi 0, %s76
    %s91 = sphi 0, %s77
    %s95 = sphi 0, %s95
    %s97 = sphi 0, %s95
    %s98 = sphi 0, %s97
    %s112 = sphi 0, %s98
    %s118 = sphi 0, %s120
    %s121 = sphi 0, %s118
    %s122 = sphi 0, %s121
    %s138 = sphi 0, %s122
    %s144 = sphi 0, %s146
    %s147 = sphi 0, %s144
    %s148 = sphi 0, %s147
    %s164 = sphi 0, %s148
    %s170 = sphi 0, %s172
    %s173 = sphi 0, %s170
    %s174 = sphi 0, %s173
    %s190 = sphi 0, %s174
    %s196 = sphi 0, %s198
    %s199 = sphi 0, %s196
    %s200 = sphi 0, %s199
    %s216 = sphi 0, %s200
  $region4: #{up_forward.2} parent=0 // loop_header_branch
    %17 = sbr.rel (%p15) target = $region8
  $region5: #{up_forward.2} parent=0 // loop_body
    %s19 = ssub.s32 %s14, 1
    %s20 = ssub.s32 %s14, 2
    %s21 = sadd.s32 %s14, 1
    %s22 = ssub.s32 %s14, %s21
    %p23 = scmp.eq.s32.totalorder %s22, 0
    %s25 = sadd.s32 %s24, 1
    %s26 = scalar_select %p23, %s24, %s25
    %p29 = pneg %p23
    %p30 = scmp.eq.s32.totalorder %s14, 1
    %p31 = por %p29, %p30
    %p32 = scmp.ne.s32.totalorder %s24, %s27
    %p33 = scmp.eq.s32.totalorder %s14, 0
    %p34 = por %p32, %p33
    %p35 = scmp.ne.s32.totalorder %s24, %s27
    %p36 = scmp.eq.s32.totalorder %s19, 1
    %p37 = por %p35, %p36
    %p38 = scmp.ne.s32.totalorder %s27, %s28
    %p39 = scmp.eq.s32.totalorder %s19, 0
    %p40 = por %p38, %p39
    %p41 = scmp.ne.s32.totalorder %s27, %s28
    %p42 = scmp.eq.s32.totalorder %s20, 1
    %p43 = por %p41, %p42
    %p45 = scmp.ne.s32.totalorder %s28, %s44
    %p46 = scmp.eq.s32.totalorder %s20, 0
    %p47 = por %p45, %p46
    %s48 = ssub.s32 %s14, %s21
    %p49 = scmp.eq.s32.totalorder %s48, 0
    %s51 = sadd.s32 %s50, 1
    %s52 = scalar_select %p49, %s50, %s51
    %p55 = pneg %p49
    %p56 = scmp.eq.s32.totalorder %s14, 1
    %p57 = por %p55, %p56
    %p58 = scmp.ne.s32.totalorder %s50, %s53
    %p59 = scmp.eq.s32.totalorder %s14, 0
    %p60 = por %p58, %p59
    %p61 = scmp.ne.s32.totalorder %s50, %s53
    %p62 = scmp.eq.s32.totalorder %s19, 1
    %p63 = por %p61, %p62
    %p64 = scmp.ne.s32.totalorder %s53, %s54
    %p65 = scmp.eq.s32.totalorder %s19, 0
    %p66 = por %p64, %p65
    %p67 = scmp.ne.s32.totalorder %s53, %s54
    %p68 = scmp.eq.s32.totalorder %s20, 1
    %p69 = por %p67, %p68
    %p71 = scmp.ne.s32.totalorder %s54, %s70
    %p72 = scmp.eq.s32.totalorder %s20, 0
    %p73 = por %p71, %p72
    %s75 = sadd.s32 %s74, 1
    %p78 = scmp.eq.s32.totalorder %s14, 1
    %p79 = scmp.ne.s32.totalorder %s74, %s76
    %p80 = scmp.eq.s32.totalorder %s14, 0
    %p81 = por %p79, %p80
    %p82 = scmp.ne.s32.totalorder %s74, %s76
    %p83 = scmp.eq.s32.totalorder %s19, 1
    %p84 = por %p82, %p83
    %p85 = scmp.ne.s32.totalorder %s76, %s77
    %p86 = scmp.eq.s32.totalorder %s19, 0
    %p87 = por %p85, %p86
    %p88 = scmp.ne.s32.totalorder %s76, %s77
    %p89 = scmp.eq.s32.totalorder %s20, 1
    %p90 = por %p88, %p89
    %p92 = scmp.ne.s32.totalorder %s77, %s91
    %p93 = scmp.eq.s32.totalorder %s20, 0
    %p94 = por %p92, %p93
    %s96 = sadd.s32 %s95, 1
    %p99 = scmp.eq.s32.totalorder %s14, 1
    %p100 = scmp.ne.s32.totalorder %s95, %s97
    %p101 = scmp.eq.s32.totalorder %s14, 0
    %p102 = por %p100, %p101
    %p103 = scmp.ne.s32.totalorder %s95, %s97
    %p104 = scmp.eq.s32.totalorder %s19, 1
    %p105 = por %p103, %p104
    %p106 = scmp.ne.s32.totalorder %s97, %s98
    %p107 = scmp.eq.s32.totalorder %s19, 0
    %p108 = por %p106, %p107
    %p109 = scmp.ne.s32.totalorder %s97, %s98
    %p110 = scmp.eq.s32.totalorder %s20, 1
    %p111 = por %p109, %p110
    %p113 = scmp.ne.s32.totalorder %s98, %s112
    %p114 = scmp.eq.s32.totalorder %s20, 0
    %p115 = por %p113, %p114
    %s116 = ssub.s32 %s14, %s21
    %p117 = scmp.eq.s32.totalorder %s116, 0
    %s119 = sadd.s32 %s118, 1
    %s120 = scalar_select %p117, %s118, %s119
    %p123 = pneg %p117
    %p124 = scmp.eq.s32.totalorder %s14, 1
    %p125 = por %p123, %p124
    %p126 = scmp.ne.s32.totalorder %s118, %s121
    %p127 = scmp.eq.s32.totalorder %s14, 0
    %p128 = por %p126, %p127
    %p129 = scmp.ne.s32.totalorder %s118, %s121
    %p130 = scmp.eq.s32.totalorder %s19, 1
    %p131 = por %p129, %p130
    %p132 = scmp.ne.s32.totalorder %s121, %s122
    %p133 = scmp.eq.s32.totalorder %s19, 0
    %p134 = por %p132, %p133
    %p135 = scmp.ne.s32.totalorder %s121, %s122
    %p136 = scmp.eq.s32.totalorder %s20, 1
    %p137 = por %p135, %p136
    %p139 = scmp.ne.s32.totalorder %s122, %s138
    %p140 = scmp.eq.s32.totalorder %s20, 0
    %p141 = por %p139, %p140
    %s142 = ssub.s32 %s14, %s21
    %p143 = scmp.eq.s32.totalorder %s142, 0
    %s145 = sadd.s32 %s144, 1
    %s146 = scalar_select %p143, %s144, %s145
    %p149 = pneg %p143
    %p150 = scmp.eq.s32.totalorder %s14, 1
    %p151 = por %p149, %p150
    %p152 = scmp.ne.s32.totalorder %s144, %s147
    %p153 = scmp.eq.s32.totalorder %s14, 0
    %p154 = por %p152, %p153
    %p155 = scmp.ne.s32.totalorder %s144, %s147
    %p156 = scmp.eq.s32.totalorder %s19, 1
    %p157 = por %p155, %p156
    %p158 = scmp.ne.s32.totalorder %s147, %s148
    %p159 = scmp.eq.s32.totalorder %s19, 0
    %p160 = por %p158, %p159
    %p161 = scmp.ne.s32.totalorder %s147, %s148
    %p162 = scmp.eq.s32.totalorder %s20, 1
    %p163 = por %p161, %p162
    %p165 = scmp.ne.s32.totalorder %s148, %s164
    %p166 = scmp.eq.s32.totalorder %s20, 0
    %p167 = por %p165, %p166
    %s168 = ssub.s32 %s14, %s21
    %p169 = scmp.eq.s32.totalorder %s168, 0
    %s171 = sadd.s32 %s170, 1
    %s172 = scalar_select %p169, %s170, %s171
    %p175 = pneg %p169
    %p176 = scmp.eq.s32.totalorder %s14, 1
    %p177 = por %p175, %p176
    %p178 = scmp.ne.s32.totalorder %s170, %s173
    %p179 = scmp.eq.s32.totalorder %s14, 0
    %p180 = por %p178, %p179
    %p181 = scmp.ne.s32.totalorder %s170, %s173
    %p182 = scmp.eq.s32.totalorder %s19, 1
    %p183 = por %p181, %p182
    %p184 = scmp.ne.s32.totalorder %s173, %s174
    %p185 = scmp.eq.s32.totalorder %s19, 0
    %p186 = por %p184, %p185
    %p187 = scmp.ne.s32.totalorder %s173, %s174
    %p188 = scmp.eq.s32.totalorder %s20, 1
    %p189 = por %p187, %p188
    %p191 = scmp.ne.s32.totalorder %s174, %s190
    %p192 = scmp.eq.s32.totalorder %s20, 0
    %p193 = por %p191, %p192
    %s194 = ssub.s32 %s14, %s21
    %p195 = scmp.eq.s32.totalorder %s194, 0
    %s197 = sadd.s32 %s196, 1
    %s198 = scalar_select %p195, %s196, %s197
    %p201 = pneg %p195
    %p202 = scmp.eq.s32.totalorder %s14, 1
    %p203 = por %p201, %p202
    %p204 = scmp.ne.s32.totalorder %s196, %s199
    %p205 = scmp.eq.s32.totalorder %s14, 0
    %p206 = por %p204, %p205
    %p207 = scmp.ne.s32.totalorder %s196, %s199
    %p208 = scmp.eq.s32.totalorder %s19, 1
    %p209 = por %p207, %p208
    %p210 = scmp.ne.s32.totalorder %s199, %s200
    %p211 = scmp.eq.s32.totalorder %s19, 0
    %p212 = por %p210, %p211
    %p213 = scmp.ne.s32.totalorder %s199, %s200
    %p214 = scmp.eq.s32.totalorder %s20, 1
    %p215 = por %p213, %p214
    %p217 = scmp.ne.s32.totalorder %s200, %s216
    %p218 = scmp.eq.s32.totalorder %s20, 0
    %p219 = por %p217, %p218
    %p220 = scmp.le.s32.totalorder 1, %s14
    %p221 = scmp.lt.s32.totalorder %s14, 3
    %p222 = pnand %p220, %p221
    %p223 = pneg %p222
    // Predicated region
    $region9: #{up_forward.2} parent=5 // pred_check
      _
    $region10: #{up_forward.2} parent=5 // pred_check_branch
      %225 = sbr.rel (%p222) target = $region12
    $region11: #{up_forward.2} parent=5 // pred_region
      %s226 = ssub.s32 %s14, 1
      // Predicated region
      $region13: #{up_forward.2} parent=11 // pred_check
        %p227 = pneg %p87
      $region14: #{up_forward.2} parent=11 // pred_check_branch
        %229 = sbr.rel (%p227) target = $region16
      $region15: #{up_forward.2} parent=11 // pred_region
        _
      $region16: #{up_forward.2} parent=11 // pred_fallthru
        _
      // Predicated region
      $region17: #{up_forward.2} parent=11 // pred_check
        %p230 = pneg %p108
      $region18: #{up_forward.2} parent=11 // pred_check_branch
        %232 = sbr.rel (%p230) target = $region20
      $region19: #{up_forward.2} parent=11 // pred_region
        _
      $region20: #{up_forward.2} parent=11 // pred_fallthru
        _
    $region12: #{up_forward.2} parent=5 // pred_fallthru
      _
    %p233 = scmp.lt.s32.totalorder %s14, 2
    // Predicated region
    $region21: #{up_forward.2} parent=5 // pred_check
      %p234 = pneg %p233
    $region22: #{up_forward.2} parent=5 // pred_check_branch
      %236 = sbr.rel (%p234) target = $region24
    $region23: #{up_forward.2} parent=5 // pred_region
      // Predicated region
      $region25: #{up_forward.2} parent=23 // pred_check
        %p237 = pneg %p34
      $region26: #{up_forward.2} parent=23 // pred_check_branch
        %239 = sbr.rel (%p237) target = $region28
      $region27: #{up_forward.2} parent=23 // pred_region
        %s240 = smul.u32 8, %s14
        %p241 = scmp.lt.s32.totalorder %s240, 15
        %s242 = scalar_select %p241, %s240, 15
        %s243 = smul.addr %s242, 4
        %s244 = scalar_lea.vmem %s0, %s243
        %s245 = smul.u32 8, %s14
      $region28: #{up_forward.2} parent=23 // pred_fallthru
        _
      // Predicated region
      $region29: #{up_forward.2} parent=23 // pred_check
        %p246 = pneg %p60
      $region30: #{up_forward.2} parent=23 // pred_check_branch
        %248 = sbr.rel (%p246) target = $region32
      $region31: #{up_forward.2} parent=23 // pred_region
        %s249 = smul.u32 8, %s14
        %p250 = scmp.lt.s32.totalorder %s249, 15
        %s251 = scalar_select %p250, %s249, 15
        %s252 = smul.addr %s251, 4
        %s253 = scalar_lea.vmem %s1, %s252
        %s254 = smul.u32 8, %s14
      $region32: #{up_forward.2} parent=23 // pred_fallthru
        _
    $region24: #{up_forward.2} parent=5 // pred_fallthru
      _
    %p255 = scmp.le.s32.totalorder 1, %s14
    %p256 = scmp.lt.s32.totalorder %s14, 3
    %p257 = pnand %p255, %p256
    %p258 = pneg %p257
    // Predicated region
    $region33: #{up_forward.2} parent=5 // pred_check
      _
    $region34: #{up_forward.2} parent=5 // pred_check_branch
      %260 = sbr.rel (%p257) target = $region36
    $region35: #{up_forward.2} parent=5 // pred_region
      %s261 = ssub.s32 %s14, 1
      %s262 = smul.u32 8, %s19
      %p263 = scmp.lt.s32.totalorder %s262, 15
      %s264 = scalar_select %p263, %s262, 15
      %s265 = smul.addr %s264, 4
      %s266 = scalar_lea.vmem %s0, %s265
      %p267 = pneg %p40
      %p268 = pneg %p37
      %s269 = smul.u32 8, %s19
      %p270 = scmp.lt.s32.totalorder %s269, 15
      %s271 = scalar_select %p270, %s269, 15
      %s272 = smul.addr %s271, 4
      %s273 = scalar_lea.vmem %s1, %s272
      %p274 = pneg %p66
      %p275 = pneg %p63
      %p276 = pneg %p87
      %p277 = pneg %p84
      %p278 = pneg %p108
      %p279 = pneg %p105
      %p280 = pneg %p134
      %p281 = pneg %p131
      %s282 = smul.u32 8, %s19
      %p283 = scmp.lt.s32.totalorder %s282, 15
      %s284 = scalar_select %p283, %s282, 15
      %s285 = smul.addr %s284, 4
      %s286 = scalar_lea.vmem %s4, %s285
      %p287 = pneg %p160
      %p288 = pneg %p157
      %s289 = smul.u32 8, %s19
      %p290 = scmp.lt.s32.totalorder %s289, 15
      %s291 = scalar_select %p290, %s289, 15
      %s292 = smul.addr %s291, 4
      %s293 = scalar_lea.vmem %s5, %s292
      %p294 = pneg %p186
      %p295 = pneg %p183
      %p296 = scmp.lt.s32.totalorder %s19, 1
      %s297 = scalar_select %p296, %s19, 1
      %s298 = scalar_lea.vmem %s6, %s297
      %p299 = pneg %p212
      %p300 = pneg %p209
      %p301 = scmp.lt.s32.totalorder %s19, 1
      %s302 = scalar_select %p301, %s19, 1
      %s303 = scalar_lea.vmem %s7, %s302
      %s304 = smul.u32 8, %s19
      %p305 = scmp.lt.s32.totalorder %s304, 15
      %s306 = scalar_select %p305, %s304, 15
      %s307 = smul.addr %s306, 4
      %s308 = scalar_lea.vmem %s0, %s307
      %s309 = smul.u32 8, %s19
      %s310 = smul.u32 8, %s19
      %p311 = scmp.lt.s32.totalorder %s310, 15
      %s312 = scalar_select %p311, %s310, 15
      %s313 = smul.addr %s312, 4
      %s314 = scalar_lea.vmem %s1, %s313
      %s315 = smul.u32 8, %s19
      %s316 = smul.u32 8, %s19
      %p317 = scmp.lt.s32.totalorder %s316, 15
      %s318 = scalar_select %p317, %s316, 15
      %s319 = smul.addr %s318, 4
      %s320 = scalar_lea.vmem %s4, %s319
      %s321 = smul.u32 8, %s19
      %s322 = smul.u32 8, %s19
      %p323 = scmp.lt.s32.totalorder %s322, 15
      %s324 = scalar_select %p323, %s322, 15
      %s325 = smul.addr %s324, 4
      %s326 = scalar_lea.vmem %s5, %s325
      %s327 = smul.u32 8, %s19
      %p328 = scmp.lt.s32.totalorder %s19, 1
      %s329 = scalar_select %p328, %s19, 1
      %s330 = scalar_lea.vmem %s6, %s329
      %p331 = scmp.lt.s32.totalorder %s19, 1
      %s332 = scalar_select %p331, %s19, 1
      %s333 = scalar_lea.vmem %s7, %s332
      %v335 = vld [vmem:[%s308] sm:$0xf]
      %v336 = vld [vmem:[%s308 + $0x4] sm:$0xf]
      %v337 = vld [vmem:[%s308 + $0x8] sm:$0xf]
      %v338 = vld [vmem:[%s308 + $0xc] sm:$0xf]
      %v339 = vld [vmem:[%s308 + $0x10] sm:$0xf]
      %v340 = vld [vmem:[%s308 + $0x14] sm:$0xf]
      %v341 = vld [vmem:[%s308 + $0x18] sm:$0xf]
      %v342 = vld [vmem:[%s308 + $0x1c] sm:$0xf]
      %v343 = vld [vmem:[%s314] sm:$0xf]
      %v344 = vld [vmem:[%s314 + $0x4] sm:$0xf]
      %v345 = vld [vmem:[%s314 + $0x8] sm:$0xf]
      %v346 = vld [vmem:[%s314 + $0xc] sm:$0xf]
      %v347 = vld [vmem:[%s314 + $0x10] sm:$0xf]
      %v348 = vld [vmem:[%s314 + $0x14] sm:$0xf]
      %v349 = vld [vmem:[%s314 + $0x18] sm:$0xf]
      %v350 = vld [vmem:[%s314 + $0x1c] sm:$0xf]
      %v351 = vmul.bf16 %v335, %v343
      %v352 = vmul.bf16 %v336, %v344
      %v353 = vmul.bf16 %v337, %v345
      %v354 = vmul.bf16 %v338, %v346
      %v355 = vmul.bf16 %v339, %v347
      %v356 = vmul.bf16 %v340, %v348
      %v357 = vmul.bf16 %v341, %v349
      %v358 = vmul.bf16 %v342, %v350
      %v359 = vsub.bf16 %v335, %v351
      %v360 = vsub.bf16 %v336, %v352
      %v361 = vsub.bf16 %v337, %v353
      %v362 = vsub.bf16 %v338, %v354
      %v363 = vsub.bf16 %v339, %v355
      %v364 = vsub.bf16 %v340, %v356
      %v365 = vsub.bf16 %v341, %v357
      %v366 = vsub.bf16 %v342, %v358
      %vm367 = vcmask 1040384
      %vm368 = vsmask.f32 256
      %vm369 = vmand %vm367, %vm368
      %v370 = vld [vmem:[#allocation2] sm:$0x1]
      %v371 = vsel %vm369, 0, %v370
      %372 = vst [vmem:[#allocation2] sm:$0x1] %v371
      %v373 = vld [vmem:[#allocation2 + $0x8] sm:$0x1]
      %v374 = vsel %vm369, 0, %v373
      %375 = vst [vmem:[#allocation2 + $0x8] sm:$0x1] %v374
      %v376 = vld [vmem:[#allocation2 + $0x10] sm:$0x1]
      %v377 = vsel %vm369, 0, %v376
      %378 = vst [vmem:[#allocation2 + $0x10] sm:$0x1] %v377
      %v379 = vld [vmem:[#allocation2 + $0x18] sm:$0x1]
      %v380 = vsel %vm369, 0, %v379
      %381 = vst [vmem:[#allocation2 + $0x18] sm:$0x1] %v380
      %v382 = vld [vmem:[#allocation2 + $0x20] sm:$0x1]
      %v383 = vsel %vm369, 0, %v382
      %384 = vst [vmem:[#allocation2 + $0x20] sm:$0x1] %v383
      %v385 = vld [vmem:[#allocation2 + $0x28] sm:$0x1]
      %v386 = vsel %vm369, 0, %v385
      %387 = vst [vmem:[#allocation2 + $0x28] sm:$0x1] %v386
      %v388 = vld [vmem:[#allocation2 + $0x30] sm:$0x1]
      %v389 = vsel %vm369, 0, %v388
      %390 = vst [vmem:[#allocation2 + $0x30] sm:$0x1] %v389
      %v391 = vld [vmem:[#allocation2 + $0x38] sm:$0x1]
      %v392 = vsel %vm369, 0, %v391
      %393 = vst [vmem:[#allocation2 + $0x38] sm:$0x1] %v392
      %v395 = vshrl.u32 %v359, 16
      %v397 = vrot.slane %v395, 7
      %v398 = vshll.u32 %v359, 16
      %v400 = vor.u32 %v397, %v398
      %v401 = vrot.slane %v397, 4
      %v403 = vshrl.u32 %v360, 16
      %v405 = vrot.slane %v403, 7
      %v406 = vshll.u32 %v360, 16
      %v408 = vor.u32 %v405, %v406
      %v409 = vrot.slane %v405, 4
      %v411 = vshrl.u32 %v361, 16
      %v413 = vrot.slane %v411, 7
      %v414 = vshll.u32 %v361, 16
      %v416 = vor.u32 %v413, %v414
      %v417 = vrot.slane %v413, 4
      %v419 = vshrl.u32 %v362, 16
      %v421 = vrot.slane %v419, 7
      %v422 = vshll.u32 %v362, 16
      %v424 = vor.u32 %v421, %v422
      %v425 = vrot.slane %v421, 4
      %v427 = vshrl.u32 %v363, 16
      %v429 = vrot.slane %v427, 7
      %v430 = vshll.u32 %v363, 16
      %v432 = vor.u32 %v429, %v430
      %v433 = vrot.slane %v429, 4
      %v435 = vshrl.u32 %v364, 16
      %v437 = vrot.slane %v435, 7
      %v438 = vshll.u32 %v364, 16
      %v440 = vor.u32 %v437, %v438
      %v441 = vrot.slane %v437, 4
      %v443 = vshrl.u32 %v365, 16
      %v445 = vrot.slane %v443, 7
      %v446 = vshll.u32 %v365, 16
      %v448 = vor.u32 %v445, %v446
      %v449 = vrot.slane %v445, 4
      %v451 = vshrl.u32 %v366, 16
      %v453 = vrot.slane %v451, 7
      %v454 = vshll.u32 %v366, 16
      %v456 = vor.u32 %v453, %v454
      %v457 = vrot.slane %v453, 4
      %vm474 = vcmask 1043456
      %vm475 = vsmask.f32 7938
      %vm476 = vmand %vm474, %vm475
      %v477 = vld [vmem:[#allocation2] sm:$0xf]
      %v478 = vsel %vm476, %v400, %v477
      %479 = vst [vmem:[#allocation2] sm:$0xf] %v478
      %v480 = vld [vmem:[#allocation2 + $0x4] sm:$0x1]
      %v481 = vsel %vm369, %v401, %v480
      %482 = vst [vmem:[#allocation2 + $0x4] sm:$0x1] %v481
      %v483 = vld [vmem:[#allocation2 + $0x8] sm:$0xf]
      %v484 = vsel %vm476, %v408, %v483
      %485 = vst [vmem:[#allocation2 + $0x8] sm:$0xf] %v484
      %v486 = vld [vmem:[#allocation2 + $0xc] sm:$0x1]
      %v487 = vsel %vm369, %v409, %v486
      %488 = vst [vmem:[#allocation2 + $0xc] sm:$0x1] %v487
      %v489 = vld [vmem:[#allocation2 + $0x10] sm:$0xf]
      %v490 = vsel %vm476, %v416, %v489
      %491 = vst [vmem:[#allocation2 + $0x10] sm:$0xf] %v490
      %v492 = vld [vmem:[#allocation2 + $0x14] sm:$0x1]
      %v493 = vsel %vm369, %v417, %v492
      %494 = vst [vmem:[#allocation2 + $0x14] sm:$0x1] %v493
      %v495 = vld [vmem:[#allocation2 + $0x18] sm:$0xf]
      %v496 = vsel %vm476, %v424, %v495
      %497 = vst [vmem:[#allocation2 + $0x18] sm:$0xf] %v496
      %v498 = vld [vmem:[#allocation2 + $0x1c] sm:$0x1]
      %v499 = vsel %vm369, %v425, %v498
      %500 = vst [vmem:[#allocation2 + $0x1c] sm:$0x1] %v499
      %v501 = vld [vmem:[#allocation2 + $0x20] sm:$0xf]
      %v502 = vsel %vm476, %v432, %v501
      %503 = vst [vmem:[#allocation2 + $0x20] sm:$0xf] %v502
      %v504 = vld [vmem:[#allocation2 + $0x24] sm:$0x1]
      %v505 = vsel %vm369, %v433, %v504
      %506 = vst [vmem:[#allocation2 + $0x24] sm:$0x1] %v505
      %v507 = vld [vmem:[#allocation2 + $0x28] sm:$0xf]
      %v508 = vsel %vm476, %v440, %v507
      %509 = vst [vmem:[#allocation2 + $0x28] sm:$0xf] %v508
      %v510 = vld [vmem:[#allocation2 + $0x2c] sm:$0x1]
      %v511 = vsel %vm369, %v441, %v510
      %512 = vst [vmem:[#allocation2 + $0x2c] sm:$0x1] %v511
      %v513 = vld [vmem:[#allocation2 + $0x30] sm:$0xf]
      %v514 = vsel %vm476, %v448, %v513
      %515 = vst [vmem:[#allocation2 + $0x30] sm:$0xf] %v514
      %v516 = vld [vmem:[#allocation2 + $0x34] sm:$0x1]
      %v517 = vsel %vm369, %v449, %v516
      %518 = vst [vmem:[#allocation2 + $0x34] sm:$0x1] %v517
      %v519 = vld [vmem:[#allocation2 + $0x38] sm:$0xf]
      %v520 = vsel %vm476, %v456, %v519
      %521 = vst [vmem:[#allocation2 + $0x38] sm:$0xf] %v520
      %v522 = vld [vmem:[#allocation2 + $0x3c] sm:$0x1]
      %v523 = vsel %vm369, %v457, %v522
      %524 = vst [vmem:[#allocation2 + $0x3c] sm:$0x1] %v523
      %vm525 = vmand %vm367, %vm475
      %v526 = vld [vmem:[#allocation2 + $0x4] sm:$0x1]
      %v527 = vsel %vm525, 0, %v526
      %528 = vst [vmem:[#allocation2 + $0x4] sm:$0x1] %v527
      %v529 = vld [vmem:[#allocation2 + $0xc] sm:$0x1]
      %v530 = vsel %vm525, 0, %v529
      %531 = vst [vmem:[#allocation2 + $0xc] sm:$0x1] %v530
      %v532 = vld [vmem:[#allocation2 + $0x14] sm:$0x1]
      %v533 = vsel %vm525, 0, %v532
      %534 = vst [vmem:[#allocation2 + $0x14] sm:$0x1] %v533
      %v535 = vld [vmem:[#allocation2 + $0x1c] sm:$0x1]
      %v536 = vsel %vm525, 0, %v535
      %537 = vst [vmem:[#allocation2 + $0x1c] sm:$0x1] %v536
      %v538 = vld [vmem:[#allocation2 + $0x24] sm:$0x1]
      %v539 = vsel %vm525, 0, %v538
      %540 = vst [vmem:[#allocation2 + $0x24] sm:$0x1] %v539
      %v541 = vld [vmem:[#allocation2 + $0x2c] sm:$0x1]
      %v542 = vsel %vm525, 0, %v541
      %543 = vst [vmem:[#allocation2 + $0x2c] sm:$0x1] %v542
      %v544 = vld [vmem:[#allocation2 + $0x34] sm:$0x1]
      %v545 = vsel %vm525, 0, %v544
      %546 = vst [vmem:[#allocation2 + $0x34] sm:$0x1] %v545
      %v547 = vld [vmem:[#allocation2 + $0x3c] sm:$0x1]
      %v548 = vsel %vm525, 0, %v547
      %549 = vst [vmem:[#allocation2 + $0x3c] sm:$0x1] %v548
      %v550 = vld [vmem:[#allocation3] sm:$0x1]
      %v551 = vsel %vm369, 0, %v550
      %552 = vst [vmem:[#allocation3] sm:$0x1] %v551
      %v553 = vld [vmem:[#allocation3 + $0x8] sm:$0x1]
      %v554 = vsel %vm369, 0, %v553
      %555 = vst [vmem:[#allocation3 + $0x8] sm:$0x1] %v554
      %v556 = vld [vmem:[#allocation3 + $0x10] sm:$0x1]
      %v557 = vsel %vm369, 0, %v556
      %558 = vst [vmem:[#allocation3 + $0x10] sm:$0x1] %v557
      %v559 = vld [vmem:[#allocation3 + $0x18] sm:$0x1]
      %v560 = vsel %vm369, 0, %v559
      %561 = vst [vmem:[#allocation3 + $0x18] sm:$0x1] %v560
      %v562 = vld [vmem:[#allocation3 + $0x20] sm:$0x1]
      %v563 = vsel %vm369, 0, %v562
      %564 = vst [vmem:[#allocation3 + $0x20] sm:$0x1] %v563
      %v565 = vld [vmem:[#allocation3 + $0x28] sm:$0x1]
      %v566 = vsel %vm369, 0, %v565
      %567 = vst [vmem:[#allocation3 + $0x28] sm:$0x1] %v566
      %v568 = vld [vmem:[#allocation3 + $0x30] sm:$0x1]
      %v569 = vsel %vm369, 0, %v568
      %570 = vst [vmem:[#allocation3 + $0x30] sm:$0x1] %v569
      %v571 = vld [vmem:[#allocation3 + $0x38] sm:$0x1]
      %v572 = vsel %vm369, 0, %v571
      %573 = vst [vmem:[#allocation3 + $0x38] sm:$0x1] %v572
      %v575 = vshrl.u32 %v351, 16
      %v577 = vrot.slane %v575, 7
      %v578 = vshll.u32 %v351, 16
      %v580 = vor.u32 %v577, %v578
      %v581 = vrot.slane %v577, 4
      %v583 = vshrl.u32 %v352, 16
      %v585 = vrot.slane %v583, 7
      %v586 = vshll.u32 %v352, 16
      %v588 = vor.u32 %v585, %v586
      %v589 = vrot.slane %v585, 4
      %v591 = vshrl.u32 %v353, 16
      %v593 = vrot.slane %v591, 7
      %v594 = vshll.u32 %v353, 16
      %v596 = vor.u32 %v593, %v594
      %v597 = vrot.slane %v593, 4
      %v599 = vshrl.u32 %v354, 16
      %v601 = vrot.slane %v599, 7
      %v602 = vshll.u32 %v354, 16
      %v604 = vor.u32 %v601, %v602
      %v605 = vrot.slane %v601, 4
      %v607 = vshrl.u32 %v355, 16
      %v609 = vrot.slane %v607, 7
      %v610 = vshll.u32 %v355, 16
      %v612 = vor.u32 %v609, %v610
      %v613 = vrot.slane %v609, 4
      %v615 = vshrl.u32 %v356, 16
      %v617 = vrot.slane %v615, 7
      %v618 = vshll.u32 %v356, 16
      %v620 = vor.u32 %v617, %v618
      %v621 = vrot.slane %v617, 4
      %v623 = vshrl.u32 %v357, 16
      %v625 = vrot.slane %v623, 7
      %v626 = vshll.u32 %v357, 16
      %v628 = vor.u32 %v625, %v626
      %v629 = vrot.slane %v625, 4
      %v631 = vshrl.u32 %v358, 16
      %v633 = vrot.slane %v631, 7
      %v634 = vshll.u32 %v358, 16
      %v636 = vor.u32 %v633, %v634
      %v637 = vrot.slane %v633, 4
      %v654 = vld [vmem:[#allocation3] sm:$0xf]
      %v655 = vsel %vm476, %v580, %v654
      %656 = vst [vmem:[#allocation3] sm:$0xf] %v655
      %v657 = vld [vmem:[#allocation3 + $0x4] sm:$0x1]
      %v658 = vsel %vm369, %v581, %v657
      %659 = vst [vmem:[#allocation3 + $0x4] sm:$0x1] %v658
      %v660 = vld [vmem:[#allocation3 + $0x8] sm:$0xf]
      %v661 = vsel %vm476, %v588, %v660
      %662 = vst [vmem:[#allocation3 + $0x8] sm:$0xf] %v661
      %v663 = vld [vmem:[#allocation3 + $0xc] sm:$0x1]
      %v664 = vsel %vm369, %v589, %v663
      %665 = vst [vmem:[#allocation3 + $0xc] sm:$0x1] %v664
      %v666 = vld [vmem:[#allocation3 + $0x10] sm:$0xf]
      %v667 = vsel %vm476, %v596, %v666
      %668 = vst [vmem:[#allocation3 + $0x10] sm:$0xf] %v667
      %v669 = vld [vmem:[#allocation3 + $0x14] sm:$0x1]
      %v670 = vsel %vm369, %v597, %v669
      %671 = vst [vmem:[#allocation3 + $0x14] sm:$0x1] %v670
      %v672 = vld [vmem:[#allocation3 + $0x18] sm:$0xf]
      %v673 = vsel %vm476, %v604, %v672
      %674 = vst [vmem:[#allocation3 + $0x18] sm:$0xf] %v673
      %v675 = vld [vmem:[#allocation3 + $0x1c] sm:$0x1]
      %v676 = vsel %vm369, %v605, %v675
      %677 = vst [vmem:[#allocation3 + $0x1c] sm:$0x1] %v676
      %v678 = vld [vmem:[#allocation3 + $0x20] sm:$0xf]
      %v679 = vsel %vm476, %v612, %v678
      %680 = vst [vmem:[#allocation3 + $0x20] sm:$0xf] %v679
      %v681 = vld [vmem:[#allocation3 + $0x24] sm:$0x1]
      %v682 = vsel %vm369, %v613, %v681
      %683 = vst [vmem:[#allocation3 + $0x24] sm:$0x1] %v682
      %v684 = vld [vmem:[#allocation3 + $0x28] sm:$0xf]
      %v685 = vsel %vm476, %v620, %v684
      %686 = vst [vmem:[#allocation3 + $0x28] sm:$0xf] %v685
      %v687 = vld [vmem:[#allocation3 + $0x2c] sm:$0x1]
      %v688 = vsel %vm369, %v621, %v687
      %689 = vst [vmem:[#allocation3 + $0x2c] sm:$0x1] %v688
      %v690 = vld [vmem:[#allocation3 + $0x30] sm:$0xf]
      %v691 = vsel %vm476, %v628, %v690
      %692 = vst [vmem:[#allocation3 + $0x30] sm:$0xf] %v691
      %v693 = vld [vmem:[#allocation3 + $0x34] sm:$0x1]
      %v694 = vsel %vm369, %v629, %v693
      %695 = vst [vmem:[#allocation3 + $0x34] sm:$0x1] %v694
      %v696 = vld [vmem:[#allocation3 + $0x38] sm:$0xf]
      %v697 = vsel %vm476, %v636, %v696
      %698 = vst [vmem:[#allocation3 + $0x38] sm:$0xf] %v697
      %v699 = vld [vmem:[#allocation3 + $0x3c] sm:$0x1]
      %v700 = vsel %vm369, %v637, %v699
      %701 = vst [vmem:[#allocation3 + $0x3c] sm:$0x1] %v700
      %v702 = vld [vmem:[#allocation3 + $0x4] sm:$0x1]
      %v703 = vsel %vm525, 0, %v702
      %704 = vst [vmem:[#allocation3 + $0x4] sm:$0x1] %v703
      %v705 = vld [vmem:[#allocation3 + $0xc] sm:$0x1]
      %v706 = vsel %vm525, 0, %v705
      %707 = vst [vmem:[#allocation3 + $0xc] sm:$0x1] %v706
      %v708 = vld [vmem:[#allocation3 + $0x14] sm:$0x1]
      %v709 = vsel %vm525, 0, %v708
      %710 = vst [vmem:[#allocation3 + $0x14] sm:$0x1] %v709
      %v711 = vld [vmem:[#allocation3 + $0x1c] sm:$0x1]
      %v712 = vsel %vm525, 0, %v711
      %713 = vst [vmem:[#allocation3 + $0x1c] sm:$0x1] %v712
      %v714 = vld [vmem:[#allocation3 + $0x24] sm:$0x1]
      %v715 = vsel %vm525, 0, %v714
      %716 = vst [vmem:[#allocation3 + $0x24] sm:$0x1] %v715
      %v717 = vld [vmem:[#allocation3 + $0x2c] sm:$0x1]
      %v718 = vsel %vm525, 0, %v717
      %719 = vst [vmem:[#allocation3 + $0x2c] sm:$0x1] %v718
      %v720 = vld [vmem:[#allocation3 + $0x34] sm:$0x1]
      %v721 = vsel %vm525, 0, %v720
      %722 = vst [vmem:[#allocation3 + $0x34] sm:$0x1] %v721
      %v723 = vld [vmem:[#allocation3 + $0x3c] sm:$0x1]
      %v724 = vsel %vm525, 0, %v723
      %725 = vst [vmem:[#allocation3 + $0x3c] sm:$0x1] %v724
      %v726 = vld [vmem:[#allocation2] sm:$0xf]
      %v727 = vld [vmem:[#allocation2 + $0x4] sm:$0x1]
      %v728 = vld [vmem:[#allocation2 + $0x8] sm:$0xf]
      %v729 = vld [vmem:[#allocation2 + $0xc] sm:$0x1]
      %v730 = vld [vmem:[#allocation2 + $0x10] sm:$0xf]
      %v731 = vld [vmem:[#allocation2 + $0x14] sm:$0x1]
      %v732 = vld [vmem:[#allocation2 + $0x18] sm:$0xf]
      %v733 = vld [vmem:[#allocation2 + $0x1c] sm:$0x1]
      %v734 = vld [vmem:[#allocation2 + $0x20] sm:$0xf]
      %v735 = vld [vmem:[#allocation2 + $0x24] sm:$0x1]
      %v736 = vld [vmem:[#allocation2 + $0x28] sm:$0xf]
      %v737 = vld [vmem:[#allocation2 + $0x2c] sm:$0x1]
      %v738 = vld [vmem:[#allocation2 + $0x30] sm:$0xf]
      %v739 = vld [vmem:[#allocation2 + $0x34] sm:$0x1]
      %v740 = vld [vmem:[#allocation2 + $0x38] sm:$0xf]
      %v741 = vld [vmem:[#allocation2 + $0x3c] sm:$0x1]
      %v742 = vld [vmem:[#allocation2] sm:$0xe]
      %v743 = vld [vmem:[#allocation2 + $0x8] sm:$0xe]
      %v744 = vld [vmem:[#allocation2 + $0x10] sm:$0xe]
      %v745 = vld [vmem:[#allocation2 + $0x18] sm:$0xe]
      %v746 = vld [vmem:[#allocation2 + $0x20] sm:$0xe]
      %v747 = vld [vmem:[#allocation2 + $0x28] sm:$0xe]
      %v748 = vld [vmem:[#allocation2 + $0x30] sm:$0xe]
      %v749 = vld [vmem:[#allocation2 + $0x38] sm:$0xe]
      %v750 = vld [vmem:[#allocation3] sm:$0xf]
      %v751 = vld [vmem:[#allocation3 + $0x8] sm:$0xf]
      %v752 = vld [vmem:[#allocation3 + $0x10] sm:$0xf]
      %v753 = vld [vmem:[#allocation3 + $0x18] sm:$0xf]
      %v754 = vld [vmem:[#allocation3 + $0x20] sm:$0xf]
      %v755 = vld [vmem:[#allocation3 + $0x28] sm:$0xf]
      %v756 = vld [vmem:[#allocation3 + $0x30] sm:$0xf]
      %v757 = vld [vmem:[#allocation3 + $0x38] sm:$0xf]
      %v758 = vld [vmem:[#allocation3 + $0x4] sm:$0x1]
      %v759 = vld [vmem:[#allocation3 + $0xc] sm:$0x1]
      %v760 = vld [vmem:[#allocation3 + $0x14] sm:$0x1]
      %v761 = vld [vmem:[#allocation3 + $0x1c] sm:$0x1]
      %v762 = vld [vmem:[#allocation3 + $0x24] sm:$0x1]
      %v763 = vld [vmem:[#allocation3 + $0x2c] sm:$0x1]
      %v764 = vld [vmem:[#allocation3 + $0x34] sm:$0x1]
      %v765 = vld [vmem:[#allocation3 + $0x3c] sm:$0x1]
      %vm766 = vsmask.f32 3328
      %vm767 = vsmask.f32 7440
      %vm768 = vmor %vm766, %vm767
      %v770 = vshrl.u32 %v726, 16
      %v772 = vrot.slane %v770, 4
      %v773 = vshll.u32 %v726, 16
      %v775 = vrot.slane %v773, 5
      %v776 = vor.u32 %v772, %v775
      %v777 = vrot.slane %v776, 4
      %v779 = vshll.u32 %v727, 16
      %v781 = vrot.slane %v779, 5
      %v782 = vsel %vm768, %v777, %v781
      %v784 = vshrl.u32 %v728, 16
      %v786 = vrot.slane %v784, 4
      %v787 = vshll.u32 %v728, 16
      %v789 = vrot.slane %v787, 5
      %v790 = vor.u32 %v786, %v789
      %v791 = vrot.slane %v790, 4
      %v793 = vshll.u32 %v729, 16
      %v795 = vrot.slane %v793, 5
      %v796 = vsel %vm768, %v791, %v795
      %v798 = vshrl.u32 %v730, 16
      %v800 = vrot.slane %v798, 4
      %v801 = vshll.u32 %v730, 16
      %v803 = vrot.slane %v801, 5
      %v804 = vor.u32 %v800, %v803
      %v805 = vrot.slane %v804, 4
      %v807 = vshll.u32 %v731, 16
      %v809 = vrot.slane %v807, 5
      %v810 = vsel %vm768, %v805, %v809
      %v812 = vshrl.u32 %v732, 16
      %v814 = vrot.slane %v812, 4
      %v815 = vshll.u32 %v732, 16
      %v817 = vrot.slane %v815, 5
      %v818 = vor.u32 %v814, %v817
      %v819 = vrot.slane %v818, 4
      %v821 = vshll.u32 %v733, 16
      %v823 = vrot.slane %v821, 5
      %v824 = vsel %vm768, %v819, %v823
      %v826 = vshrl.u32 %v734, 16
      %v828 = vrot.slane %v826, 4
      %v829 = vshll.u32 %v734, 16
      %v831 = vrot.slane %v829, 5
      %v832 = vor.u32 %v828, %v831
      %v833 = vrot.slane %v832, 4
      %v835 = vshll.u32 %v735, 16
      %v837 = vrot.slane %v835, 5
      %v838 = vsel %vm768, %v833, %v837
      %v840 = vshrl.u32 %v736, 16
      %v842 = vrot.slane %v840, 4
      %v843 = vshll.u32 %v736, 16
      %v845 = vrot.slane %v843, 5
      %v846 = vor.u32 %v842, %v845
      %v847 = vrot.slane %v846, 4
      %v849 = vshll.u32 %v737, 16
      %v851 = vrot.slane %v849, 5
      %v852 = vsel %vm768, %v847, %v851
      %v854 = vshrl.u32 %v738, 16
      %v856 = vrot.slane %v854, 4
      %v857 = vshll.u32 %v738, 16
      %v859 = vrot.slane %v857, 5
      %v860 = vor.u32 %v856, %v859
      %v861 = vrot.slane %v860, 4
      %v863 = vshll.u32 %v739, 16
      %v865 = vrot.slane %v863, 5
      %v866 = vsel %vm768, %v861, %v865
      %v868 = vshrl.u32 %v740, 16
      %v870 = vrot.slane %v868, 4
      %v871 = vshll.u32 %v740, 16
      %v873 = vrot.slane %v871, 5
      %v874 = vor.u32 %v870, %v873
      %v875 = vrot.slane %v874, 4
      %v877 = vshll.u32 %v741, 16
      %v879 = vrot.slane %v877, 5
      %v880 = vsel %vm768, %v875, %v879
      %v881 = vld [vmem:[%s2] sm:$0xf]
      %v882 = vld [vmem:[%s2 + $0x4] sm:$0xf]
      %v883 = vld [vmem:[%s2 + $0x8] sm:$0xf]
      %v884 = vld [vmem:[%s2 + $0xc] sm:$0xf]
      %v885 = vld [vmem:[%s2 + $0x10] sm:$0xf]
      %v886 = vld [vmem:[%s2 + $0x14] sm:$0xf]
      %v887 = vld [vmem:[%s2 + $0x18] sm:$0xf]
      %v888 = vld [vmem:[%s2 + $0x1c] sm:$0xf]
      %v889 = vld [vmem:[%s2 + $0x20] sm:$0xf]
      %v890 = vld [vmem:[%s2 + $0x24] sm:$0xf]
      %v891 = vld [vmem:[%s2 + $0x28] sm:$0xf]
      %v892 = vld [vmem:[%s2 + $0x2c] sm:$0xf]
      %v893 = vld [vmem:[%s2 + $0x30] sm:$0xf]
      %v894 = vld [vmem:[%s2 + $0x34] sm:$0xf]
      %v895 = vld [vmem:[%s2 + $0x38] sm:$0xf]
      %v896 = vld [vmem:[%s2 + $0x3c] sm:$0xf]
      %v898 = vshrl.u32 %v750, 16
      %v900 = vrot.slane %v898, 4
      %v901 = vshll.u32 %v750, 16
      %v903 = vrot.slane %v901, 5
      %v904 = vor.u32 %v900, %v903
      %v905 = vrot.slane %v904, 4
      %v907 = vshll.u32 %v758, 16
      %v909 = vrot.slane %v907, 5
      %v910 = vsel %vm768, %v905, %v909
      %v912 = vshrl.u32 %v751, 16
      %v914 = vrot.slane %v912, 4
      %v915 = vshll.u32 %v751, 16
      %v917 = vrot.slane %v915, 5
      %v918 = vor.u32 %v914, %v917
      %v919 = vrot.slane %v918, 4
      %v921 = vshll.u32 %v759, 16
      %v923 = vrot.slane %v921, 5
      %v924 = vsel %vm768, %v919, %v923
      %v926 = vshrl.u32 %v752, 16
      %v928 = vrot.slane %v926, 4
      %v929 = vshll.u32 %v752, 16
      %v931 = vrot.slane %v929, 5
      %v932 = vor.u32 %v928, %v931
      %v933 = vrot.slane %v932, 4
      %v935 = vshll.u32 %v760, 16
      %v937 = vrot.slane %v935, 5
      %v938 = vsel %vm768, %v933, %v937
      %v940 = vshrl.u32 %v753, 16
      %v942 = vrot.slane %v940, 4
      %v943 = vshll.u32 %v753, 16
      %v945 = vrot.slane %v943, 5
      %v946 = vor.u32 %v942, %v945
      %v947 = vrot.slane %v946, 4
      %v949 = vshll.u32 %v761, 16
      %v951 = vrot.slane %v949, 5
      %v952 = vsel %vm768, %v947, %v951
      %v954 = vshrl.u32 %v754, 16
      %v956 = vrot.slane %v954, 4
      %v957 = vshll.u32 %v754, 16
      %v959 = vrot.slane %v957, 5
      %v960 = vor.u32 %v956, %v959
      %v961 = vrot.slane %v960, 4
      %v963 = vshll.u32 %v762, 16
      %v965 = vrot.slane %v963, 5
      %v966 = vsel %vm768, %v961, %v965
      %v968 = vshrl.u32 %v755, 16
      %v970 = vrot.slane %v968, 4
      %v971 = vshll.u32 %v755, 16
      %v973 = vrot.slane %v971, 5
      %v974 = vor.u32 %v970, %v973
      %v975 = vrot.slane %v974, 4
      %v977 = vshll.u32 %v763, 16
      %v979 = vrot.slane %v977, 5
      %v980 = vsel %vm768, %v975, %v979
      %v982 = vshrl.u32 %v756, 16
      %v984 = vrot.slane %v982, 4
      %v985 = vshll.u32 %v756, 16
      %v987 = vrot.slane %v985, 5
      %v988 = vor.u32 %v984, %v987
      %v989 = vrot.slane %v988, 4
      %v991 = vshll.u32 %v764, 16
      %v993 = vrot.slane %v991, 5
      %v994 = vsel %vm768, %v989, %v993
      %v996 = vshrl.u32 %v757, 16
      %v998 = vrot.slane %v996, 4
      %v999 = vshll.u32 %v757, 16
      %v1001 = vrot.slane %v999, 5
      %v1002 = vor.u32 %v998, %v1001
      %v1003 = vrot.slane %v1002, 4
      %v1005 = vshll.u32 %v765, 16
      %v1007 = vrot.slane %v1005, 5
      %v1008 = vsel %vm768, %v1003, %v1007
      %s1009 = scalar_lea.vmem %s2, 64
      %v1010 = vld [vmem:[%s1009] sm:$0xf]
      %v1011 = vld [vmem:[%s1009 + $0x4] sm:$0xf]
      %v1012 = vld [vmem:[%s1009 + $0x8] sm:$0xf]
      %v1013 = vld [vmem:[%s1009 + $0xc] sm:$0xf]
      %v1014 = vld [vmem:[%s1009 + $0x10] sm:$0xf]
      %v1015 = vld [vmem:[%s1009 + $0x14] sm:$0xf]
      %v1016 = vld [vmem:[%s1009 + $0x18] sm:$0xf]
      %v1017 = vld [vmem:[%s1009 + $0x1c] sm:$0xf]
      %v1018 = vld [vmem:[%s1009 + $0x20] sm:$0xf]
      %v1019 = vld [vmem:[%s1009 + $0x24] sm:$0xf]
      %v1020 = vld [vmem:[%s1009 + $0x28] sm:$0xf]
      %v1021 = vld [vmem:[%s1009 + $0x2c] sm:$0xf]
      %v1022 = vld [vmem:[%s1009 + $0x30] sm:$0xf]
      %v1023 = vld [vmem:[%s1009 + $0x34] sm:$0xf]
      %v1024 = vld [vmem:[%s1009 + $0x38] sm:$0xf]
      %v1025 = vld [vmem:[%s1009 + $0x3c] sm:$0xf]
      %v1026 = vunpack.c.l.b16 %v782
      %v1027 = vunpack.c.l.b16 %v796
      %v1028 = vunpack.c.l.b16 %v810
      %v1029 = vunpack.c.l.b16 %v824
      %v1030 = vunpack.c.l.b16 %v838
      %v1031 = vunpack.c.l.b16 %v852
      %v1032 = vunpack.c.l.b16 %v866
      %v1033 = vunpack.c.l.b16 %v880
      %v1034 = vunpack.c.l.b16 %v910
      %v1035 = vunpack.c.l.b16 %v924
      %v1036 = vunpack.c.l.b16 %v938
      %v1037 = vunpack.c.l.b16 %v952
      %v1038 = vunpack.c.l.b16 %v966
      %v1039 = vunpack.c.l.b16 %v980
      %v1040 = vunpack.c.l.b16 %v994
      %v1041 = vunpack.c.l.b16 %v1008
      %v1042 = vpack.c.b16 %v1027, %v1026
      %v1043 = vpack.c.b16 %v1029, %v1028
      %v1044 = vpack.c.b16 %v1031, %v1030
      %v1045 = vpack.c.b16 %v1033, %v1032
      %v1046 = vpack.c.b16 %v1035, %v1034
      %v1047 = vpack.c.b16 %v1037, %v1036
      %v1048 = vpack.c.b16 %v1039, %v1038
      %v1049 = vpack.c.b16 %v1041, %v1040
      %v1074 = vunpack.c.l.b16 %v1010
      %v1075 = vunpack.c.l.b16 %v1011
      %v1076 = vunpack.c.l.b16 %v1012
      %v1077 = vunpack.c.l.b16 %v1013
      %v1078 = vunpack.c.l.b16 %v1014
      %v1079 = vunpack.c.l.b16 %v1015
      %v1080 = vunpack.c.l.b16 %v1016
      %v1081 = vunpack.c.l.b16 %v1017
      %v1082 = vunpack.c.l.b16 %v1018
      %v1083 = vunpack.c.l.b16 %v1019
      %v1084 = vunpack.c.l.b16 %v1020
      %v1085 = vunpack.c.l.b16 %v1021
      %v1086 = vunpack.c.l.b16 %v1022
      %v1087 = vunpack.c.l.b16 %v1023
      %v1088 = vunpack.c.l.b16 %v1024
      %v1089 = vunpack.c.l.b16 %v1025
      %v1090 = vpack.c.b16 %v1075, %v1074
      %v1091 = vpack.c.b16 %v1077, %v1076
      %v1092 = vpack.c.b16 %v1079, %v1078
      %v1093 = vpack.c.b16 %v1081, %v1080
      %v1094 = vpack.c.b16 %v1083, %v1082
      %v1095 = vpack.c.b16 %v1085, %v1084
      %v1096 = vpack.c.b16 %v1087, %v1086
      %v1097 = vpack.c.b16 %v1089, %v1088
      %1106 = vmatprep.subr.bf16.mxu0 0
      %1107 = vmatpush1.bf16.msra.mxu0 %v1090
      %1108 = vmatprep.subr.bf16.mxu0 0
      %1109 = vmatpush1.bf16.msra.mxu0 %v1091
      %1110 = vmatprep.subr.bf16.mxu0 0
      %1111 = vmatpush1.bf16.msra.mxu0 %v1092
      %1112 = vmatprep.subr.bf16.mxu0 0
      %1113 = vmatpush1.bf16.msra.mxu0 %v1093
      %1114 = vmatprep.subr.bf16.mxu0 0
      %1115 = vmatpush1.bf16.msra.mxu0 %v1094
      %1116 = vmatprep.subr.bf16.mxu0 0
      %1117 = vmatpush1.bf16.msra.mxu0 %v1095
      %1118 = vmatprep.subr.bf16.mxu0 0
      %1119 = vmatpush1.bf16.msra.mxu0 %v1096
      %1120 = vmatprep.subr.bf16.mxu0 0
      %1121 = vmatpush1.bf16.msra.mxu0 %v1097
      %1122 = vmatprep.subr.bf16.mxu0 0
      %1123 = vmatpush1.bf16.msra.mxu0 0
      %1124 = vmatprep.subr.bf16.mxu0 0
      %1125 = vmatpush1.bf16.msra.mxu0 0
      %1126 = vmatprep.subr.bf16.mxu0 0
      %1127 = vmatpush1.bf16.msra.mxu0 0
      %1128 = vmatprep.subr.bf16.mxu0 0
      %1129 = vmatpush1.bf16.msra.mxu0 0
      %1130 = vmatprep.subr.bf16.mxu0 0
      %1131 = vmatpush1.bf16.msra.mxu0 0
      %1132 = vmatprep.subr.bf16.mxu0 0
      %1133 = vmatpush1.bf16.msra.mxu0 0
      %1134 = vmatprep.subr.bf16.mxu0 0
      %1135 = vmatpush1.bf16.msra.mxu0 0
      %1136 = vmatprep.subr.bf16.mxu0 0
      %1137 = vmatpush1.bf16.msra.mxu0 0
      %1138 = vmatprep.mubr.bf16.mxu0 0
      %1139 = vmatmul.mubr.bf16.gmra.mrb[0].mxu0 %v1042
      %v1140 = vpop.f32.mrb[0].mxu0
      %v1141 = vadd.f32 0.0, %v1140
      %v1142 = vpop.f32.mrb[0].mxu0
      %v1143 = vpop.f32.mrb[0].mxu0
      %v1144 = vadd.f32 0.0, %v1143
      %v1145 = vpop.f32.mrb[0].mxu0
      %1146 = vmatprep.mubr.bf16.mxu0 0
      %1147 = vmatmul.mubr.bf16.gmra.mrb[0].mxu0 %v1043
      %v1148 = vpop.f32.mrb[0].mxu0
      %v1149 = vadd.f32 0.0, %v1148
      %v1150 = vpop.f32.mrb[0].mxu0
      %v1151 = vpop.f32.mrb[0].mxu0
      %v1152 = vadd.f32 0.0, %v1151
      %v1153 = vpop.f32.mrb[0].mxu0
      %1154 = vmatprep.mubr.bf16.mxu0 0
      %1155 = vmatmul.mubr.bf16.gmra.mrb[0].mxu0 %v1044
      %v1156 = vpop.f32.mrb[0].mxu0
      %v1157 = vadd.f32 0.0, %v1156
      %v1158 = vpop.f32.mrb[0].mxu0
      %v1159 = vpop.f32.mrb[0].mxu0
      %v1160 = vadd.f32 0.0, %v1159
      %v1161 = vpop.f32.mrb[0].mxu0
      %1162 = vmatprep.mubr.bf16.mxu0 0
      %1163 = vmatmul.mubr.bf16.gmra.mrb[0].mxu0 %v1045
      %v1164 = vpop.f32.mrb[0].mxu0
      %v1165 = vadd.f32 0.0, %v1164
      %v1166 = vpop.f32.mrb[0].mxu0
      %v1167 = vpop.f32.mrb[0].mxu0
      %v1168 = vadd.f32 0.0, %v1167
      %v1169 = vpop.f32.mrb[0].mxu0
      %1170 = vmatprep.mubr.bf16.mxu0 0
      %1171 = vmatmul.mubr.bf16.gmra.mrb[0].mxu0 %v1046
      %v1172 = vpop.f32.mrb[0].mxu0
      %v1173 = vadd.f32 0.0, %v1172
      %v1174 = vpop.f32.mrb[0].mxu0
      %v1175 = vpop.f32.mrb[0].mxu0
      %v1176 = vadd.f32 0.0, %v1175
      %v1177 = vpop.f32.mrb[0].mxu0
      %1178 = vmatprep.mubr.bf16.mxu0 0
      %1179 = vmatmul.mubr.bf16.gmra.mrb[0].mxu0 %v1047
      %v1180 = vpop.f32.mrb[0].mxu0
      %v1181 = vadd.f32 0.0, %v1180
      %v1182 = vpop.f32.mrb[0].mxu0
      %v1183 = vpop.f32.mrb[0].mxu0
      %v1184 = vadd.f32 0.0, %v1183
      %v1185 = vpop.f32.mrb[0].mxu0
      %1186 = vmatprep.mubr.bf16.mxu0 0
      %1187 = vmatmul.mubr.bf16.gmra.mrb[0].mxu0 %v1048
      %v1188 = vpop.f32.mrb[0].mxu0
      %v1189 = vadd.f32 0.0, %v1188
      %v1190 = vpop.f32.mrb[0].mxu0
      %v1191 = vpop.f32.mrb[0].mxu0
      %v1192 = vadd.f32 0.0, %v1191
      %v1193 = vpop.f32.mrb[0].mxu0
      %1194 = vmatprep.mubr.bf16.mxu0 0
      %1195 = vmatmul.mubr.bf16.gmra.mrb[0].mxu0 %v1049
      %v1196 = vpop.f32.mrb[0].mxu0
      %v1197 = vadd.f32 0.0, %v1196
      %v1198 = vpop.f32.mrb[0].mxu0
      %v1199 = vpop.f32.mrb[0].mxu0
      %v1200 = vadd.f32 0.0, %v1199
      %v1201 = vpop.f32.mrb[0].mxu0
      %1202 = vdwg.mxu0
      %v1211 = vunpack.c.l.b16 %v750
      %v1212 = vunpack.c.l.b16 %v751
      %v1213 = vunpack.c.l.b16 %v752
      %v1214 = vunpack.c.l.b16 %v753
      %v1215 = vunpack.c.l.b16 %v754
      %v1216 = vunpack.c.l.b16 %v755
      %v1217 = vunpack.c.l.b16 %v756
      %v1218 = vunpack.c.l.b16 %v757
      %v1219 = vpack.c.b16 %v1212, %v1211
      %v1220 = vpack.c.b16 %v1214, %v1213
      %v1221 = vpack.c.b16 %v1216, %v1215
      %v1222 = vpack.c.b16 %v1218, %v1217
      %v1243 = vunpack.c.l.b16 %v881
      %v1244 = vunpack.c.l.b16 %v882
      %v1245 = vunpack.c.l.b16 %v883
      %v1246 = vunpack.c.l.b16 %v884
      %v1247 = vunpack.c.l.b16 %v885
      %v1248 = vunpack.c.l.b16 %v886
      %v1249 = vunpack.c.l.b16 %v887
      %v1250 = vunpack.c.l.b16 %v888
      %v1251 = vunpack.c.l.b16 %v889
      %v1252 = vunpack.c.l.b16 %v890
      %v1253 = vunpack.c.l.b16 %v891
      %v1254 = vunpack.c.l.b16 %v892
      %v1255 = vunpack.c.l.b16 %v893
      %v1256 = vunpack.c.l.b16 %v894
      %v1257 = vunpack.c.l.b16 %v895
      %v1258 = vunpack.c.l.b16 %v896
      %v1259 = vpack.c.b16 %v1244, %v1243
      %v1260 = vpack.c.b16 %v1246, %v1245
      %v1261 = vpack.c.b16 %v1248, %v1247
      %v1262 = vpack.c.b16 %v1250, %v1249
      %v1263 = vpack.c.b16 %v1252, %v1251
      %v1264 = vpack.c.b16 %v1254, %v1253
      %v1265 = vpack.c.b16 %v1256, %v1255
      %v1266 = vpack.c.b16 %v1258, %v1257
      %1275 = vmatprep.subr.bf16.mxu0 0
      %1276 = vmatpush1.bf16.msra.mxu0 %v1259
      %1277 = vmatprep.subr.bf16.mxu0 0
      %1278 = vmatpush1.bf16.msra.mxu0 %v1260
      %1279 = vmatprep.subr.bf16.mxu0 0
      %1280 = vmatpush1.bf16.msra.mxu0 %v1261
      %1281 = vmatprep.subr.bf16.mxu0 0
      %1282 = vmatpush1.bf16.msra.mxu0 %v1262
      %1283 = vmatprep.subr.bf16.mxu0 0
      %1284 = vmatpush1.bf16.msra.mxu0 %v1263
      %1285 = vmatprep.subr.bf16.mxu0 0
      %1286 = vmatpush1.bf16.msra.mxu0 %v1264
      %1287 = vmatprep.subr.bf16.mxu0 0
      %1288 = vmatpush1.bf16.msra.mxu0 %v1265
      %1289 = vmatprep.subr.bf16.mxu0 0
      %1290 = vmatpush1.bf16.msra.mxu0 %v1266
      %1291 = vmatprep.subr.bf16.mxu0 0
      %1292 = vmatpush1.bf16.msra.mxu0 0
      %1293 = vmatprep.subr.bf16.mxu0 0
      %1294 = vmatpush1.bf16.msra.mxu0 0
      %1295 = vmatprep.subr.bf16.mxu0 0
      %1296 = vmatpush1.bf16.msra.mxu0 0
      %1297 = vmatprep.subr.bf16.mxu0 0
      %1298 = vmatpush1.bf16.msra.mxu0 0
      %1299 = vmatprep.subr.bf16.mxu0 0
      %1300 = vmatpush1.bf16.msra.mxu0 0
      %1301 = vmatprep.subr.bf16.mxu0 0
      %1302 = vmatpush1.bf16.msra.mxu0 0
      %1303 = vmatprep.subr.bf16.mxu0 0
      %1304 = vmatpush1.bf16.msra.mxu0 0
      %1305 = vmatprep.subr.bf16.mxu0 0
      %1306 = vmatpush1.bf16.msra.mxu0 0
      %1307 = vmatprep.mubr.bf16.mxu0 0
      %1308 = vmatmul.mubr.bf16.gmra.mrb[0].mxu0 %v1219
      %v1309 = vpop.f32.mrb[0].mxu0
      %v1310 = vadd.f32 %v1141, %v1309
      %v1311 = vpop.f32.mrb[0].mxu0
      %v1312 = vpop.f32.mrb[0].mxu0
      %v1313 = vadd.f32 %v1144, %v1312
      %v1314 = vpop.f32.mrb[0].mxu0
      %1315 = vmatprep.mubr.bf16.mxu0 0
      %1316 = vmatmul.mubr.bf16.gmra.mrb[0].mxu0 %v1220
      %v1317 = vpop.f32.mrb[0].mxu0
      %v1318 = vadd.f32 %v1149, %v1317
      %v1319 = vpop.f32.mrb[0].mxu0
      %v1320 = vpop.f32.mrb[0].mxu0
      %v1321 = vadd.f32 %v1152, %v1320
      %v1322 = vpop.f32.mrb[0].mxu0
      %1323 = vmatprep.mubr.bf16.mxu0 0
      %1324 = vmatmul.mubr.bf16.gmra.mrb[0].mxu0 %v1221
      %v1325 = vpop.f32.mrb[0].mxu0
      %v1326 = vadd.f32 %v1157, %v1325
      %v1327 = vpop.f32.mrb[0].mxu0
      %v1328 = vpop.f32.mrb[0].mxu0
      %v1329 = vadd.f32 %v1160, %v1328
      %v1330 = vpop.f32.mrb[0].mxu0
      %1331 = vmatprep.mubr.bf16.mxu0 0
      %1332 = vmatmul.mubr.bf16.gmra.mrb[0].mxu0 %v1222
      %v1333 = vpop.f32.mrb[0].mxu0
      %v1334 = vadd.f32 %v1165, %v1333
      %v1335 = vpop.f32.mrb[0].mxu0
      %v1336 = vpop.f32.mrb[0].mxu0
      %v1337 = vadd.f32 %v1168, %v1336
      %v1338 = vpop.f32.mrb[0].mxu0
      %1339 = vmatprep.mubr.bf16.mxu0 0
      %1340 = vmatmul.mubr.bf16.gmra.mrb[0].mxu0 %v1042
      %v1341 = vpop.f32.mrb[0].mxu0
      %v1342 = vadd.f32 %v1173, %v1341
      %v1343 = vpop.f32.mrb[0].mxu0
      %v1344 = vpop.f32.mrb[0].mxu0
      %v1345 = vadd.f32 %v1176, %v1344
      %v1346 = vpop.f32.mrb[0].mxu0
      %1347 = vmatprep.mubr.bf16.mxu0 0
      %1348 = vmatmul.mubr.bf16.gmra.mrb[0].mxu0 %v1043
      %v1349 = vpop.f32.mrb[0].mxu0
      %v1350 = vadd.f32 %v1181, %v1349
      %v1351 = vpop.f32.mrb[0].mxu0
      %v1352 = vpop.f32.mrb[0].mxu0
      %v1353 = vadd.f32 %v1184, %v1352
      %v1354 = vpop.f32.mrb[0].mxu0
      %1355 = vmatprep.mubr.bf16.mxu0 0
      %1356 = vmatmul.mubr.bf16.gmra.mrb[0].mxu0 %v1044
      %v1357 = vpop.f32.mrb[0].mxu0
      %v1358 = vadd.f32 %v1189, %v1357
      %v1359 = vpop.f32.mrb[0].mxu0
      %v1360 = vpop.f32.mrb[0].mxu0
      %v1361 = vadd.f32 %v1192, %v1360
      %v1362 = vpop.f32.mrb[0].mxu0
      %1363 = vmatprep.mubr.bf16.mxu0 0
      %1364 = vmatmul.mubr.bf16.gmra.mrb[0].mxu0 %v1045
      %v1365 = vpop.f32.mrb[0].mxu0
      %v1366 = vadd.f32 %v1197, %v1365
      %v1367 = vpop.f32.mrb[0].mxu0
      %v1368 = vpop.f32.mrb[0].mxu0
      %v1369 = vadd.f32 %v1200, %v1368
      %v1370 = vpop.f32.mrb[0].mxu0
      %1371 = vdwg.mxu0
      %v1373 = vshrl.u32 %v742, 16
      %v1375 = vrot.slane %v1373, 4
      %v1376 = vshll.u32 %v742, 16
      %v1378 = vrot.slane %v1376, 5
      %v1379 = vor.u32 %v1375, %v1378
      %v1380 = vrot.slane %v1379, 4
      %v1381 = vsel %vm768, %v1380, %v781
      %v1382 = vshrl.u32 %v727, 16
      %v1384 = vrot.slane %v1382, 4
      %v1385 = vrot.slane %v1384, 4
      %v1387 = vshrl.u32 %v743, 16
      %v1389 = vrot.slane %v1387, 4
      %v1390 = vshll.u32 %v743, 16
      %v1392 = vrot.slane %v1390, 5
      %v1393 = vor.u32 %v1389, %v1392
      %v1394 = vrot.slane %v1393, 4
      %v1395 = vsel %vm768, %v1394, %v795
      %v1396 = vshrl.u32 %v729, 16
      %v1398 = vrot.slane %v1396, 4
      %v1399 = vrot.slane %v1398, 4
      %v1401 = vshrl.u32 %v744, 16
      %v1403 = vrot.slane %v1401, 4
      %v1404 = vshll.u32 %v744, 16
      %v1406 = vrot.slane %v1404, 5
      %v1407 = vor.u32 %v1403, %v1406
      %v1408 = vrot.slane %v1407, 4
      %v1409 = vsel %vm768, %v1408, %v809
      %v1410 = vshrl.u32 %v731, 16
      %v1412 = vrot.slane %v1410, 4
      %v1413 = vrot.slane %v1412, 4
      %v1415 = vshrl.u32 %v745, 16
      %v1417 = vrot.slane %v1415, 4
      %v1418 = vshll.u32 %v745, 16
      %v1420 = vrot.slane %v1418, 5
      %v1421 = vor.u32 %v1417, %v1420
      %v1422 = vrot.slane %v1421, 4
      %v1423 = vsel %vm768, %v1422, %v823
      %v1424 = vshrl.u32 %v733, 16
      %v1426 = vrot.slane %v1424, 4
      %v1427 = vrot.slane %v1426, 4
      %v1429 = vshrl.u32 %v746, 16
      %v1431 = vrot.slane %v1429, 4
      %v1432 = vshll.u32 %v746, 16
      %v1434 = vrot.slane %v1432, 5
      %v1435 = vor.u32 %v1431, %v1434
      %v1436 = vrot.slane %v1435, 4
      %v1437 = vsel %vm768, %v1436, %v837
      %v1438 = vshrl.u32 %v735, 16
      %v1440 = vrot.slane %v1438, 4
      %v1441 = vrot.slane %v1440, 4
      %v1443 = vshrl.u32 %v747, 16
      %v1445 = vrot.slane %v1443, 4
      %v1446 = vshll.u32 %v747, 16
      %v1448 = vrot.slane %v1446, 5
      %v1449 = vor.u32 %v1445, %v1448
      %v1450 = vrot.slane %v1449, 4
      %v1451 = vsel %vm768, %v1450, %v851
      %v1452 = vshrl.u32 %v737, 16
      %v1454 = vrot.slane %v1452, 4
      %v1455 = vrot.slane %v1454, 4
      %v1457 = vshrl.u32 %v748, 16
      %v1459 = vrot.slane %v1457, 4
      %v1460 = vshll.u32 %v748, 16
      %v1462 = vrot.slane %v1460, 5
      %v1463 = vor.u32 %v1459, %v1462
      %v1464 = vrot.slane %v1463, 4
      %v1465 = vsel %vm768, %v1464, %v865
      %v1466 = vshrl.u32 %v739, 16
      %v1468 = vrot.slane %v1466, 4
      %v1469 = vrot.slane %v1468, 4
      %v1471 = vshrl.u32 %v749, 16
      %v1473 = vrot.slane %v1471, 4
      %v1474 = vshll.u32 %v749, 16
      %v1476 = vrot.slane %v1474, 5
      %v1477 = vor.u32 %v1473, %v1476
      %v1478 = vrot.slane %v1477, 4
      %v1479 = vsel %vm768, %v1478, %v879
      %v1480 = vshrl.u32 %v741, 16
      %v1482 = vrot.slane %v1480, 4
      %v1483 = vrot.slane %v1482, 4
      %v1485 = vshrl.u32 %v1381, 16
      %v1487 = vrot.slane %v1485, 4
      %v1488 = vshll.u32 %v1381, 16
      %v1490 = vrot.slane %v1488, 5
      %v1491 = vor.u32 %v1487, %v1490
      %v1492 = vrot.slane %v1491, 4
      %v1494 = vshll.u32 %v1385, 16
      %v1496 = vrot.slane %v1494, 5
      %v1497 = vsel %vm768, %v1492, %v1496
      %v1499 = vshrl.u32 %v1395, 16
      %v1501 = vrot.slane %v1499, 4
      %v1502 = vshll.u32 %v1395, 16
      %v1504 = vrot.slane %v1502, 5
      %v1505 = vor.u32 %v1501, %v1504
      %v1506 = vrot.slane %v1505, 4
      %v1508 = vshll.u32 %v1399, 16
      %v1510 = vrot.slane %v1508, 5
      %v1511 = vsel %vm768, %v1506, %v1510
      %v1513 = vshrl.u32 %v1409, 16
      %v1515 = vrot.slane %v1513, 4
      %v1516 = vshll.u32 %v1409, 16
      %v1518 = vrot.slane %v1516, 5
      %v1519 = vor.u32 %v1515, %v1518
      %v1520 = vrot.slane %v1519, 4
      %v1522 = vshll.u32 %v1413, 16
      %v1524 = vrot.slane %v1522, 5
      %v1525 = vsel %vm768, %v1520, %v1524
      %v1527 = vshrl.u32 %v1423, 16
      %v1529 = vrot.slane %v1527, 4
      %v1530 = vshll.u32 %v1423, 16
      %v1532 = vrot.slane %v1530, 5
      %v1533 = vor.u32 %v1529, %v1532
      %v1534 = vrot.slane %v1533, 4
      %v1536 = vshll.u32 %v1427, 16
      %v1538 = vrot.slane %v1536, 5
      %v1539 = vsel %vm768, %v1534, %v1538
      %v1541 = vshrl.u32 %v1437, 16
      %v1543 = vrot.slane %v1541, 4
      %v1544 = vshll.u32 %v1437, 16
      %v1546 = vrot.slane %v1544, 5
      %v1547 = vor.u32 %v1543, %v1546
      %v1548 = vrot.slane %v1547, 4
      %v1550 = vshll.u32 %v1441, 16
      %v1552 = vrot.slane %v1550, 5
      %v1553 = vsel %vm768, %v1548, %v1552
      %v1555 = vshrl.u32 %v1451, 16
      %v1557 = vrot.slane %v1555, 4
      %v1558 = vshll.u32 %v1451, 16
      %v1560 = vrot.slane %v1558, 5
      %v1561 = vor.u32 %v1557, %v1560
      %v1562 = vrot.slane %v1561, 4
      %v1564 = vshll.u32 %v1455, 16
      %v1566 = vrot.slane %v1564, 5
      %v1567 = vsel %vm768, %v1562, %v1566
      %v1569 = vshrl.u32 %v1465, 16
      %v1571 = vrot.slane %v1569, 4
      %v1572 = vshll.u32 %v1465, 16
      %v1574 = vrot.slane %v1572, 5
      %v1575 = vor.u32 %v1571, %v1574
      %v1576 = vrot.slane %v1575, 4
      %v1578 = vshll.u32 %v1469, 16
      %v1580 = vrot.slane %v1578, 5
      %v1581 = vsel %vm768, %v1576, %v1580
      %v1583 = vshrl.u32 %v1479, 16
      %v1585 = vrot.slane %v1583, 4
      %v1586 = vshll.u32 %v1479, 16
      %v1588 = vrot.slane %v1586, 5
      %v1589 = vor.u32 %v1585, %v1588
      %v1590 = vrot.slane %v1589, 4
      %v1592 = vshll.u32 %v1483, 16
      %v1594 = vrot.slane %v1592, 5
      %v1595 = vsel %vm768, %v1590, %v1594
      %s1596 = scalar_lea.vmem %s2, 128
      %v1597 = vld [vmem:[%s1596] sm:$0xf]
      %v1598 = vld [vmem:[%s1596 + $0x4] sm:$0xf]
      %v1599 = vld [vmem:[%s1596 + $0x8] sm:$0xf]
      %v1600 = vld [vmem:[%s1596 + $0xc] sm:$0xf]
      %v1601 = vld [vmem:[%s1596 + $0x10] sm:$0xf]
      %v1602 = vld [vmem:[%s1596 + $0x14] sm:$0xf]
      %v1603 = vld [vmem:[%s1596 + $0x18] sm:$0xf]
      %v1604 = vld [vmem:[%s1596 + $0x1c] sm:$0xf]
      %v1605 = vld [vmem:[%s1596 + $0x20] sm:$0xf]
      %v1606 = vld [vmem:[%s1596 + $0x24] sm:$0xf]
      %v1607 = vld [vmem:[%s1596 + $0x28] sm:$0xf]
      %v1608 = vld [vmem:[%s1596 + $0x2c] sm:$0xf]
      %v1609 = vld [vmem:[%s1596 + $0x30] sm:$0xf]
      %v1610 = vld [vmem:[%s1596 + $0x34] sm:$0xf]
      %v1611 = vld [vmem:[%s1596 + $0x38] sm:$0xf]
      %v1612 = vld [vmem:[%s1596 + $0x3c] sm:$0xf]
      %v1613 = vunpack.c.l.b16 %v1497
      %v1614 = vunpack.c.l.b16 %v1511
      %v1615 = vunpack.c.l.b16 %v1525
      %v1616 = vunpack.c.l.b16 %v1539
      %v1617 = vunpack.c.l.b16 %v1553
      %v1618 = vunpack.c.l.b16 %v1567
      %v1619 = vunpack.c.l.b16 %v1581
      %v1620 = vunpack.c.l.b16 %v1595
      %v1621 = vpack.c.b16 %v1614, %v1613
      %v1622 = vpack.c.b16 %v1616, %v1615
      %v1623 = vpack.c.b16 %v1618, %v1617
      %v1624 = vpack.c.b16 %v1620, %v1619
      %v1645 = vunpack.c.l.b16 %v1597
      %v1646 = vunpack.c.l.b16 %v1598
      %v1647 = vunpack.c.l.b16 %v1599
      %v1648 = vunpack.c.l.b16 %v1600
      %v1649 = vunpack.c.l.b16 %v1601
      %v1650 = vunpack.c.l.b16 %v1602
      %v1651 = vunpack.c.l.b16 %v1603
      %v1652 = vunpack.c.l.b16 %v1604
      %v1653 = vunpack.c.l.b16 %v1605
      %v1654 = vunpack.c.l.b16 %v1606
      %v1655 = vunpack.c.l.b16 %v1607
      %v1656 = vunpack.c.l.b16 %v1608
      %v1657 = vunpack.c.l.b16 %v1609
      %v1658 = vunpack.c.l.b16 %v1610
      %v1659 = vunpack.c.l.b16 %v1611
      %v1660 = vunpack.c.l.b16 %v1612
      %v1661 = vpack.c.b16 %v1646, %v1645
      %v1662 = vpack.c.b16 %v1648, %v1647
      %v1663 = vpack.c.b16 %v1650, %v1649
      %v1664 = vpack.c.b16 %v1652, %v1651
      %v1665 = vpack.c.b16 %v1654, %v1653
      %v1666 = vpack.c.b16 %v1656, %v1655
      %v1667 = vpack.c.b16 %v1658, %v1657
      %v1668 = vpack.c.b16 %v1660, %v1659
      %1677 = vmatprep.subr.bf16.mxu0 0
      %1678 = vmatpush1.bf16.msra.mxu0 %v1661
      %1679 = vmatprep.subr.bf16.mxu0 0
      %1680 = vmatpush1.bf16.msra.mxu0 %v1662
      %1681 = vmatprep.subr.bf16.mxu0 0
      %1682 = vmatpush1.bf16.msra.mxu0 %v1663
      %1683 = vmatprep.subr.bf16.mxu0 0
      %1684 = vmatpush1.bf16.msra.mxu0 %v1664
      %1685 = vmatprep.subr.bf16.mxu0 0
      %1686 = vmatpush1.bf16.msra.mxu0 %v1665
      %1687 = vmatprep.subr.bf16.mxu0 0
      %1688 = vmatpush1.bf16.msra.mxu0 %v1666
      %1689 = vmatprep.subr.bf16.mxu0 0
      %1690 = vmatpush1.bf16.msra.mxu0 %v1667
      %1691 = vmatprep.subr.bf16.mxu0 0
      %1692 = vmatpush1.bf16.msra.mxu0 %v1668
      %1693 = vmatprep.subr.bf16.mxu0 0
      %1694 = vmatpush1.bf16.msra.mxu0 0
      %1695 = vmatprep.subr.bf16.mxu0 0
      %1696 = vmatpush1.bf16.msra.mxu0 0
      %1697 = vmatprep.subr.bf16.mxu0 0
      %1698 = vmatpush1.bf16.msra.mxu0 0
      %1699 = vmatprep.subr.bf16.mxu0 0
      %1700 = vmatpush1.bf16.msra.mxu0 0
      %1701 = vmatprep.subr.bf16.mxu0 0
      %1702 = vmatpush1.bf16.msra.mxu0 0
      %1703 = vmatprep.subr.bf16.mxu0 0
      %1704 = vmatpush1.bf16.msra.mxu0 0
      %1705 = vmatprep.subr.bf16.mxu0 0
      %1706 = vmatpush1.bf16.msra.mxu0 0
      %1707 = vmatprep.subr.bf16.mxu0 0
      %1708 = vmatpush1.bf16.msra.mxu0 0
      %1709 = vmatprep.mubr.bf16.mxu0 0
      %1710 = vmatmul.mubr.bf16.gmra.mrb[0].mxu0 %v1046
      %v1711 = vpop.f32.mrb[0].mxu0
      %v1712 = vadd.f32 0.0, %v1711
      %v1713 = vpop.f32.mrb[0].mxu0
      %v1714 = vpop.f32.mrb[0].mxu0
      %v1715 = vadd.f32 0.0, %v1714
      %v1716 = vpop.f32.mrb[0].mxu0
      %1717 = vmatprep.mubr.bf16.mxu0 0
      %1718 = vmatmul.mubr.bf16.gmra.mrb[0].mxu0 %v1047
      %v1719 = vpop.f32.mrb[0].mxu0
      %v1720 = vadd.f32 0.0, %v1719
      %v1721 = vpop.f32.mrb[0].mxu0
      %v1722 = vpop.f32.mrb[0].mxu0
      %v1723 = vadd.f32 0.0, %v1722
      %v1724 = vpop.f32.mrb[0].mxu0
      %1725 = vmatprep.mubr.bf16.mxu0 0
      %1726 = vmatmul.mubr.bf16.gmra.mrb[0].mxu0 %v1048
      %v1727 = vpop.f32.mrb[0].mxu0
      %v1728 = vadd.f32 0.0, %v1727
      %v1729 = vpop.f32.mrb[0].mxu0
      %v1730 = vpop.f32.mrb[0].mxu0
      %v1731 = vadd.f32 0.0, %v1730
      %v1732 = vpop.f32.mrb[0].mxu0
      %1733 = vmatprep.mubr.bf16.mxu0 0
      %1734 = vmatmul.mubr.bf16.gmra.mrb[0].mxu0 %v1049
      %v1735 = vpop.f32.mrb[0].mxu0
      %v1736 = vadd.f32 0.0, %v1735
      %v1737 = vpop.f32.mrb[0].mxu0
      %v1738 = vpop.f32.mrb[0].mxu0
      %v1739 = vadd.f32 0.0, %v1738
      %v1740 = vpop.f32.mrb[0].mxu0
      %1741 = vmatprep.mubr.bf16.mxu0 0
      %1742 = vmatmul.mubr.bf16.gmra.mrb[0].mxu0 %v1621
      %v1743 = vpop.f32.mrb[0].mxu0
      %v1744 = vadd.f32 0.0, %v1743
      %v1745 = vpop.f32.mrb[0].mxu0
      %v1746 = vpop.f32.mrb[0].mxu0
      %v1747 = vadd.f32 0.0, %v1746
      %v1748 = vpop.f32.mrb[0].mxu0
      %1749 = vmatprep.mubr.bf16.mxu0 0
      %1750 = vmatmul.mubr.bf16.gmra.mrb[0].mxu0 %v1622
      %v1751 = vpop.f32.mrb[0].mxu0
      %v1752 = vadd.f32 0.0, %v1751
      %v1753 = vpop.f32.mrb[0].mxu0
      %v1754 = vpop.f32.mrb[0].mxu0
      %v1755 = vadd.f32 0.0, %v1754
      %v1756 = vpop.f32.mrb[0].mxu0
      %1757 = vmatprep.mubr.bf16.mxu0 0
      %1758 = vmatmul.mubr.bf16.gmra.mrb[0].mxu0 %v1623
      %v1759 = vpop.f32.mrb[0].mxu0
      %v1760 = vadd.f32 0.0, %v1759
      %v1761 = vpop.f32.mrb[0].mxu0
      %v1762 = vpop.f32.mrb[0].mxu0
      %v1763 = vadd.f32 0.0, %v1762
      %v1764 = vpop.f32.mrb[0].mxu0
      %1765 = vmatprep.mubr.bf16.mxu0 0
      %1766 = vmatmul.mubr.bf16.gmra.mrb[0].mxu0 %v1624
      %v1767 = vpop.f32.mrb[0].mxu0
      %v1768 = vadd.f32 0.0, %v1767
      %v1769 = vpop.f32.mrb[0].mxu0
      %v1770 = vpop.f32.mrb[0].mxu0
      %v1771 = vadd.f32 0.0, %v1770
      %v1772 = vpop.f32.mrb[0].mxu0
      %1773 = vdwg.mxu0
      %v1774 = vadd.f32 %v1310, %v1712
      %v1775 = vadd.f32 %v1313, %v1715
      %v1776 = vadd.f32 %v1318, %v1720
      %v1777 = vadd.f32 %v1321, %v1723
      %v1778 = vadd.f32 %v1326, %v1728
      %v1779 = vadd.f32 %v1329, %v1731
      %v1780 = vadd.f32 %v1334, %v1736
      %v1781 = vadd.f32 %v1337, %v1739
      %v1782 = vadd.f32 %v1342, %v1744
      %v1783 = vadd.f32 %v1345, %v1747
      %v1784 = vadd.f32 %v1350, %v1752
      %v1785 = vadd.f32 %v1353, %v1755
      %v1786 = vadd.f32 %v1358, %v1760
      %v1787 = vadd.f32 %v1361, %v1763
      %v1788 = vadd.f32 %v1366, %v1768
      %v1789 = vadd.f32 %v1369, %v1771
      %v1790 = vld [vmem:[%s3] sm:$0x1]
      %v1792 = vlaneseq
      %v1793 = vshrl.u32 %v1792, 7
      %v1794 = vsub.s32 0, %v1793
      %v1795 = vrot.slane %v1790, %v1794
      %v1797 = vadd.f32 %v1774, %v1795
      %v1798 = vadd.f32 %v1775, %v1795
      %v1799 = vadd.f32 %v1776, %v1795
      %v1800 = vadd.f32 %v1777, %v1795
      %v1801 = vadd.f32 %v1778, %v1795
      %v1802 = vadd.f32 %v1779, %v1795
      %v1803 = vadd.f32 %v1780, %v1795
      %v1804 = vadd.f32 %v1781, %v1795
      %v1805 = vadd.f32 %v1782, %v1795
      %v1806 = vadd.f32 %v1783, %v1795
      %v1807 = vadd.f32 %v1784, %v1795
      %v1808 = vadd.f32 %v1785, %v1795
      %v1809 = vadd.f32 %v1786, %v1795
      %v1810 = vadd.f32 %v1787, %v1795
      %v1811 = vadd.f32 %v1788, %v1795
      %v1812 = vadd.f32 %v1789, %v1795
      %v1813 = vpack.c.bf16 %v1797, %v1797
      %v1814 = vpack.c.bf16 %v1798, %v1798
      %v1815 = vpack.c.bf16 %v1799, %v1799
      %v1816 = vpack.c.bf16 %v1800, %v1800
      %v1817 = vpack.c.bf16 %v1801, %v1801
      %v1818 = vpack.c.bf16 %v1802, %v1802
      %v1819 = vpack.c.bf16 %v1803, %v1803
      %v1820 = vpack.c.bf16 %v1804, %v1804
      %1821 = vst [vmem:[%s320] sm:$0xf] %v1813
      %1822 = vst [vmem:[%s320 + $0x4] sm:$0xf] %v1814
      %1823 = vst [vmem:[%s320 + $0x8] sm:$0xf] %v1815
      %1824 = vst [vmem:[%s320 + $0xc] sm:$0xf] %v1816
      %1825 = vst [vmem:[%s320 + $0x10] sm:$0xf] %v1817
      %1826 = vst [vmem:[%s320 + $0x14] sm:$0xf] %v1818
      %1827 = vst [vmem:[%s320 + $0x18] sm:$0xf] %v1819
      %1828 = vst [vmem:[%s320 + $0x1c] sm:$0xf] %v1820
      %v1829 = vpack.c.bf16 %v1805, %v1805
      %v1830 = vpack.c.bf16 %v1806, %v1806
      %v1831 = vpack.c.bf16 %v1807, %v1807
      %v1832 = vpack.c.bf16 %v1808, %v1808
      %v1833 = vpack.c.bf16 %v1809, %v1809
      %v1834 = vpack.c.bf16 %v1810, %v1810
      %v1835 = vpack.c.bf16 %v1811, %v1811
      %v1836 = vpack.c.bf16 %v1812, %v1812
      %1837 = vst [vmem:[%s326] sm:$0xf] %v1829
      %1838 = vst [vmem:[%s326 + $0x4] sm:$0xf] %v1830
      %1839 = vst [vmem:[%s326 + $0x8] sm:$0xf] %v1831
      %1840 = vst [vmem:[%s326 + $0xc] sm:$0xf] %v1832
      %1841 = vst [vmem:[%s326 + $0x10] sm:$0xf] %v1833
      %1842 = vst [vmem:[%s326 + $0x14] sm:$0xf] %v1834
      %1843 = vst [vmem:[%s326 + $0x18] sm:$0xf] %v1835
      %1844 = vst [vmem:[%s326 + $0x1c] sm:$0xf] %v1836
      %v1845 = vadd.f32 %v1797, %v1798
      %v1846 = vadd.f32 %v1845, %v1799
      %v1847 = vadd.f32 %v1846, %v1800
      %v1848 = vadd.f32 %v1847, %v1801
      %v1849 = vadd.f32 %v1848, %v1802
      %v1850 = vadd.f32 %v1849, %v1803
      %v1851 = vadd.f32 %v1850, %v1804
      %v1852 = vadd.f32 %v1851, %v1805
      %v1853 = vadd.f32 %v1852, %v1806
      %v1854 = vadd.f32 %v1853, %v1807
      %v1855 = vadd.f32 %v1854, %v1808
      %v1856 = vadd.f32 %v1855, %v1809
      %v1857 = vadd.f32 %v1856, %v1810
      %v1858 = vadd.f32 %v1857, %v1811
      %v1859 = vadd.f32 %v1858, %v1812
      %v1860 = vrot.slane %v1859, 4
      %v1861 = vadd.f32 %v1859, %v1860
      %v1862 = vrot.slane %v1861, 2
      %v1863 = vadd.f32 %v1861, %v1862
      %v1864 = vrot.slane %v1863, 1
      %v1865 = vadd.f32 %v1863, %v1864
      %1866 = vst [vmem:[%s330] sm:$0x1] %v1865
      %v1867 = vmul.f32 %v1797, %v1797
      %v1868 = vmul.f32 %v1798, %v1798
      %v1869 = vmul.f32 %v1799, %v1799
      %v1870 = vmul.f32 %v1800, %v1800
      %v1871 = vmul.f32 %v1801, %v1801
      %v1872 = vmul.f32 %v1802, %v1802
      %v1873 = vmul.f32 %v1803, %v1803
      %v1874 = vmul.f32 %v1804, %v1804
      %v1875 = vmul.f32 %v1805, %v1805
      %v1876 = vmul.f32 %v1806, %v1806
      %v1877 = vmul.f32 %v1807, %v1807
      %v1878 = vmul.f32 %v1808, %v1808
      %v1879 = vmul.f32 %v1809, %v1809
      %v1880 = vmul.f32 %v1810, %v1810
      %v1881 = vmul.f32 %v1811, %v1811
      %v1882 = vmul.f32 %v1812, %v1812
      %v1883 = vadd.f32 %v1867, %v1868
      %v1884 = vadd.f32 %v1883, %v1869
      %v1885 = vadd.f32 %v1884, %v1870
      %v1886 = vadd.f32 %v1885, %v1871
      %v1887 = vadd.f32 %v1886, %v1872
      %v1888 = vadd.f32 %v1887, %v1873
      %v1889 = vadd.f32 %v1888, %v1874
      %v1890 = vadd.f32 %v1889, %v1875
      %v1891 = vadd.f32 %v1890, %v1876
      %v1892 = vadd.f32 %v1891, %v1877
      %v1893 = vadd.f32 %v1892, %v1878
      %v1894 = vadd.f32 %v1893, %v1879
      %v1895 = vadd.f32 %v1894, %v1880
      %v1896 = vadd.f32 %v1895, %v1881
      %v1897 = vadd.f32 %v1896, %v1882
      %v1898 = vrot.slane %v1897, 4
      %v1899 = vadd.f32 %v1897, %v1898
      %v1900 = vrot.slane %v1899, 2
      %v1901 = vadd.f32 %v1899, %v1900
      %v1902 = vrot.slane %v1901, 1
      %v1903 = vadd.f32 %v1901, %v1902
      %1904 = vst [vmem:[%s333] sm:$0x1] %v1903
      %s1905 = smul.u32 8, %s19
      %p1906 = scmp.lt.s32.totalorder %s1905, 15
      %s1907 = scalar_select %p1906, %s1905, 15
      %s1908 = smul.addr %s1907, 4
      %s1909 = scalar_lea.vmem %s4, %s1908
      %s1910 = smul.u32 8, %s19
      %p1911 = scmp.lt.s32.totalorder %s1910, 15
      %s1912 = scalar_select %p1911, %s1910, 15
      %s1913 = smul.addr %s1912, 4
      %s1914 = scalar_lea.vmem %s5, %s1913
      %p1915 = scmp.lt.s32.totalorder %s19, 1
      %s1916 = scalar_select %p1915, %s19, 1
      %s1917 = scalar_lea.vmem %s6, %s1916
      %p1918 = scmp.lt.s32.totalorder %s19, 1
      %s1919 = scalar_select %p1918, %s19, 1
      %s1920 = scalar_lea.vmem %s7, %s1919
      // Predicated region
      $region37: #{up_forward.2} parent=35 // pred_check
        %p1921 = pneg %p131
      $region38: #{up_forward.2} parent=35 // pred_check_branch
        %1923 = sbr.rel (%p1921) target = $region40
      $region39: #{up_forward.2} parent=35 // pred_region
        %s1924 = smul.u32 8, %s19
      $region40: #{up_forward.2} parent=35 // pred_fallthru
        _
      // Predicated region
      $region41: #{up_forward.2} parent=35 // pred_check
        %p1925 = pneg %p157
      $region42: #{up_forward.2} parent=35 // pred_check_branch
        %1927 = sbr.rel (%p1925) target = $region44
      $region43: #{up_forward.2} parent=35 // pred_region
        %s1928 = smul.u32 8, %s19
      $region44: #{up_forward.2} parent=35 // pred_fallthru
        _
      // Predicated region
      $region45: #{up_forward.2} parent=35 // pred_check
        %p1929 = pneg %p183
      $region46: #{up_forward.2} parent=35 // pred_check_branch
        %1931 = sbr.rel (%p1929) target = $region48
      $region47: #{up_forward.2} parent=35 // pred_region
        _
      $region48: #{up_forward.2} parent=35 // pred_fallthru
        _
      // Predicated region
      $region49: #{up_forward.2} parent=35 // pred_check
        %p1932 = pneg %p209
      $region50: #{up_forward.2} parent=35 // pred_check_branch
        %1934 = sbr.rel (%p1932) target = $region52
      $region51: #{up_forward.2} parent=35 // pred_region
        _
      $region52: #{up_forward.2} parent=35 // pred_fallthru
        _
    $region36: #{up_forward.2} parent=5 // pred_fallthru
      _
    %p1935 = scmp.le.s32.totalorder 2, %s14
    // Predicated region
    $region53: #{up_forward.2} parent=5 // pred_check
      %p1936 = pneg %p1935
    $region54: #{up_forward.2} parent=5 // pred_check_branch
      %1938 = sbr.rel (%p1936) target = $region56
    $region55: #{up_forward.2} parent=5 // pred_region
      %s1939 = ssub.s32 %s14, 2
      // Predicated region
      $region57: #{up_forward.2} parent=55 // pred_check
        %p1940 = pneg %p137
      $region58: #{up_forward.2} parent=55 // pred_check_branch
        %1942 = sbr.rel (%p1940) target = $region60
      $region59: #{up_forward.2} parent=55 // pred_region
        %s1943 = smul.u32 8, %s20
        %p1944 = scmp.lt.s32.totalorder %s1943, 15
        %s1945 = scalar_select %p1944, %s1943, 15
        %s1946 = smul.addr %s1945, 4
        %s1947 = scalar_lea.vmem %s4, %s1946
      $region60: #{up_forward.2} parent=55 // pred_fallthru
        _
      // Predicated region
      $region61: #{up_forward.2} parent=55 // pred_check
        %p1948 = pneg %p163
      $region62: #{up_forward.2} parent=55 // pred_check_branch
        %1950 = sbr.rel (%p1948) target = $region64
      $region63: #{up_forward.2} parent=55 // pred_region
        %s1951 = smul.u32 8, %s20
        %p1952 = scmp.lt.s32.totalorder %s1951, 15
        %s1953 = scalar_select %p1952, %s1951, 15
        %s1954 = smul.addr %s1953, 4
        %s1955 = scalar_lea.vmem %s5, %s1954
      $region64: #{up_forward.2} parent=55 // pred_fallthru
        _
      // Predicated region
      $region65: #{up_forward.2} parent=55 // pred_check
        %p1956 = pneg %p189
      $region66: #{up_forward.2} parent=55 // pred_check_branch
        %1958 = sbr.rel (%p1956) target = $region68
      $region67: #{up_forward.2} parent=55 // pred_region
        %p1959 = scmp.lt.s32.totalorder %s20, 1
        %s1960 = scalar_select %p1959, %s20, 1
        %s1961 = scalar_lea.vmem %s6, %s1960
      $region68: #{up_forward.2} parent=55 // pred_fallthru
        _
      // Predicated region
      $region69: #{up_forward.2} parent=55 // pred_check
        %p1962 = pneg %p215
      $region70: #{up_forward.2} parent=55 // pred_check_branch
        %1964 = sbr.rel (%p1962) target = $region72
      $region71: #{up_forward.2} parent=55 // pred_region
        %p1965 = scmp.lt.s32.totalorder %s20, 1
        %s1966 = scalar_select %p1965, %s20, 1
        %s1967 = scalar_lea.vmem %s7, %s1966
      $region72: #{up_forward.2} parent=55 // pred_fallthru
        _
    $region56: #{up_forward.2} parent=5 // pred_fallthru
      _
  $region6: #{up_forward.2} parent=0 // loop_footer
    %s18 = sadd.s32 1, %s14
  $region7: #{up_forward.2} parent=0 // loop_footer_branch
    %13 = sbr.rel target = $region3
  $region8: #{up_forward.2} parent=0 // loop_exit
    _

</llo_original>
